<compile_context>
chip_gen: v6e
topology: v6e:2x2x1
jax: 0.10.0
libtpu: 0.0.40
codegen_flags: <defaults>
</compile_context>

<pallas_src>
import jax
import jax.numpy as jnp
from jax.experimental import pallas as pl
from jax.experimental.pallas import tpu as pltpu


# ----------------------------------------------------------------------------- 
# Wrapper-side operand packing helper: stack 2-D arrays as row blocks of one
# [R, lane_width] blob (zero-padded). Row blocks are padded to `row_align` rows
# so every in-kernel slice starts on a sublane-tile boundary.
# -----------------------------------------------------------------------------
def _pack_rows(entries, lane_width, dtype, row_align):
    blocks, offs, r = [], {}, 0
    for name, a in entries:
        rows, cols = a.shape
        assert cols <= lane_width, (name, a.shape)
        rpad = (-rows) % row_align
        blk = jnp.pad(a, ((0, rpad), (0, lane_width - cols)))
        blocks.append(blk.astype(dtype))
        offs[name] = (r, rows, cols)
        r += rows + rpad
    return jnp.concatenate(blocks, axis=0), offs


# -----------------------------------------------------------------------------
# Kernel factory (closes over static dims and blob offsets).
# -----------------------------------------------------------------------------
def _build_kernel(B, T, Tenc, H, D, w_offs, b_offs):
    BT = B * Tenc
    Hf = float(H)          # tanh-bounded scores: |score| <= H
    f32, bf16 = jnp.float32, jnp.bfloat16
    dn = (((1,), (1,)), ((), ()))   # contract last dims: [B,H] x [BT,H] -> [B,BT]

    def kernel(ctx_ref, enc_ref, expl_ref, w_ref, b_ref, wvoc_ref, bvoc_ref,
               out_ref, hbuf_ref):

        def W(name):                       # bf16 weight block from the packed blob
            r, nr, nc = w_offs[name]
            return w_ref[r:r + nr, :nc]

        def Bias(name):                    # f32 [1, nc] bias row
            r, _, nc = b_offs[name]
            return b_ref[r:r + 1, :nc]

        # ---------------- prologue (runs once) -------------------------------
        # GRU initial state / first attention context:
        # context_proj(cat([s1,s2,|s1-s2|,s1*s2])) as one [B,4S]@[4S,D] dot.
        h = jnp.dot(ctx_ref[...], W("wctx"), preferred_element_type=f32) + Bias("bctx")

        # Time-invariant attention keys/values; key|value projections fused.
        enc1 = enc_ref[:BT, :]
        enc2 = enc_ref[BT:, :]
        kv1 = jnp.tanh(jnp.dot(enc1, W("wkv1"), preferred_element_type=f32) + Bias("bkv1"))
        kv2 = jnp.tanh(jnp.dot(enc2, W("wkv2"), preferred_element_type=f32) + Bias("bkv2"))
        k1 = kv1[:, :H].astype(bf16)                      # [BT, H]
        k2 = kv2[:, :H].astype(bf16)
        # Values pre-projected straight into GRU x-gate space: v @ (wpa_s @ wxg).
        v1p = jnp.dot(kv1[:, H:].astype(bf16), W("wpa1_xg"),
                      preferred_element_type=f32).astype(bf16)   # [BT, 3D]
        v2p = jnp.dot(kv2[:, H:].astype(bf16), W("wpa2_xg"),
                      preferred_element_type=f32).astype(bf16)

        # proj_inp_dec folded into the GRU gate matmul; x-path for all T steps.
        xg_x = (jnp.dot(expl_ref[...], W("wpe_xg"), preferred_element_type=f32)
                + Bias("b_eff"))                                  # [T*B, 3D]

        # Hoisted loop invariants (broadcasts emitted once, not per unrolled step).
        wc, whg = W("wc"), W("whg")
        bc_b = jnp.broadcast_to(Bias("bc"), (B, 2 * H))
        bhg_b = jnp.broadcast_to(Bias("bhg"), (B, 3 * D))

        # Block-diagonal batch mask: row b may only attend to its own Tenc keys.
        row = jax.lax.broadcasted_iota(jnp.int32, (B, BT), 0)
        col = jax.lax.broadcasted_iota(jnp.int32, (B, BT), 1)
        mask = jnp.logical_and(col >= row * Tenc, col < (row + 1) * Tenc).astype(f32)

        def attend(c_s, k_s, v_sp):
            # scores[b, j] = <c_s[b], k_s[j]>  (MXU, contract on H)      [B, BT]
            s = jax.lax.dot_general(c_s, k_s, dn, preferred_element_type=f32)
            # queries/keys are tanh outputs => |s| <= H; a constant shift replaces
            # the per-step max-reduce (exp(s-H) in (0, 1], safe in f32).
            e = jnp.exp(s - Hf) * mask
            w = e * pl.reciprocal(jnp.sum(e, axis=-1, keepdims=True), approx=True)
            # attention already projected into gate space                [B, 3D]
            return jnp.dot(w.astype(bf16), v_sp, preferred_element_type=f32)

        # ---------------- decode loop (T static & tiny -> fully unrolled) ----
        for t in range(T):
            hb = h.astype(bf16)
            # fused attention query projection (both sentences, one dot)
            c = jnp.tanh(jnp.dot(hb, wc, preferred_element_type=f32) + bc_b).astype(bf16)
            att = attend(c[:, :H], k1, v1p) + attend(c[:, H:], k2, v2p)   # [B, 3D]
            xg = xg_x[t * B:(t + 1) * B, :] + att                         # x-gate path
            hg = jnp.dot(hb, whg, preferred_element_type=f32) + bhg_b     # h-gate path
            # PyTorch GRU gate order (r, z, n); r applied to the h-path incl. b_hn.
            r = jax.nn.sigmoid(xg[:, :D] + hg[:, :D])
            z = jax.nn.sigmoid(xg[:, D:2 * D] + hg[:, D:2 * D])
            n = jnp.tanh(xg[:, 2 * D:] + r * hg[:, 2 * D:])
            h = (1.0 - z) * n + z * h
            hbuf_ref[pl.ds(t * B, B), :] = h

        # One fused vocab projection for all T steps + single lane-dense store.
        out_ref[...] = (jnp.dot(hbuf_ref[...].astype(bf16), wvoc_ref[...],
                                preferred_element_type=f32) + bvoc_ref[...])

    return kernel


# -----------------------------------------------------------------------------
# Wrapper: weight fusion / algebraic folding / operand packing + pallas_call.
# -----------------------------------------------------------------------------
def attention_decoder_teacher(expl, enc_out_s1, enc_out_s2, s1_embed, s2_embed, params):
    """Teacher-forcing forward pass. Returns [T_dec, B, n_vocab] logits."""
    T, B, E = expl.shape
    Tenc = enc_out_s1.shape[0]
    S = s1_embed.shape[1]
    p = params
    D = p["bctx"].shape[1]
    H = p["bc1"].shape[1]
    V = p["bvoc"].shape[1]
    Vp = ((V + 127) // 128) * 128          # lane-dense output width
    f32, bf16 = jnp.float32, jnp.bfloat16

    # ---- weight fusion / algebraic folding (done once, wrapper-side) --------
    wxg = jnp.concatenate([p["wir"], p["wiz"], p["win"]], axis=1)        # [D, 3D]
    bxg = jnp.concatenate([p["bir"], p["biz"], p["bin"]], axis=1)        # [1, 3D]
    whg = jnp.concatenate([p["whr"], p["whz"], p["whn"]], axis=1)        # [D, 3D]
    bhg = jnp.concatenate([p["bhr"], p["bhz"], p["bhn"]], axis=1)

    wctx = jnp.concatenate([p["wctx1"], p["wctx2"], p["wctx3"], p["wctx4"]], axis=0)  # [4S,D]
    wkv1 = jnp.concatenate([p["wht1"], p["wbw1"]], axis=1)               # [S, 2H]
    bkv1 = jnp.concatenate([p["bht1"], p["bbw1"]], axis=1)
    wkv2 = jnp.concatenate([p["wht2"], p["wbw2"]], axis=1)
    bkv2 = jnp.concatenate([p["bht2"], p["bbw2"]], axis=1)
    wc = jnp.concatenate([p["wc1"], p["wc2"]], axis=1)                   # [D, 2H]
    bc = jnp.concatenate([p["bc1"], p["bc2"]], axis=1)

    # proj_inp_dec folded into the GRU input-gate matmul (dropout p=0 => exact).
    wpe_xg = p["wpe"] @ wxg                                              # [E, 3D]
    wpa1_xg = p["wpa1"] @ wxg                                            # [H, 3D]
    wpa2_xg = p["wpa2"] @ wxg
    b_eff = p["bproj"] @ wxg + bxg                                       # [1, 3D]

    # Vocab weights padded to a multiple of 128 for a lane-dense output store.
    wvoc = jnp.pad(p["wvoc"], ((0, 0), (0, Vp - V))).astype(bf16)        # [D, Vp]
    bvoc = jnp.pad(p["bvoc"], ((0, 0), (0, Vp - V))).astype(f32)         # [1, Vp]

    # ---- operand packing: ~22 tiny operands -> 7 DMAs -----------------------
    wblob, w_offs = _pack_rows(
        [("wctx", wctx), ("wkv1", wkv1), ("wkv2", wkv2), ("wc", wc),
         ("wpe_xg", wpe_xg), ("wpa1_xg", wpa1_xg), ("wpa2_xg", wpa2_xg), ("whg", whg)],
        lane_width=128, dtype=bf16, row_align=16)
    bblob, b_offs = _pack_rows(
        [("bctx", p["bctx"]), ("bkv1", bkv1), ("bkv2", bkv2), ("bc", bc),
         ("b_eff", b_eff), ("bhg", bhg)],
        lane_width=128, dtype=f32, row_align=1)

    # ---- activation layout plumbing (bf16 MXU operands) ---------------------
    ctx_in = jnp.concatenate(
        [s1_embed, s2_embed, jnp.abs(s1_embed - s2_embed), s1_embed * s2_embed],
        axis=1).astype(bf16)                                             # [B, 4S]
    enc1 = jnp.transpose(enc_out_s1, (1, 0, 2)).reshape(B * Tenc, S)
    enc2 = jnp.transpose(enc_out_s2, (1, 0, 2)).reshape(B * Tenc, S)
    enc12 = jnp.concatenate([enc1, enc2], axis=0).astype(bf16)           # [2*B*Tenc, S]
    expl_flat = expl.reshape(T * B, E).astype(bf16)                      # [T*B, E]

    kernel = _build_kernel(B, T, Tenc, H, D, w_offs, b_offs)

    # Single gridless invocation: everything resident in VMEM (~0.1 MiB here),
    # one [T*B, Vp] lane-dense output store.
    out_flat = pl.pallas_call(
        kernel,
        out_shape=jax.ShapeDtypeStruct((T * B, Vp), f32),
        scratch_shapes=[pltpu.VMEM((T * B, D), f32)],
    )(ctx_in, enc12, expl_flat, wblob, bblob, wvoc, bvoc)

    return out_flat[:, :V].reshape(T, B, V)


# -----------------------------------------------------------------------------
# Pure-JAX f32 reference mirroring the PyTorch teacher-mode forward.
# -----------------------------------------------------------------------------
def reference(expl, enc_out_s1, enc_out_s2, s1, s2, p):
    T = expl.shape[0]
    ctx0 = (s1 @ p["wctx1"] + s2 @ p["wctx2"]
            + jnp.abs(s1 - s2) @ p["wctx3"] + (s1 * s2) @ p["wctx4"] + p["bctx"])
    h = ctx0
    enc1 = jnp.transpose(enc_out_s1, (1, 0, 2))
    enc2 = jnp.transpose(enc_out_s2, (1, 0, 2))
    k1 = jnp.tanh(enc1 @ p["wht1"] + p["bht1"])
    v1 = jnp.tanh(enc1 @ p["wbw1"] + p["bbw1"])
    k2 = jnp.tanh(enc2 @ p["wht2"] + p["bht2"])
    v2 = jnp.tanh(enc2 @ p["wbw2"] + p["bbw2"])
    outs = []
    for t in range(T):
        c1 = jnp.tanh(h @ p["wc1"] + p["bc1"])
        w1 = jax.nn.softmax(jnp.einsum("bh,bth->bt", c1, k1), axis=-1)
        a1 = jnp.einsum("bt,bth->bh", w1, v1)
        c2 = jnp.tanh(h @ p["wc2"] + p["bc2"])
        w2 = jax.nn.softmax(jnp.einsum("bh,bth->bt", c2, k2), axis=-1)
        a2 = jnp.einsum("bt,bth->bh", w2, v2)
        xi = expl[t] @ p["wpe"] + a1 @ p["wpa1"] + a2 @ p["wpa2"] + p["bproj"]
        r = jax.nn.sigmoid(xi @ p["wir"] + p["bir"] + h @ p["whr"] + p["bhr"])
        z = jax.nn.sigmoid(xi @ p["wiz"] + p["biz"] + h @ p["whz"] + p["bhz"])
        n = jnp.tanh(xi @ p["win"] + p["bin"] + r * (h @ p["whn"] + p["bhn"]))
        h = (1.0 - z) * n + z * h
        outs.append(h @ p["wvoc"] + p["bvoc"])
    return jnp.stack(outs, axis=0)


def init_params(key, S, E, D, H, V):
    shapes = {
        "wctx1": (S, D), "wctx2": (S, D), "wctx3": (S, D), "wctx4": (S, D), "bctx": (1, D),
        "wht1": (S, H), "bht1": (1, H), "wbw1": (S, H), "bbw1": (1, H),
        "wht2": (S, H), "bht2": (1, H), "wbw2": (S, H), "bbw2": (1, H),
        "wc1": (D, H), "bc1": (1, H), "wc2": (D, H), "bc2": (1, H),
        "wpe": (E, D), "wpa1": (H, D), "wpa2": (H, D), "bproj": (1, D),
        "wir": (D, D), "whr": (D, D), "bir": (1, D), "bhr": (1, D),
        "wiz": (D, D), "whz": (D, D), "biz": (1, D), "bhz": (1, D),
        "win": (D, D), "whn": (D, D), "bin": (1, D), "bhn": (1, D),
        "wvoc": (D, V), "bvoc": (1, V),
    }
    keys = jax.random.split(key, len(shapes))
    params = {}
    for k, (name, shp) in zip(keys, shapes.items()):
        params[name] = (0.1 * jax.random.normal(k, shp)).astype(jnp.float32)
    return params


if __name__ == "__main__":
    # small synthetic config consistent with the module:
    #   enc_rnn_dim=16 -> sent_dim=32, word_emb_dim=16, dec_rnn_dim=32,
    #   att_hid_dim=32, n_vocab=64, max_T_encoder=8, T_dec=6, n_layers_dec=1,
    #   decoder_type='gru', use_init=True, att_type='dot', dpout_dec=0.0
    B, T, Tenc = 2, 6, 8
    S, E, D, H, V = 32, 16, 32, 32, 64

    key = jax.random.PRNGKey(0)
    k1, k2, k3, k4, k5, kp = jax.random.split(key, 6)
    expl = jax.random.normal(k1, (T, B, E), dtype=jnp.float32)
    enc_out_s1 = jax.random.normal(k2, (Tenc, B, S), dtype=jnp.float32)
    enc_out_s2 = jax.random.normal(k3, (Tenc, B, S), dtype=jnp.float32)
    s1_embed = jax.random.normal(k4, (B, S), dtype=jnp.float32)
    s2_embed = jax.random.normal(k5, (B, S), dtype=jnp.float32)
    params = init_params(kp, S, E, D, H, V)

    out = attention_decoder_teacher(expl, enc_out_s1, enc_out_s2, s1_embed, s2_embed, params)
    out = jax.block_until_ready(out)
    assert out.shape == (T, B, V), out.shape

    ref = reference(expl, enc_out_s1, enc_out_s2, s1_embed, s2_embed, params)
    err = float(jnp.max(jnp.abs(out - ref)))
    # bf16 MXU operands (per perf guidance) + approx softmax reciprocal give
    # ~1e-2-scale max-abs deviation vs the all-f32 reference across the 6-step
    # recurrence on O(1) logits; 1e-1 leaves margin while still catching bugs.
    if err > 1e-1:
        raise AssertionError(f"kernel/reference mismatch, max abs err = {err}")
    print("KERNEL_OK")
</pallas_src>

<mosaic_0001>
module attributes {stable_mosaic.version = 11 : i64} {
  func.func @kernel(%arg0: memref<2x128xbf16, #tpu.memory_space<vmem>>, %arg1: memref<32x32xbf16, #tpu.memory_space<vmem>>, %arg2: memref<12x16xbf16, #tpu.memory_space<vmem>>, %arg3: memref<336x128xbf16, #tpu.memory_space<vmem>>, %arg4: memref<6x128xf32, #tpu.memory_space<vmem>>, %arg5: memref<32x128xbf16, #tpu.memory_space<vmem>>, %arg6: memref<1x128xf32, #tpu.memory_space<vmem>>, %arg7: memref<12x128xf32, #tpu.memory_space<vmem>>, %arg8: memref<12x32xf32, #tpu.memory_space<vmem>>) attributes {dimension_semantics = [], scalar_prefetch = 0 : i64, scratch_operands = 1 : i64, tpu.core_type = #tpu.core_type<tc>} {
    %c0 = arith.constant 0 : index
    %c0_0 = arith.constant 0 : index
    %0 = vector.load %arg0[%c0, %c0_0] : memref<2x128xbf16, #tpu.memory_space<vmem>>, vector<2x128xbf16>
    %c0_1 = arith.constant 0 : index
    %c0_2 = arith.constant 0 : index
    %1 = vector.load %arg3[%c0_1, %c0_2] : memref<336x128xbf16, #tpu.memory_space<vmem>>, vector<128x32xbf16>
    %cst = arith.constant dense<0.000000e+00> : vector<2x32xf32>
    %2 = tpu.matmul %0, %1, %cst {dimension_numbers = #tpu.dot_dimension_numbers<[1], [0], [0], [1], [0, 0, 1, 1], [], []>} : vector<2x128xbf16>, vector<128x32xbf16>, vector<2x32xf32> -> vector<2x32xf32>
    %c0_3 = arith.constant 0 : index
    %c0_4 = arith.constant 0 : index
    %3 = vector.load %arg4[%c0_3, %c0_4] : memref<6x128xf32, #tpu.memory_space<vmem>>, vector<1x32xf32>
    %4 = vector.broadcast %3 : vector<1x32xf32> to vector<2x32xf32>
    %5 = arith.addf %2, %4 : vector<2x32xf32>
    %c0_5 = arith.constant 0 : index
    %c0_6 = arith.constant 0 : index
    %6 = vector.load %arg1[%c0_5, %c0_6] : memref<32x32xbf16, #tpu.memory_space<vmem>>, vector<16x32xbf16>
    %c16 = arith.constant 16 : index
    %c0_7 = arith.constant 0 : index
    %7 = vector.load %arg1[%c16, %c0_7] : memref<32x32xbf16, #tpu.memory_space<vmem>>, vector<16x32xbf16>
    %c128 = arith.constant 128 : index
    %c0_8 = arith.constant 0 : index
    %8 = vector.load %arg3[%c128, %c0_8] : memref<336x128xbf16, #tpu.memory_space<vmem>>, vector<32x64xbf16>
    %cst_9 = arith.constant dense<0.000000e+00> : vector<16x64xf32>
    %9 = tpu.matmul %6, %8, %cst_9 {dimension_numbers = #tpu.dot_dimension_numbers<[1], [0], [0], [1], [0, 0, 1, 1], [], []>} : vector<16x32xbf16>, vector<32x64xbf16>, vector<16x64xf32> -> vector<16x64xf32>
    %c1 = arith.constant 1 : index
    %c0_10 = arith.constant 0 : index
    %10 = vector.load %arg4[%c1, %c0_10] : memref<6x128xf32, #tpu.memory_space<vmem>>, vector<1x64xf32>
    %11 = vector.broadcast %10 : vector<1x64xf32> to vector<16x64xf32>
    %12 = arith.addf %9, %11 : vector<16x64xf32>
    %13 = math.tanh %12 : vector<16x64xf32>
    %c160 = arith.constant 160 : index
    %c0_11 = arith.constant 0 : index
    %14 = vector.load %arg3[%c160, %c0_11] : memref<336x128xbf16, #tpu.memory_space<vmem>>, vector<32x64xbf16>
    %cst_12 = arith.constant dense<0.000000e+00> : vector<16x64xf32>
    %15 = tpu.matmul %7, %14, %cst_12 {dimension_numbers = #tpu.dot_dimension_numbers<[1], [0], [0], [1], [0, 0, 1, 1], [], []>} : vector<16x32xbf16>, vector<32x64xbf16>, vector<16x64xf32> -> vector<16x64xf32>
    %c2 = arith.constant 2 : index
    %c0_13 = arith.constant 0 : index
    %16 = vector.load %arg4[%c2, %c0_13] : memref<6x128xf32, #tpu.memory_space<vmem>>, vector<1x64xf32>
    %17 = vector.broadcast %16 : vector<1x64xf32> to vector<16x64xf32>
    %18 = arith.addf %15, %17 : vector<16x64xf32>
    %19 = math.tanh %18 : vector<16x64xf32>
    %20 = vector.extract_strided_slice %13 {offsets = [0, 0], sizes = [16, 32], strides = [1, 1]} : vector<16x64xf32> to vector<16x32xf32>
    %21 = arith.truncf %20 : vector<16x32xf32> to vector<16x32xbf16>
    %22 = vector.extract_strided_slice %19 {offsets = [0, 0], sizes = [16, 32], strides = [1, 1]} : vector<16x64xf32> to vector<16x32xf32>
    %23 = arith.truncf %22 : vector<16x32xf32> to vector<16x32xbf16>
    %24 = vector.extract_strided_slice %13 {offsets = [0, 32], sizes = [16, 32], strides = [1, 1]} : vector<16x64xf32> to vector<16x32xf32>
    %25 = arith.truncf %24 : vector<16x32xf32> to vector<16x32xbf16>
    %c240 = arith.constant 240 : index
    %c0_14 = arith.constant 0 : index
    %26 = vector.load %arg3[%c240, %c0_14] : memref<336x128xbf16, #tpu.memory_space<vmem>>, vector<32x96xbf16>
    %cst_15 = arith.constant dense<0.000000e+00> : vector<16x96xf32>
    %27 = tpu.matmul %25, %26, %cst_15 {dimension_numbers = #tpu.dot_dimension_numbers<[1], [0], [0], [1], [0, 0, 1, 1], [], []>} : vector<16x32xbf16>, vector<32x96xbf16>, vector<16x96xf32> -> vector<16x96xf32>
    %28 = arith.truncf %27 : vector<16x96xf32> to vector<16x96xbf16>
    %29 = vector.extract_strided_slice %19 {offsets = [0, 32], sizes = [16, 32], strides = [1, 1]} : vector<16x64xf32> to vector<16x32xf32>
    %30 = arith.truncf %29 : vector<16x32xf32> to vector<16x32xbf16>
    %c272 = arith.constant 272 : index
    %c0_16 = arith.constant 0 : index
    %31 = vector.load %arg3[%c272, %c0_16] : memref<336x128xbf16, #tpu.memory_space<vmem>>, vector<32x96xbf16>
    %cst_17 = arith.constant dense<0.000000e+00> : vector<16x96xf32>
    %32 = tpu.matmul %30, %31, %cst_17 {dimension_numbers = #tpu.dot_dimension_numbers<[1], [0], [0], [1], [0, 0, 1, 1], [], []>} : vector<16x32xbf16>, vector<32x96xbf16>, vector<16x96xf32> -> vector<16x96xf32>
    %33 = arith.truncf %32 : vector<16x96xf32> to vector<16x96xbf16>
    %c0_18 = arith.constant 0 : index
    %c0_19 = arith.constant 0 : index
    %34 = vector.load %arg2[%c0_18, %c0_19] : memref<12x16xbf16, #tpu.memory_space<vmem>>, vector<12x16xbf16>
    %c224 = arith.constant 224 : index
    %c0_20 = arith.constant 0 : index
    %35 = vector.load %arg3[%c224, %c0_20] : memref<336x128xbf16, #tpu.memory_space<vmem>>, vector<16x96xbf16>
    %cst_21 = arith.constant dense<0.000000e+00> : vector<12x96xf32>
    %36 = tpu.matmul %34, %35, %cst_21 {dimension_numbers = #tpu.dot_dimension_numbers<[1], [0], [0], [1], [0, 0, 1, 1], [], []>} : vector<12x16xbf16>, vector<16x96xbf16>, vector<12x96xf32> -> vector<12x96xf32>
    %c4 = arith.constant 4 : index
    %c0_22 = arith.constant 0 : index
    %37 = vector.load %arg4[%c4, %c0_22] : memref<6x128xf32, #tpu.memory_space<vmem>>, vector<1x96xf32>
    %38 = vector.broadcast %37 : vector<1x96xf32> to vector<12x96xf32>
    %39 = arith.addf %36, %38 : vector<12x96xf32>
    %c192 = arith.constant 192 : index
    %c0_23 = arith.constant 0 : index
    %40 = vector.load %arg3[%c192, %c0_23] : memref<336x128xbf16, #tpu.memory_space<vmem>>, vector<32x64xbf16>
    %c304 = arith.constant 304 : index
    %c0_24 = arith.constant 0 : index
    %41 = vector.load %arg3[%c304, %c0_24] : memref<336x128xbf16, #tpu.memory_space<vmem>>, vector<32x96xbf16>
    %c3 = arith.constant 3 : index
    %c0_25 = arith.constant 0 : index
    %42 = vector.load %arg4[%c3, %c0_25] : memref<6x128xf32, #tpu.memory_space<vmem>>, vector<1x64xf32>
    %43 = vector.shape_cast %42 : vector<1x64xf32> to vector<1x64xf32>
    %44 = vector.broadcast %43 : vector<1x64xf32> to vector<2x64xf32>
    %c5 = arith.constant 5 : index
    %c0_26 = arith.constant 0 : index
    %45 = vector.load %arg4[%c5, %c0_26] : memref<6x128xf32, #tpu.memory_space<vmem>>, vector<1x96xf32>
    %46 = vector.shape_cast %45 : vector<1x96xf32> to vector<1x96xf32>
    %47 = vector.broadcast %46 : vector<1x96xf32> to vector<2x96xf32>
    %48 = tpu.iota {dimensions = array<i32: 0>} : vector<2x16xi32>
    %49 = tpu.iota {dimensions = array<i32: 1>} : vector<2x16xi32>
    %c8_i32 = arith.constant 8 : i32
    %50 = vector.broadcast %c8_i32 : i32 to vector<2x16xi32>
    %51 = arith.muli %48, %50 : vector<2x16xi32>
    %52 = arith.cmpi sge, %49, %51 : vector<2x16xi32>
    %c1_i32 = arith.constant 1 : i32
    %53 = vector.broadcast %c1_i32 : i32 to vector<2x16xi32>
    %54 = arith.addi %48, %53 : vector<2x16xi32>
    %c8_i32_27 = arith.constant 8 : i32
    %55 = vector.broadcast %c8_i32_27 : i32 to vector<2x16xi32>
    %56 = arith.muli %54, %55 : vector<2x16xi32>
    %57 = arith.cmpi slt, %49, %56 : vector<2x16xi32>
    %58 = arith.andi %52, %57 : vector<2x16xi1>
    %59 = arith.extui %58 : vector<2x16xi1> to vector<2x16xi32>
    %60 = arith.sitofp %59 : vector<2x16xi32> to vector<2x16xf32>
    %61 = arith.truncf %5 : vector<2x32xf32> to vector<2x32xbf16>
    %cst_28 = arith.constant dense<0.000000e+00> : vector<2x64xf32>
    %62 = tpu.matmul %61, %40, %cst_28 {dimension_numbers = #tpu.dot_dimension_numbers<[1], [0], [0], [1], [0, 0, 1, 1], [], []>} : vector<2x32xbf16>, vector<32x64xbf16>, vector<2x64xf32> -> vector<2x64xf32>
    %63 = arith.addf %62, %44 : vector<2x64xf32>
    %64 = math.tanh %63 : vector<2x64xf32>
    %65 = arith.truncf %64 : vector<2x64xf32> to vector<2x64xbf16>
    %66 = vector.extract_strided_slice %65 {offsets = [0, 0], sizes = [2, 32], strides = [1, 1]} : vector<2x64xbf16> to vector<2x32xbf16>
    %cst_29 = arith.constant dense<0.000000e+00> : vector<2x16xf32>
    %67 = tpu.matmul %66, %21, %cst_29 {dimension_numbers = #tpu.dot_dimension_numbers<[1], [1], [0], [0], [0, 0, 1, 0], [], []>} : vector<2x32xbf16>, vector<16x32xbf16>, vector<2x16xf32> -> vector<2x16xf32>
    %cst_30 = arith.constant 3.200000e+01 : f32
    %68 = vector.broadcast %cst_30 : f32 to vector<2x16xf32>
    %69 = arith.subf %67, %68 : vector<2x16xf32>
    %70 = math.exp %69 : vector<2x16xf32>
    %71 = arith.mulf %70, %60 : vector<2x16xf32>
    %cst_31 = arith.constant dense<0.000000e+00> : vector<2xf32>
    %72 = vector.multi_reduction <add>, %71, %cst_31 [1] : vector<2x16xf32> to vector<2xf32>
    %73 = vector.shape_cast %72 : vector<2xf32> to vector<2x1xf32>
    %74 = tpu.reciprocal %73 {approx = true} : vector<2x1xf32> -> vector<2x1xf32>
    %75 = vector.broadcast %74 : vector<2x1xf32> to vector<2x16xf32>
    %76 = arith.mulf %71, %75 : vector<2x16xf32>
    %77 = arith.truncf %76 : vector<2x16xf32> to vector<2x16xbf16>
    %cst_32 = arith.constant dense<0.000000e+00> : vector<2x96xf32>
    %78 = tpu.matmul %77, %28, %cst_32 {dimension_numbers = #tpu.dot_dimension_numbers<[1], [0], [0], [1], [0, 0, 1, 1], [], []>} : vector<2x16xbf16>, vector<16x96xbf16>, vector<2x96xf32> -> vector<2x96xf32>
    %79 = vector.extract_strided_slice %65 {offsets = [0, 32], sizes = [2, 32], strides = [1, 1]} : vector<2x64xbf16> to vector<2x32xbf16>
    %cst_33 = arith.constant dense<0.000000e+00> : vector<2x16xf32>
    %80 = tpu.matmul %79, %23, %cst_33 {dimension_numbers = #tpu.dot_dimension_numbers<[1], [1], [0], [0], [0, 0, 1, 0], [], []>} : vector<2x32xbf16>, vector<16x32xbf16>, vector<2x16xf32> -> vector<2x16xf32>
    %cst_34 = arith.constant 3.200000e+01 : f32
    %81 = vector.broadcast %cst_34 : f32 to vector<2x16xf32>
    %82 = arith.subf %80, %81 : vector<2x16xf32>
    %83 = math.exp %82 : vector<2x16xf32>
    %84 = arith.mulf %83, %60 : vector<2x16xf32>
    %cst_35 = arith.constant dense<0.000000e+00> : vector<2xf32>
    %85 = vector.multi_reduction <add>, %84, %cst_35 [1] : vector<2x16xf32> to vector<2xf32>
    %86 = vector.shape_cast %85 : vector<2xf32> to vector<2x1xf32>
    %87 = tpu.reciprocal %86 {approx = true} : vector<2x1xf32> -> vector<2x1xf32>
    %88 = vector.broadcast %87 : vector<2x1xf32> to vector<2x16xf32>
    %89 = arith.mulf %84, %88 : vector<2x16xf32>
    %90 = arith.truncf %89 : vector<2x16xf32> to vector<2x16xbf16>
    %cst_36 = arith.constant dense<0.000000e+00> : vector<2x96xf32>
    %91 = tpu.matmul %90, %33, %cst_36 {dimension_numbers = #tpu.dot_dimension_numbers<[1], [0], [0], [1], [0, 0, 1, 1], [], []>} : vector<2x16xbf16>, vector<16x96xbf16>, vector<2x96xf32> -> vector<2x96xf32>
    %92 = arith.addf %78, %91 : vector<2x96xf32>
    %93 = vector.extract_strided_slice %39 {offsets = [0, 0], sizes = [2, 96], strides = [1, 1]} : vector<12x96xf32> to vector<2x96xf32>
    %94 = arith.addf %93, %92 : vector<2x96xf32>
    %cst_37 = arith.constant dense<0.000000e+00> : vector<2x96xf32>
    %95 = tpu.matmul %61, %41, %cst_37 {dimension_numbers = #tpu.dot_dimension_numbers<[1], [0], [0], [1], [0, 0, 1, 1], [], []>} : vector<2x32xbf16>, vector<32x96xbf16>, vector<2x96xf32> -> vector<2x96xf32>
    %96 = arith.addf %95, %47 : vector<2x96xf32>
    %97 = vector.extract_strided_slice %94 {offsets = [0, 0], sizes = [2, 32], strides = [1, 1]} : vector<2x96xf32> to vector<2x32xf32>
    %98 = vector.extract_strided_slice %96 {offsets = [0, 0], sizes = [2, 32], strides = [1, 1]} : vector<2x96xf32> to vector<2x32xf32>
    %99 = arith.addf %97, %98 : vector<2x32xf32>
    %100 = arith.negf %99 : vector<2x32xf32>
    %101 = math.exp %100 : vector<2x32xf32>
    %cst_38 = arith.constant 1.000000e+00 : f32
    %102 = vector.broadcast %cst_38 : f32 to vector<2x32xf32>
    %103 = arith.addf %102, %101 : vector<2x32xf32>
    %104 = arith.divf %102, %103 : vector<2x32xf32>
    %105 = vector.extract_strided_slice %94 {offsets = [0, 32], sizes = [2, 32], strides = [1, 1]} : vector<2x96xf32> to vector<2x32xf32>
    %106 = vector.extract_strided_slice %96 {offsets = [0, 32], sizes = [2, 32], strides = [1, 1]} : vector<2x96xf32> to vector<2x32xf32>
    %107 = arith.addf %105, %106 : vector<2x32xf32>
    %108 = arith.negf %107 : vector<2x32xf32>
    %109 = math.exp %108 : vector<2x32xf32>
    %cst_39 = arith.constant 1.000000e+00 : f32
    %110 = vector.broadcast %cst_39 : f32 to vector<2x32xf32>
    %111 = arith.addf %110, %109 : vector<2x32xf32>
    %112 = arith.divf %110, %111 : vector<2x32xf32>
    %113 = vector.extract_strided_slice %94 {offsets = [0, 64], sizes = [2, 32], strides = [1, 1]} : vector<2x96xf32> to vector<2x32xf32>
    %114 = vector.extract_strided_slice %96 {offsets = [0, 64], sizes = [2, 32], strides = [1, 1]} : vector<2x96xf32> to vector<2x32xf32>
    %115 = arith.mulf %104, %114 : vector<2x32xf32>
    %116 = arith.addf %113, %115 : vector<2x32xf32>
    %117 = math.tanh %116 : vector<2x32xf32>
    %cst_40 = arith.constant 1.000000e+00 : f32
    %118 = vector.broadcast %cst_40 : f32 to vector<2x32xf32>
    %119 = arith.subf %118, %112 : vector<2x32xf32>
    %120 = arith.mulf %119, %117 : vector<2x32xf32>
    %121 = arith.mulf %112, %5 : vector<2x32xf32>
    %122 = arith.addf %120, %121 : vector<2x32xf32>
    %c0_41 = arith.constant 0 : index
    %c0_42 = arith.constant 0 : index
    %123 = vector.load %arg8[%c0_41, %c0_42] : memref<12x32xf32, #tpu.memory_space<vmem>>, vector<2x32xf32>
    tpu.vector_store %arg8[%c0_41, %c0_42], %122 {strides = array<i32>} : memref<12x32xf32, #tpu.memory_space<vmem>>, vector<2x32xf32>,
    %124 = arith.truncf %122 : vector<2x32xf32> to vector<2x32xbf16>
    %cst_43 = arith.constant dense<0.000000e+00> : vector<2x64xf32>
    %125 = tpu.matmul %124, %40, %cst_43 {dimension_numbers = #tpu.dot_dimension_numbers<[1], [0], [0], [1], [0, 0, 1, 1], [], []>} : vector<2x32xbf16>, vector<32x64xbf16>, vector<2x64xf32> -> vector<2x64xf32>
    %126 = arith.addf %125, %44 : vector<2x64xf32>
    %127 = math.tanh %126 : vector<2x64xf32>
    %128 = arith.truncf %127 : vector<2x64xf32> to vector<2x64xbf16>
    %129 = vector.extract_strided_slice %128 {offsets = [0, 0], sizes = [2, 32], strides = [1, 1]} : vector<2x64xbf16> to vector<2x32xbf16>
    %cst_44 = arith.constant dense<0.000000e+00> : vector<2x16xf32>
    %130 = tpu.matmul %129, %21, %cst_44 {dimension_numbers = #tpu.dot_dimension_numbers<[1], [1], [0], [0], [0, 0, 1, 0], [], []>} : vector<2x32xbf16>, vector<16x32xbf16>, vector<2x16xf32> -> vector<2x16xf32>
    %cst_45 = arith.constant 3.200000e+01 : f32
    %131 = vector.broadcast %cst_45 : f32 to vector<2x16xf32>
    %132 = arith.subf %130, %131 : vector<2x16xf32>
    %133 = math.exp %132 : vector<2x16xf32>
    %134 = arith.mulf %133, %60 : vector<2x16xf32>
    %cst_46 = arith.constant dense<0.000000e+00> : vector<2xf32>
    %135 = vector.multi_reduction <add>, %134, %cst_46 [1] : vector<2x16xf32> to vector<2xf32>
    %136 = vector.shape_cast %135 : vector<2xf32> to vector<2x1xf32>
    %137 = tpu.reciprocal %136 {approx = true} : vector<2x1xf32> -> vector<2x1xf32>
    %138 = vector.broadcast %137 : vector<2x1xf32> to vector<2x16xf32>
    %139 = arith.mulf %134, %138 : vector<2x16xf32>
    %140 = arith.truncf %139 : vector<2x16xf32> to vector<2x16xbf16>
    %cst_47 = arith.constant dense<0.000000e+00> : vector<2x96xf32>
    %141 = tpu.matmul %140, %28, %cst_47 {dimension_numbers = #tpu.dot_dimension_numbers<[1], [0], [0], [1], [0, 0, 1, 1], [], []>} : vector<2x16xbf16>, vector<16x96xbf16>, vector<2x96xf32> -> vector<2x96xf32>
    %142 = vector.extract_strided_slice %128 {offsets = [0, 32], sizes = [2, 32], strides = [1, 1]} : vector<2x64xbf16> to vector<2x32xbf16>
    %cst_48 = arith.constant dense<0.000000e+00> : vector<2x16xf32>
    %143 = tpu.matmul %142, %23, %cst_48 {dimension_numbers = #tpu.dot_dimension_numbers<[1], [1], [0], [0], [0, 0, 1, 0], [], []>} : vector<2x32xbf16>, vector<16x32xbf16>, vector<2x16xf32> -> vector<2x16xf32>
    %cst_49 = arith.constant 3.200000e+01 : f32
    %144 = vector.broadcast %cst_49 : f32 to vector<2x16xf32>
    %145 = arith.subf %143, %144 : vector<2x16xf32>
    %146 = math.exp %145 : vector<2x16xf32>
    %147 = arith.mulf %146, %60 : vector<2x16xf32>
    %cst_50 = arith.constant dense<0.000000e+00> : vector<2xf32>
    %148 = vector.multi_reduction <add>, %147, %cst_50 [1] : vector<2x16xf32> to vector<2xf32>
    %149 = vector.shape_cast %148 : vector<2xf32> to vector<2x1xf32>
    %150 = tpu.reciprocal %149 {approx = true} : vector<2x1xf32> -> vector<2x1xf32>
    %151 = vector.broadcast %150 : vector<2x1xf32> to vector<2x16xf32>
    %152 = arith.mulf %147, %151 : vector<2x16xf32>
    %153 = arith.truncf %152 : vector<2x16xf32> to vector<2x16xbf16>
    %cst_51 = arith.constant dense<0.000000e+00> : vector<2x96xf32>
    %154 = tpu.matmul %153, %33, %cst_51 {dimension_numbers = #tpu.dot_dimension_numbers<[1], [0], [0], [1], [0, 0, 1, 1], [], []>} : vector<2x16xbf16>, vector<16x96xbf16>, vector<2x96xf32> -> vector<2x96xf32>
    %155 = arith.addf %141, %154 : vector<2x96xf32>
    %156 = vector.extract_strided_slice %39 {offsets = [2, 0], sizes = [2, 96], strides = [1, 1]} : vector<12x96xf32> to vector<2x96xf32>
    %157 = arith.addf %156, %155 : vector<2x96xf32>
    %cst_52 = arith.constant dense<0.000000e+00> : vector<2x96xf32>
    %158 = tpu.matmul %124, %41, %cst_52 {dimension_numbers = #tpu.dot_dimension_numbers<[1], [0], [0], [1], [0, 0, 1, 1], [], []>} : vector<2x32xbf16>, vector<32x96xbf16>, vector<2x96xf32> -> vector<2x96xf32>
    %159 = arith.addf %158, %47 : vector<2x96xf32>
    %160 = vector.extract_strided_slice %157 {offsets = [0, 0], sizes = [2, 32], strides = [1, 1]} : vector<2x96xf32> to vector<2x32xf32>
    %161 = vector.extract_strided_slice %159 {offsets = [0, 0], sizes = [2, 32], strides = [1, 1]} : vector<2x96xf32> to vector<2x32xf32>
    %162 = arith.addf %160, %161 : vector<2x32xf32>
    %163 = arith.negf %162 : vector<2x32xf32>
    %164 = math.exp %163 : vector<2x32xf32>
    %cst_53 = arith.constant 1.000000e+00 : f32
    %165 = vector.broadcast %cst_53 : f32 to vector<2x32xf32>
    %166 = arith.addf %165, %164 : vector<2x32xf32>
    %167 = arith.divf %165, %166 : vector<2x32xf32>
    %168 = vector.extract_strided_slice %157 {offsets = [0, 32], sizes = [2, 32], strides = [1, 1]} : vector<2x96xf32> to vector<2x32xf32>
    %169 = vector.extract_strided_slice %159 {offsets = [0, 32], sizes = [2, 32], strides = [1, 1]} : vector<2x96xf32> to vector<2x32xf32>
    %170 = arith.addf %168, %169 : vector<2x32xf32>
    %171 = arith.negf %170 : vector<2x32xf32>
    %172 = math.exp %171 : vector<2x32xf32>
    %cst_54 = arith.constant 1.000000e+00 : f32
    %173 = vector.broadcast %cst_54 : f32 to vector<2x32xf32>
    %174 = arith.addf %173, %172 : vector<2x32xf32>
    %175 = arith.divf %173, %174 : vector<2x32xf32>
    %176 = vector.extract_strided_slice %157 {offsets = [0, 64], sizes = [2, 32], strides = [1, 1]} : vector<2x96xf32> to vector<2x32xf32>
    %177 = vector.extract_strided_slice %159 {offsets = [0, 64], sizes = [2, 32], strides = [1, 1]} : vector<2x96xf32> to vector<2x32xf32>
    %178 = arith.mulf %167, %177 : vector<2x32xf32>
    %179 = arith.addf %176, %178 : vector<2x32xf32>
    %180 = math.tanh %179 : vector<2x32xf32>
    %cst_55 = arith.constant 1.000000e+00 : f32
    %181 = vector.broadcast %cst_55 : f32 to vector<2x32xf32>
    %182 = arith.subf %181, %175 : vector<2x32xf32>
    %183 = arith.mulf %182, %180 : vector<2x32xf32>
    %184 = arith.mulf %175, %122 : vector<2x32xf32>
    %185 = arith.addf %183, %184 : vector<2x32xf32>
    %c2_56 = arith.constant 2 : index
    %c0_57 = arith.constant 0 : index
    %186 = vector.load %arg8[%c2_56, %c0_57] : memref<12x32xf32, #tpu.memory_space<vmem>>, vector<2x32xf32>
    tpu.vector_store %arg8[%c2_56, %c0_57], %185 {strides = array<i32>} : memref<12x32xf32, #tpu.memory_space<vmem>>, vector<2x32xf32>,
    %187 = arith.truncf %185 : vector<2x32xf32> to vector<2x32xbf16>
    %cst_58 = arith.constant dense<0.000000e+00> : vector<2x64xf32>
    %188 = tpu.matmul %187, %40, %cst_58 {dimension_numbers = #tpu.dot_dimension_numbers<[1], [0], [0], [1], [0, 0, 1, 1], [], []>} : vector<2x32xbf16>, vector<32x64xbf16>, vector<2x64xf32> -> vector<2x64xf32>
    %189 = arith.addf %188, %44 : vector<2x64xf32>
    %190 = math.tanh %189 : vector<2x64xf32>
    %191 = arith.truncf %190 : vector<2x64xf32> to vector<2x64xbf16>
    %192 = vector.extract_strided_slice %191 {offsets = [0, 0], sizes = [2, 32], strides = [1, 1]} : vector<2x64xbf16> to vector<2x32xbf16>
    %cst_59 = arith.constant dense<0.000000e+00> : vector<2x16xf32>
    %193 = tpu.matmul %192, %21, %cst_59 {dimension_numbers = #tpu.dot_dimension_numbers<[1], [1], [0], [0], [0, 0, 1, 0], [], []>} : vector<2x32xbf16>, vector<16x32xbf16>, vector<2x16xf32> -> vector<2x16xf32>
    %cst_60 = arith.constant 3.200000e+01 : f32
    %194 = vector.broadcast %cst_60 : f32 to vector<2x16xf32>
    %195 = arith.subf %193, %194 : vector<2x16xf32>
    %196 = math.exp %195 : vector<2x16xf32>
    %197 = arith.mulf %196, %60 : vector<2x16xf32>
    %cst_61 = arith.constant dense<0.000000e+00> : vector<2xf32>
    %198 = vector.multi_reduction <add>, %197, %cst_61 [1] : vector<2x16xf32> to vector<2xf32>
    %199 = vector.shape_cast %198 : vector<2xf32> to vector<2x1xf32>
    %200 = tpu.reciprocal %199 {approx = true} : vector<2x1xf32> -> vector<2x1xf32>
    %201 = vector.broadcast %200 : vector<2x1xf32> to vector<2x16xf32>
    %202 = arith.mulf %197, %201 : vector<2x16xf32>
    %203 = arith.truncf %202 : vector<2x16xf32> to vector<2x16xbf16>
    %cst_62 = arith.constant dense<0.000000e+00> : vector<2x96xf32>
    %204 = tpu.matmul %203, %28, %cst_62 {dimension_numbers = #tpu.dot_dimension_numbers<[1], [0], [0], [1], [0, 0, 1, 1], [], []>} : vector<2x16xbf16>, vector<16x96xbf16>, vector<2x96xf32> -> vector<2x96xf32>
    %205 = vector.extract_strided_slice %191 {offsets = [0, 32], sizes = [2, 32], strides = [1, 1]} : vector<2x64xbf16> to vector<2x32xbf16>
    %cst_63 = arith.constant dense<0.000000e+00> : vector<2x16xf32>
    %206 = tpu.matmul %205, %23, %cst_63 {dimension_numbers = #tpu.dot_dimension_numbers<[1], [1], [0], [0], [0, 0, 1, 0], [], []>} : vector<2x32xbf16>, vector<16x32xbf16>, vector<2x16xf32> -> vector<2x16xf32>
    %cst_64 = arith.constant 3.200000e+01 : f32
    %207 = vector.broadcast %cst_64 : f32 to vector<2x16xf32>
    %208 = arith.subf %206, %207 : vector<2x16xf32>
    %209 = math.exp %208 : vector<2x16xf32>
    %210 = arith.mulf %209, %60 : vector<2x16xf32>
    %cst_65 = arith.constant dense<0.000000e+00> : vector<2xf32>
    %211 = vector.multi_reduction <add>, %210, %cst_65 [1] : vector<2x16xf32> to vector<2xf32>
    %212 = vector.shape_cast %211 : vector<2xf32> to vector<2x1xf32>
    %213 = tpu.reciprocal %212 {approx = true} : vector<2x1xf32> -> vector<2x1xf32>
    %214 = vector.broadcast %213 : vector<2x1xf32> to vector<2x16xf32>
    %215 = arith.mulf %210, %214 : vector<2x16xf32>
    %216 = arith.truncf %215 : vector<2x16xf32> to vector<2x16xbf16>
    %cst_66 = arith.constant dense<0.000000e+00> : vector<2x96xf32>
    %217 = tpu.matmul %216, %33, %cst_66 {dimension_numbers = #tpu.dot_dimension_numbers<[1], [0], [0], [1], [0, 0, 1, 1], [], []>} : vector<2x16xbf16>, vector<16x96xbf16>, vector<2x96xf32> -> vector<2x96xf32>
    %218 = arith.addf %204, %217 : vector<2x96xf32>
    %219 = vector.extract_strided_slice %39 {offsets = [4, 0], sizes = [2, 96], strides = [1, 1]} : vector<12x96xf32> to vector<2x96xf32>
    %220 = arith.addf %219, %218 : vector<2x96xf32>
    %cst_67 = arith.constant dense<0.000000e+00> : vector<2x96xf32>
    %221 = tpu.matmul %187, %41, %cst_67 {dimension_numbers = #tpu.dot_dimension_numbers<[1], [0], [0], [1], [0, 0, 1, 1], [], []>} : vector<2x32xbf16>, vector<32x96xbf16>, vector<2x96xf32> -> vector<2x96xf32>
    %222 = arith.addf %221, %47 : vector<2x96xf32>
    %223 = vector.extract_strided_slice %220 {offsets = [0, 0], sizes = [2, 32], strides = [1, 1]} : vector<2x96xf32> to vector<2x32xf32>
    %224 = vector.extract_strided_slice %222 {offsets = [0, 0], sizes = [2, 32], strides = [1, 1]} : vector<2x96xf32> to vector<2x32xf32>
    %225 = arith.addf %223, %224 : vector<2x32xf32>
    %226 = arith.negf %225 : vector<2x32xf32>
    %227 = math.exp %226 : vector<2x32xf32>
    %cst_68 = arith.constant 1.000000e+00 : f32
    %228 = vector.broadcast %cst_68 : f32 to vector<2x32xf32>
    %229 = arith.addf %228, %227 : vector<2x32xf32>
    %230 = arith.divf %228, %229 : vector<2x32xf32>
    %231 = vector.extract_strided_slice %220 {offsets = [0, 32], sizes = [2, 32], strides = [1, 1]} : vector<2x96xf32> to vector<2x32xf32>
    %232 = vector.extract_strided_slice %222 {offsets = [0, 32], sizes = [2, 32], strides = [1, 1]} : vector<2x96xf32> to vector<2x32xf32>
    %233 = arith.addf %231, %232 : vector<2x32xf32>
    %234 = arith.negf %233 : vector<2x32xf32>
    %235 = math.exp %234 : vector<2x32xf32>
    %cst_69 = arith.constant 1.000000e+00 : f32
    %236 = vector.broadcast %cst_69 : f32 to vector<2x32xf32>
    %237 = arith.addf %236, %235 : vector<2x32xf32>
    %238 = arith.divf %236, %237 : vector<2x32xf32>
    %239 = vector.extract_strided_slice %220 {offsets = [0, 64], sizes = [2, 32], strides = [1, 1]} : vector<2x96xf32> to vector<2x32xf32>
    %240 = vector.extract_strided_slice %222 {offsets = [0, 64], sizes = [2, 32], strides = [1, 1]} : vector<2x96xf32> to vector<2x32xf32>
    %241 = arith.mulf %230, %240 : vector<2x32xf32>
    %242 = arith.addf %239, %241 : vector<2x32xf32>
    %243 = math.tanh %242 : vector<2x32xf32>
    %cst_70 = arith.constant 1.000000e+00 : f32
    %244 = vector.broadcast %cst_70 : f32 to vector<2x32xf32>
    %245 = arith.subf %244, %238 : vector<2x32xf32>
    %246 = arith.mulf %245, %243 : vector<2x32xf32>
    %247 = arith.mulf %238, %185 : vector<2x32xf32>
    %248 = arith.addf %246, %247 : vector<2x32xf32>
    %c4_71 = arith.constant 4 : index
    %c0_72 = arith.constant 0 : index
    %249 = vector.load %arg8[%c4_71, %c0_72] : memref<12x32xf32, #tpu.memory_space<vmem>>, vector<2x32xf32>
    tpu.vector_store %arg8[%c4_71, %c0_72], %248 {strides = array<i32>} : memref<12x32xf32, #tpu.memory_space<vmem>>, vector<2x32xf32>,
    %250 = arith.truncf %248 : vector<2x32xf32> to vector<2x32xbf16>
    %cst_73 = arith.constant dense<0.000000e+00> : vector<2x64xf32>
    %251 = tpu.matmul %250, %40, %cst_73 {dimension_numbers = #tpu.dot_dimension_numbers<[1], [0], [0], [1], [0, 0, 1, 1], [], []>} : vector<2x32xbf16>, vector<32x64xbf16>, vector<2x64xf32> -> vector<2x64xf32>
    %252 = arith.addf %251, %44 : vector<2x64xf32>
    %253 = math.tanh %252 : vector<2x64xf32>
    %254 = arith.truncf %253 : vector<2x64xf32> to vector<2x64xbf16>
    %255 = vector.extract_strided_slice %254 {offsets = [0, 0], sizes = [2, 32], strides = [1, 1]} : vector<2x64xbf16> to vector<2x32xbf16>
    %cst_74 = arith.constant dense<0.000000e+00> : vector<2x16xf32>
    %256 = tpu.matmul %255, %21, %cst_74 {dimension_numbers = #tpu.dot_dimension_numbers<[1], [1], [0], [0], [0, 0, 1, 0], [], []>} : vector<2x32xbf16>, vector<16x32xbf16>, vector<2x16xf32> -> vector<2x16xf32>
    %cst_75 = arith.constant 3.200000e+01 : f32
    %257 = vector.broadcast %cst_75 : f32 to vector<2x16xf32>
    %258 = arith.subf %256, %257 : vector<2x16xf32>
    %259 = math.exp %258 : vector<2x16xf32>
    %260 = arith.mulf %259, %60 : vector<2x16xf32>
    %cst_76 = arith.constant dense<0.000000e+00> : vector<2xf32>
    %261 = vector.multi_reduction <add>, %260, %cst_76 [1] : vector<2x16xf32> to vector<2xf32>
    %262 = vector.shape_cast %261 : vector<2xf32> to vector<2x1xf32>
    %263 = tpu.reciprocal %262 {approx = true} : vector<2x1xf32> -> vector<2x1xf32>
    %264 = vector.broadcast %263 : vector<2x1xf32> to vector<2x16xf32>
    %265 = arith.mulf %260, %264 : vector<2x16xf32>
    %266 = arith.truncf %265 : vector<2x16xf32> to vector<2x16xbf16>
    %cst_77 = arith.constant dense<0.000000e+00> : vector<2x96xf32>
    %267 = tpu.matmul %266, %28, %cst_77 {dimension_numbers = #tpu.dot_dimension_numbers<[1], [0], [0], [1], [0, 0, 1, 1], [], []>} : vector<2x16xbf16>, vector<16x96xbf16>, vector<2x96xf32> -> vector<2x96xf32>
    %268 = vector.extract_strided_slice %254 {offsets = [0, 32], sizes = [2, 32], strides = [1, 1]} : vector<2x64xbf16> to vector<2x32xbf16>
    %cst_78 = arith.constant dense<0.000000e+00> : vector<2x16xf32>
    %269 = tpu.matmul %268, %23, %cst_78 {dimension_numbers = #tpu.dot_dimension_numbers<[1], [1], [0], [0], [0, 0, 1, 0], [], []>} : vector<2x32xbf16>, vector<16x32xbf16>, vector<2x16xf32> -> vector<2x16xf32>
    %cst_79 = arith.constant 3.200000e+01 : f32
    %270 = vector.broadcast %cst_79 : f32 to vector<2x16xf32>
    %271 = arith.subf %269, %270 : vector<2x16xf32>
    %272 = math.exp %271 : vector<2x16xf32>
    %273 = arith.mulf %272, %60 : vector<2x16xf32>
    %cst_80 = arith.constant dense<0.000000e+00> : vector<2xf32>
    %274 = vector.multi_reduction <add>, %273, %cst_80 [1] : vector<2x16xf32> to vector<2xf32>
    %275 = vector.shape_cast %274 : vector<2xf32> to vector<2x1xf32>
    %276 = tpu.reciprocal %275 {approx = true} : vector<2x1xf32> -> vector<2x1xf32>
    %277 = vector.broadcast %276 : vector<2x1xf32> to vector<2x16xf32>
    %278 = arith.mulf %273, %277 : vector<2x16xf32>
    %279 = arith.truncf %278 : vector<2x16xf32> to vector<2x16xbf16>
    %cst_81 = arith.constant dense<0.000000e+00> : vector<2x96xf32>
    %280 = tpu.matmul %279, %33, %cst_81 {dimension_numbers = #tpu.dot_dimension_numbers<[1], [0], [0], [1], [0, 0, 1, 1], [], []>} : vector<2x16xbf16>, vector<16x96xbf16>, vector<2x96xf32> -> vector<2x96xf32>
    %281 = arith.addf %267, %280 : vector<2x96xf32>
    %282 = vector.extract_strided_slice %39 {offsets = [6, 0], sizes = [2, 96], strides = [1, 1]} : vector<12x96xf32> to vector<2x96xf32>
    %283 = arith.addf %282, %281 : vector<2x96xf32>
    %cst_82 = arith.constant dense<0.000000e+00> : vector<2x96xf32>
    %284 = tpu.matmul %250, %41, %cst_82 {dimension_numbers = #tpu.dot_dimension_numbers<[1], [0], [0], [1], [0, 0, 1, 1], [], []>} : vector<2x32xbf16>, vector<32x96xbf16>, vector<2x96xf32> -> vector<2x96xf32>
    %285 = arith.addf %284, %47 : vector<2x96xf32>
    %286 = vector.extract_strided_slice %283 {offsets = [0, 0], sizes = [2, 32], strides = [1, 1]} : vector<2x96xf32> to vector<2x32xf32>
    %287 = vector.extract_strided_slice %285 {offsets = [0, 0], sizes = [2, 32], strides = [1, 1]} : vector<2x96xf32> to vector<2x32xf32>
    %288 = arith.addf %286, %287 : vector<2x32xf32>
    %289 = arith.negf %288 : vector<2x32xf32>
    %290 = math.exp %289 : vector<2x32xf32>
    %cst_83 = arith.constant 1.000000e+00 : f32
    %291 = vector.broadcast %cst_83 : f32 to vector<2x32xf32>
    %292 = arith.addf %291, %290 : vector<2x32xf32>
    %293 = arith.divf %291, %292 : vector<2x32xf32>
    %294 = vector.extract_strided_slice %283 {offsets = [0, 32], sizes = [2, 32], strides = [1, 1]} : vector<2x96xf32> to vector<2x32xf32>
    %295 = vector.extract_strided_slice %285 {offsets = [0, 32], sizes = [2, 32], strides = [1, 1]} : vector<2x96xf32> to vector<2x32xf32>
    %296 = arith.addf %294, %295 : vector<2x32xf32>
    %297 = arith.negf %296 : vector<2x32xf32>
    %298 = math.exp %297 : vector<2x32xf32>
    %cst_84 = arith.constant 1.000000e+00 : f32
    %299 = vector.broadcast %cst_84 : f32 to vector<2x32xf32>
    %300 = arith.addf %299, %298 : vector<2x32xf32>
    %301 = arith.divf %299, %300 : vector<2x32xf32>
    %302 = vector.extract_strided_slice %283 {offsets = [0, 64], sizes = [2, 32], strides = [1, 1]} : vector<2x96xf32> to vector<2x32xf32>
    %303 = vector.extract_strided_slice %285 {offsets = [0, 64], sizes = [2, 32], strides = [1, 1]} : vector<2x96xf32> to vector<2x32xf32>
    %304 = arith.mulf %293, %303 : vector<2x32xf32>
    %305 = arith.addf %302, %304 : vector<2x32xf32>
    %306 = math.tanh %305 : vector<2x32xf32>
    %cst_85 = arith.constant 1.000000e+00 : f32
    %307 = vector.broadcast %cst_85 : f32 to vector<2x32xf32>
    %308 = arith.subf %307, %301 : vector<2x32xf32>
    %309 = arith.mulf %308, %306 : vector<2x32xf32>
    %310 = arith.mulf %301, %248 : vector<2x32xf32>
    %311 = arith.addf %309, %310 : vector<2x32xf32>
    %c6 = arith.constant 6 : index
    %c0_86 = arith.constant 0 : index
    %312 = vector.load %arg8[%c6, %c0_86] : memref<12x32xf32, #tpu.memory_space<vmem>>, vector<2x32xf32>
    tpu.vector_store %arg8[%c6, %c0_86], %311 {strides = array<i32>} : memref<12x32xf32, #tpu.memory_space<vmem>>, vector<2x32xf32>,
    %313 = arith.truncf %311 : vector<2x32xf32> to vector<2x32xbf16>
    %cst_87 = arith.constant dense<0.000000e+00> : vector<2x64xf32>
    %314 = tpu.matmul %313, %40, %cst_87 {dimension_numbers = #tpu.dot_dimension_numbers<[1], [0], [0], [1], [0, 0, 1, 1], [], []>} : vector<2x32xbf16>, vector<32x64xbf16>, vector<2x64xf32> -> vector<2x64xf32>
    %315 = arith.addf %314, %44 : vector<2x64xf32>
    %316 = math.tanh %315 : vector<2x64xf32>
    %317 = arith.truncf %316 : vector<2x64xf32> to vector<2x64xbf16>
    %318 = vector.extract_strided_slice %317 {offsets = [0, 0], sizes = [2, 32], strides = [1, 1]} : vector<2x64xbf16> to vector<2x32xbf16>
    %cst_88 = arith.constant dense<0.000000e+00> : vector<2x16xf32>
    %319 = tpu.matmul %318, %21, %cst_88 {dimension_numbers = #tpu.dot_dimension_numbers<[1], [1], [0], [0], [0, 0, 1, 0], [], []>} : vector<2x32xbf16>, vector<16x32xbf16>, vector<2x16xf32> -> vector<2x16xf32>
    %cst_89 = arith.constant 3.200000e+01 : f32
    %320 = vector.broadcast %cst_89 : f32 to vector<2x16xf32>
    %321 = arith.subf %319, %320 : vector<2x16xf32>
    %322 = math.exp %321 : vector<2x16xf32>
    %323 = arith.mulf %322, %60 : vector<2x16xf32>
    %cst_90 = arith.constant dense<0.000000e+00> : vector<2xf32>
    %324 = vector.multi_reduction <add>, %323, %cst_90 [1] : vector<2x16xf32> to vector<2xf32>
    %325 = vector.shape_cast %324 : vector<2xf32> to vector<2x1xf32>
    %326 = tpu.reciprocal %325 {approx = true} : vector<2x1xf32> -> vector<2x1xf32>
    %327 = vector.broadcast %326 : vector<2x1xf32> to vector<2x16xf32>
    %328 = arith.mulf %323, %327 : vector<2x16xf32>
    %329 = arith.truncf %328 : vector<2x16xf32> to vector<2x16xbf16>
    %cst_91 = arith.constant dense<0.000000e+00> : vector<2x96xf32>
    %330 = tpu.matmul %329, %28, %cst_91 {dimension_numbers = #tpu.dot_dimension_numbers<[1], [0], [0], [1], [0, 0, 1, 1], [], []>} : vector<2x16xbf16>, vector<16x96xbf16>, vector<2x96xf32> -> vector<2x96xf32>
    %331 = vector.extract_strided_slice %317 {offsets = [0, 32], sizes = [2, 32], strides = [1, 1]} : vector<2x64xbf16> to vector<2x32xbf16>
    %cst_92 = arith.constant dense<0.000000e+00> : vector<2x16xf32>
    %332 = tpu.matmul %331, %23, %cst_92 {dimension_numbers = #tpu.dot_dimension_numbers<[1], [1], [0], [0], [0, 0, 1, 0], [], []>} : vector<2x32xbf16>, vector<16x32xbf16>, vector<2x16xf32> -> vector<2x16xf32>
    %cst_93 = arith.constant 3.200000e+01 : f32
    %333 = vector.broadcast %cst_93 : f32 to vector<2x16xf32>
    %334 = arith.subf %332, %333 : vector<2x16xf32>
    %335 = math.exp %334 : vector<2x16xf32>
    %336 = arith.mulf %335, %60 : vector<2x16xf32>
    %cst_94 = arith.constant dense<0.000000e+00> : vector<2xf32>
    %337 = vector.multi_reduction <add>, %336, %cst_94 [1] : vector<2x16xf32> to vector<2xf32>
    %338 = vector.shape_cast %337 : vector<2xf32> to vector<2x1xf32>
    %339 = tpu.reciprocal %338 {approx = true} : vector<2x1xf32> -> vector<2x1xf32>
    %340 = vector.broadcast %339 : vector<2x1xf32> to vector<2x16xf32>
    %341 = arith.mulf %336, %340 : vector<2x16xf32>
    %342 = arith.truncf %341 : vector<2x16xf32> to vector<2x16xbf16>
    %cst_95 = arith.constant dense<0.000000e+00> : vector<2x96xf32>
    %343 = tpu.matmul %342, %33, %cst_95 {dimension_numbers = #tpu.dot_dimension_numbers<[1], [0], [0], [1], [0, 0, 1, 1], [], []>} : vector<2x16xbf16>, vector<16x96xbf16>, vector<2x96xf32> -> vector<2x96xf32>
    %344 = arith.addf %330, %343 : vector<2x96xf32>
    %345 = vector.extract_strided_slice %39 {offsets = [8, 0], sizes = [2, 96], strides = [1, 1]} : vector<12x96xf32> to vector<2x96xf32>
    %346 = arith.addf %345, %344 : vector<2x96xf32>
    %cst_96 = arith.constant dense<0.000000e+00> : vector<2x96xf32>
    %347 = tpu.matmul %313, %41, %cst_96 {dimension_numbers = #tpu.dot_dimension_numbers<[1], [0], [0], [1], [0, 0, 1, 1], [], []>} : vector<2x32xbf16>, vector<32x96xbf16>, vector<2x96xf32> -> vector<2x96xf32>
    %348 = arith.addf %347, %47 : vector<2x96xf32>
    %349 = vector.extract_strided_slice %346 {offsets = [0, 0], sizes = [2, 32], strides = [1, 1]} : vector<2x96xf32> to vector<2x32xf32>
    %350 = vector.extract_strided_slice %348 {offsets = [0, 0], sizes = [2, 32], strides = [1, 1]} : vector<2x96xf32> to vector<2x32xf32>
    %351 = arith.addf %349, %350 : vector<2x32xf32>
    %352 = arith.negf %351 : vector<2x32xf32>
    %353 = math.exp %352 : vector<2x32xf32>
    %cst_97 = arith.constant 1.000000e+00 : f32
    %354 = vector.broadcast %cst_97 : f32 to vector<2x32xf32>
    %355 = arith.addf %354, %353 : vector<2x32xf32>
    %356 = arith.divf %354, %355 : vector<2x32xf32>
    %357 = vector.extract_strided_slice %346 {offsets = [0, 32], sizes = [2, 32], strides = [1, 1]} : vector<2x96xf32> to vector<2x32xf32>
    %358 = vector.extract_strided_slice %348 {offsets = [0, 32], sizes = [2, 32], strides = [1, 1]} : vector<2x96xf32> to vector<2x32xf32>
    %359 = arith.addf %357, %358 : vector<2x32xf32>
    %360 = arith.negf %359 : vector<2x32xf32>
    %361 = math.exp %360 : vector<2x32xf32>
    %cst_98 = arith.constant 1.000000e+00 : f32
    %362 = vector.broadcast %cst_98 : f32 to vector<2x32xf32>
    %363 = arith.addf %362, %361 : vector<2x32xf32>
    %364 = arith.divf %362, %363 : vector<2x32xf32>
    %365 = vector.extract_strided_slice %346 {offsets = [0, 64], sizes = [2, 32], strides = [1, 1]} : vector<2x96xf32> to vector<2x32xf32>
    %366 = vector.extract_strided_slice %348 {offsets = [0, 64], sizes = [2, 32], strides = [1, 1]} : vector<2x96xf32> to vector<2x32xf32>
    %367 = arith.mulf %356, %366 : vector<2x32xf32>
    %368 = arith.addf %365, %367 : vector<2x32xf32>
    %369 = math.tanh %368 : vector<2x32xf32>
    %cst_99 = arith.constant 1.000000e+00 : f32
    %370 = vector.broadcast %cst_99 : f32 to vector<2x32xf32>
    %371 = arith.subf %370, %364 : vector<2x32xf32>
    %372 = arith.mulf %371, %369 : vector<2x32xf32>
    %373 = arith.mulf %364, %311 : vector<2x32xf32>
    %374 = arith.addf %372, %373 : vector<2x32xf32>
    %c8 = arith.constant 8 : index
    %c0_100 = arith.constant 0 : index
    %375 = vector.load %arg8[%c8, %c0_100] : memref<12x32xf32, #tpu.memory_space<vmem>>, vector<2x32xf32>
    tpu.vector_store %arg8[%c8, %c0_100], %374 {strides = array<i32>} : memref<12x32xf32, #tpu.memory_space<vmem>>, vector<2x32xf32>,
    %376 = arith.truncf %374 : vector<2x32xf32> to vector<2x32xbf16>
    %cst_101 = arith.constant dense<0.000000e+00> : vector<2x64xf32>
    %377 = tpu.matmul %376, %40, %cst_101 {dimension_numbers = #tpu.dot_dimension_numbers<[1], [0], [0], [1], [0, 0, 1, 1], [], []>} : vector<2x32xbf16>, vector<32x64xbf16>, vector<2x64xf32> -> vector<2x64xf32>
    %378 = arith.addf %377, %44 : vector<2x64xf32>
    %379 = math.tanh %378 : vector<2x64xf32>
    %380 = arith.truncf %379 : vector<2x64xf32> to vector<2x64xbf16>
    %381 = vector.extract_strided_slice %380 {offsets = [0, 0], sizes = [2, 32], strides = [1, 1]} : vector<2x64xbf16> to vector<2x32xbf16>
    %cst_102 = arith.constant dense<0.000000e+00> : vector<2x16xf32>
    %382 = tpu.matmul %381, %21, %cst_102 {dimension_numbers = #tpu.dot_dimension_numbers<[1], [1], [0], [0], [0, 0, 1, 0], [], []>} : vector<2x32xbf16>, vector<16x32xbf16>, vector<2x16xf32> -> vector<2x16xf32>
    %cst_103 = arith.constant 3.200000e+01 : f32
    %383 = vector.broadcast %cst_103 : f32 to vector<2x16xf32>
    %384 = arith.subf %382, %383 : vector<2x16xf32>
    %385 = math.exp %384 : vector<2x16xf32>
    %386 = arith.mulf %385, %60 : vector<2x16xf32>
    %cst_104 = arith.constant dense<0.000000e+00> : vector<2xf32>
    %387 = vector.multi_reduction <add>, %386, %cst_104 [1] : vector<2x16xf32> to vector<2xf32>
    %388 = vector.shape_cast %387 : vector<2xf32> to vector<2x1xf32>
    %389 = tpu.reciprocal %388 {approx = true} : vector<2x1xf32> -> vector<2x1xf32>
    %390 = vector.broadcast %389 : vector<2x1xf32> to vector<2x16xf32>
    %391 = arith.mulf %386, %390 : vector<2x16xf32>
    %392 = arith.truncf %391 : vector<2x16xf32> to vector<2x16xbf16>
    %cst_105 = arith.constant dense<0.000000e+00> : vector<2x96xf32>
    %393 = tpu.matmul %392, %28, %cst_105 {dimension_numbers = #tpu.dot_dimension_numbers<[1], [0], [0], [1], [0, 0, 1, 1], [], []>} : vector<2x16xbf16>, vector<16x96xbf16>, vector<2x96xf32> -> vector<2x96xf32>
    %394 = vector.extract_strided_slice %380 {offsets = [0, 32], sizes = [2, 32], strides = [1, 1]} : vector<2x64xbf16> to vector<2x32xbf16>
    %cst_106 = arith.constant dense<0.000000e+00> : vector<2x16xf32>
    %395 = tpu.matmul %394, %23, %cst_106 {dimension_numbers = #tpu.dot_dimension_numbers<[1], [1], [0], [0], [0, 0, 1, 0], [], []>} : vector<2x32xbf16>, vector<16x32xbf16>, vector<2x16xf32> -> vector<2x16xf32>
    %cst_107 = arith.constant 3.200000e+01 : f32
    %396 = vector.broadcast %cst_107 : f32 to vector<2x16xf32>
    %397 = arith.subf %395, %396 : vector<2x16xf32>
    %398 = math.exp %397 : vector<2x16xf32>
    %399 = arith.mulf %398, %60 : vector<2x16xf32>
    %cst_108 = arith.constant dense<0.000000e+00> : vector<2xf32>
    %400 = vector.multi_reduction <add>, %399, %cst_108 [1] : vector<2x16xf32> to vector<2xf32>
    %401 = vector.shape_cast %400 : vector<2xf32> to vector<2x1xf32>
    %402 = tpu.reciprocal %401 {approx = true} : vector<2x1xf32> -> vector<2x1xf32>
    %403 = vector.broadcast %402 : vector<2x1xf32> to vector<2x16xf32>
    %404 = arith.mulf %399, %403 : vector<2x16xf32>
    %405 = arith.truncf %404 : vector<2x16xf32> to vector<2x16xbf16>
    %cst_109 = arith.constant dense<0.000000e+00> : vector<2x96xf32>
    %406 = tpu.matmul %405, %33, %cst_109 {dimension_numbers = #tpu.dot_dimension_numbers<[1], [0], [0], [1], [0, 0, 1, 1], [], []>} : vector<2x16xbf16>, vector<16x96xbf16>, vector<2x96xf32> -> vector<2x96xf32>
    %407 = arith.addf %393, %406 : vector<2x96xf32>
    %408 = vector.extract_strided_slice %39 {offsets = [10, 0], sizes = [2, 96], strides = [1, 1]} : vector<12x96xf32> to vector<2x96xf32>
    %409 = arith.addf %408, %407 : vector<2x96xf32>
    %cst_110 = arith.constant dense<0.000000e+00> : vector<2x96xf32>
    %410 = tpu.matmul %376, %41, %cst_110 {dimension_numbers = #tpu.dot_dimension_numbers<[1], [0], [0], [1], [0, 0, 1, 1], [], []>} : vector<2x32xbf16>, vector<32x96xbf16>, vector<2x96xf32> -> vector<2x96xf32>
    %411 = arith.addf %410, %47 : vector<2x96xf32>
    %412 = vector.extract_strided_slice %409 {offsets = [0, 0], sizes = [2, 32], strides = [1, 1]} : vector<2x96xf32> to vector<2x32xf32>
    %413 = vector.extract_strided_slice %411 {offsets = [0, 0], sizes = [2, 32], strides = [1, 1]} : vector<2x96xf32> to vector<2x32xf32>
    %414 = arith.addf %412, %413 : vector<2x32xf32>
    %415 = arith.negf %414 : vector<2x32xf32>
    %416 = math.exp %415 : vector<2x32xf32>
    %cst_111 = arith.constant 1.000000e+00 : f32
    %417 = vector.broadcast %cst_111 : f32 to vector<2x32xf32>
    %418 = arith.addf %417, %416 : vector<2x32xf32>
    %419 = arith.divf %417, %418 : vector<2x32xf32>
    %420 = vector.extract_strided_slice %409 {offsets = [0, 32], sizes = [2, 32], strides = [1, 1]} : vector<2x96xf32> to vector<2x32xf32>
    %421 = vector.extract_strided_slice %411 {offsets = [0, 32], sizes = [2, 32], strides = [1, 1]} : vector<2x96xf32> to vector<2x32xf32>
    %422 = arith.addf %420, %421 : vector<2x32xf32>
    %423 = arith.negf %422 : vector<2x32xf32>
    %424 = math.exp %423 : vector<2x32xf32>
    %cst_112 = arith.constant 1.000000e+00 : f32
    %425 = vector.broadcast %cst_112 : f32 to vector<2x32xf32>
    %426 = arith.addf %425, %424 : vector<2x32xf32>
    %427 = arith.divf %425, %426 : vector<2x32xf32>
    %428 = vector.extract_strided_slice %409 {offsets = [0, 64], sizes = [2, 32], strides = [1, 1]} : vector<2x96xf32> to vector<2x32xf32>
    %429 = vector.extract_strided_slice %411 {offsets = [0, 64], sizes = [2, 32], strides = [1, 1]} : vector<2x96xf32> to vector<2x32xf32>
    %430 = arith.mulf %419, %429 : vector<2x32xf32>
    %431 = arith.addf %428, %430 : vector<2x32xf32>
    %432 = math.tanh %431 : vector<2x32xf32>
    %cst_113 = arith.constant 1.000000e+00 : f32
    %433 = vector.broadcast %cst_113 : f32 to vector<2x32xf32>
    %434 = arith.subf %433, %427 : vector<2x32xf32>
    %435 = arith.mulf %434, %432 : vector<2x32xf32>
    %436 = arith.mulf %427, %374 : vector<2x32xf32>
    %437 = arith.addf %435, %436 : vector<2x32xf32>
    %c10 = arith.constant 10 : index
    %c0_114 = arith.constant 0 : index
    %438 = vector.load %arg8[%c10, %c0_114] : memref<12x32xf32, #tpu.memory_space<vmem>>, vector<2x32xf32>
    tpu.vector_store %arg8[%c10, %c0_114], %437 {strides = array<i32>} : memref<12x32xf32, #tpu.memory_space<vmem>>, vector<2x32xf32>,
    %c0_115 = arith.constant 0 : index
    %c0_116 = arith.constant 0 : index
    %439 = vector.load %arg8[%c0_115, %c0_116] : memref<12x32xf32, #tpu.memory_space<vmem>>, vector<12x32xf32>
    %440 = arith.truncf %439 : vector<12x32xf32> to vector<12x32xbf16>
    %c0_117 = arith.constant 0 : index
    %c0_118 = arith.constant 0 : index
    %441 = vector.load %arg5[%c0_117, %c0_118] : memref<32x128xbf16, #tpu.memory_space<vmem>>, vector<32x128xbf16>
    %cst_119 = arith.constant dense<0.000000e+00> : vector<12x128xf32>
    %442 = tpu.matmul %440, %441, %cst_119 {dimension_numbers = #tpu.dot_dimension_numbers<[1], [0], [0], [1], [0, 0, 1, 1], [], []>} : vector<12x32xbf16>, vector<32x128xbf16>, vector<12x128xf32> -> vector<12x128xf32>
    %c0_120 = arith.constant 0 : index
    %c0_121 = arith.constant 0 : index
    %443 = vector.load %arg6[%c0_120, %c0_121] : memref<1x128xf32, #tpu.memory_space<vmem>>, vector<1x128xf32>
    %444 = vector.broadcast %443 : vector<1x128xf32> to vector<12x128xf32>
    %445 = arith.addf %442, %444 : vector<12x128xf32>
    %c0_122 = arith.constant 0 : index
    %c0_123 = arith.constant 0 : index
    %446 = vector.load %arg7[%c0_122, %c0_123] : memref<12x128xf32, #tpu.memory_space<vmem>>, vector<12x128xf32>
    tpu.vector_store %arg7[%c0_122, %c0_123], %445 {strides = array<i32>} : memref<12x128xf32, #tpu.memory_space<vmem>>, vector<12x128xf32>,
    return
  }
}

</mosaic_0001>

<llo_original>
// kernel: tpu_custom_call.1
$region0: #{tpu_custom_call.1}
  #allocation0 [shape = 'u32[]', space=smem, size = 0x4, offset = 0x4, fixed_abs, tag = 'smem constant byte address 0x4 - core index']
  #allocation1 [shape = 'u32[144,128]{1,0:T(1,128)}', space=vmem, size = 0x12000, scoped, tag = 'internal scratch']
  #allocation2 [shape = 'f32[12,32]{1,0:T(8,128)}', space=vmem, size = 0x2000, scoped, tag = 'scratch operand']
  %s0 = inlined_call_operand.hbm [shape: bf16[2,128], index: 0, kind: input, shape index: {}]
  %s1 = inlined_call_operand.hbm [shape: bf16[32,32], index: 1, kind: input, shape index: {}]
  %s2 = inlined_call_operand.hbm [shape: bf16[12,16], index: 2, kind: input, shape index: {}]
  %s3 = inlined_call_operand.hbm [shape: bf16[336,128], index: 3, kind: input, shape index: {}]
  %s4 = inlined_call_operand.hbm [shape: f32[6,128], index: 4, kind: input, shape index: {}]
  %s5 = inlined_call_operand.hbm [shape: bf16[32,128], index: 5, kind: input, shape index: {}]
  %s6 = inlined_call_operand.vmem [shape: f32[1,128], index: 6, kind: input, shape index: {}]
  %s7 = inlined_call_operand.hbm [shape: f32[12,128], index: 7, kind: output, shape index: {}]
  %s8 = sld [smem:[#allocation0]]
  $region62: #{tpu_custom_call.1} parent=0
    _
  %s10 = ssub.s32 1, %s8
  %s11 = scalar_select 0, %s10, %s8
  $region1: #{tpu_custom_call.1} parent=0
    #allocation3 [shape = 'u8[512]{0}', space=vmem, size = 0x400, scoped, tag = 'input window, operand 0, single buffered']
    #allocation4 [shape = 's32[1]{0}', space=sflag, size = 0x4, scoped, tag = 'scoped memory for tpu_custom_call.1']
    #allocation5 [shape = 's32[1]{0}', space=sflag, size = 0x4, scoped, tag = 'scoped memory for tpu_custom_call.1']
    #allocation6 [shape = 'u8[8192]{0}', space=vmem, size = 0x2000, scoped, tag = 'input window, operand 1, single buffered']
    #allocation7 [shape = 's32[1]{0}', space=sflag, size = 0x4, scoped, tag = 'scoped memory for tpu_custom_call.1']
    #allocation8 [shape = 'u8[4096]{0}', space=vmem, size = 0x1000, scoped, tag = 'input window, operand 2, single buffered']
    #allocation9 [shape = 'u8[86016]{0}', space=vmem, size = 0x15000, scoped, tag = 'input window, operand 3, single buffered']
    #allocation10 [shape = 's32[1]{0}', space=sflag, size = 0x4, scoped, tag = 'scoped memory for tpu_custom_call.1']
    #allocation11 [shape = 'u8[4096]{0}', space=vmem, size = 0x1000, scoped, tag = 'input window, operand 4, single buffered']
    #allocation12 [shape = 'u8[8192]{0}', space=vmem, size = 0x2000, scoped, tag = 'input window, operand 5, single buffered']
    #allocation13 [shape = 's32[1]{0}', space=sflag, size = 0x4, scoped, tag = 'scoped memory for tpu_custom_call.1']
    #allocation14 [shape = 'u8[8192]{0}', space=vmem, size = 0x2000, scoped, tag = 'output window, operand 0, single buffered']
    %12 = vsyncpa [#allocation4], 0
    %13 = vsyncpa [#allocation7], 0
    %14 = vsyncpa [#allocation10], 0
    %15 = vsyncpa [#allocation13], 0
    %16 = vsyncpa [#allocation5], 0
    // Predicated region
    $region2: #{tpu_custom_call.1} parent=1 // pred_check
      _
    $region3: #{tpu_custom_call.1} parent=1 // pred_check_branch
      %18 = sbr.rel (0) target = $region5
    $region4: #{tpu_custom_call.1} parent=1 // pred_region
      %s20 = ssub.s32 16, 16
      %21 = vsyncadd [#allocation4], %s20
      %s23 = sshll.u32 [#allocation3], 4
      %s24 = int_to_ptr.vmem [resolvable:$true] %s23
      %26 = dma.hbm_to_vmem [thread:$0]  %s0, 16, %s24, [#allocation4]
    $region5: #{tpu_custom_call.1} parent=1 // pred_fallthru
      _
    // Predicated region
    $region6: #{tpu_custom_call.1} parent=1 // pred_check
      _
    $region7: #{tpu_custom_call.1} parent=1 // pred_check_branch
      %28 = sbr.rel (0) target = $region9
    $region8: #{tpu_custom_call.1} parent=1 // pred_region
      %s30 = ssub.s32 256, 256
      %31 = vsyncadd [#allocation7], %s30
      %s32 = sshll.u32 [#allocation6], 4
      %s33 = int_to_ptr.vmem [resolvable:$true] %s32
      %38 = dma.hbm_to_vmem [thread:$0]  %s1, 256, %s33, [#allocation7], 64, 64, 4
    $region9: #{tpu_custom_call.1} parent=1 // pred_fallthru
      _
    // Predicated region
    $region10: #{tpu_custom_call.1} parent=1 // pred_check
      _
    $region11: #{tpu_custom_call.1} parent=1 // pred_check_branch
      %40 = sbr.rel (0) target = $region13
    $region12: #{tpu_custom_call.1} parent=1 // pred_region
      %s42 = ssub.s32 128, 128
      %43 = vsyncadd [#allocation7], %s42
      %s44 = sshll.u32 [#allocation8], 4
      %s45 = int_to_ptr.vmem [resolvable:$true] %s44
      %50 = dma.hbm_to_vmem [thread:$0]  %s2, 128, %s45, [#allocation7], 64, 64, 4
    $region13: #{tpu_custom_call.1} parent=1 // pred_fallthru
      _
    // Predicated region
    $region14: #{tpu_custom_call.1} parent=1 // pred_check
      _
    $region15: #{tpu_custom_call.1} parent=1 // pred_check_branch
      %52 = sbr.rel (0) target = $region17
    $region16: #{tpu_custom_call.1} parent=1 // pred_region
      %s54 = ssub.s32 2688, 2688
      %55 = vsyncadd [#allocation10], %s54
      %s56 = sshll.u32 [#allocation9], 4
      %s57 = int_to_ptr.vmem [resolvable:$true] %s56
      %62 = dma.hbm_to_vmem [thread:$0]  %s3, 2688, %s57, [#allocation10], 64, 64, 4
    $region17: #{tpu_custom_call.1} parent=1 // pred_fallthru
      _
    // Predicated region
    $region18: #{tpu_custom_call.1} parent=1 // pred_check
      _
    $region19: #{tpu_custom_call.1} parent=1 // pred_check_branch
      %64 = sbr.rel (0) target = $region21
    $region20: #{tpu_custom_call.1} parent=1 // pred_region
      %s66 = ssub.s32 128, 128
      %67 = vsyncadd [#allocation10], %s66
      %s69 = sshll.u32 [#allocation11], 4
      %s70 = int_to_ptr.vmem [resolvable:$true] %s69
      %72 = dma.hbm_to_vmem [thread:$0]  %s4, 128, %s70, [#allocation10]
    $region21: #{tpu_custom_call.1} parent=1 // pred_fallthru
      _
    // Predicated region
    $region22: #{tpu_custom_call.1} parent=1 // pred_check
      _
    $region23: #{tpu_custom_call.1} parent=1 // pred_check_branch
      %74 = sbr.rel (0) target = $region25
    $region24: #{tpu_custom_call.1} parent=1 // pred_region
      %s76 = ssub.s32 256, 256
      %77 = vsyncadd [#allocation13], %s76
      %s78 = sshll.u32 [#allocation12], 4
      %s79 = int_to_ptr.vmem [resolvable:$true] %s78
      %84 = dma.hbm_to_vmem [thread:$0]  %s5, 256, %s79, [#allocation13], 64, 64, 4
    $region25: #{tpu_custom_call.1} parent=1 // pred_fallthru
      _
    // Predicated region
    $region26: #{tpu_custom_call.1} parent=1 // pred_check
      _
    $region27: #{tpu_custom_call.1} parent=1 // pred_check_branch
      %86 = sbr.rel (0) target = $region29
    $region28: #{tpu_custom_call.1} parent=1 // pred_region
      _
    $region29: #{tpu_custom_call.1} parent=1 // pred_fallthru
      _
    // Predicated region
    $region30: #{tpu_custom_call.1} parent=1 // pred_check
      _
    $region31: #{tpu_custom_call.1} parent=1 // pred_check_branch
      %88 = sbr.rel (0) target = $region33
    $region32: #{tpu_custom_call.1} parent=1 // pred_region
      %89 = dma.done [#allocation4], 16
    $region33: #{tpu_custom_call.1} parent=1 // pred_fallthru
      _
    // Predicated region
    $region34: #{tpu_custom_call.1} parent=1 // pred_check
      _
    $region35: #{tpu_custom_call.1} parent=1 // pred_check_branch
      %91 = sbr.rel (0) target = $region37
    $region36: #{tpu_custom_call.1} parent=1 // pred_region
      %92 = dma.done [#allocation7], 256
    $region37: #{tpu_custom_call.1} parent=1 // pred_fallthru
      _
    // Predicated region
    $region38: #{tpu_custom_call.1} parent=1 // pred_check
      _
    $region39: #{tpu_custom_call.1} parent=1 // pred_check_branch
      %94 = sbr.rel (0) target = $region41
    $region40: #{tpu_custom_call.1} parent=1 // pred_region
      %95 = dma.done [#allocation7], 128
    $region41: #{tpu_custom_call.1} parent=1 // pred_fallthru
      _
    // Predicated region
    $region42: #{tpu_custom_call.1} parent=1 // pred_check
      _
    $region43: #{tpu_custom_call.1} parent=1 // pred_check_branch
      %97 = sbr.rel (0) target = $region45
    $region44: #{tpu_custom_call.1} parent=1 // pred_region
      %98 = dma.done [#allocation10], 2688
    $region45: #{tpu_custom_call.1} parent=1 // pred_fallthru
      _
    // Predicated region
    $region46: #{tpu_custom_call.1} parent=1 // pred_check
      _
    $region47: #{tpu_custom_call.1} parent=1 // pred_check_branch
      %100 = sbr.rel (0) target = $region49
    $region48: #{tpu_custom_call.1} parent=1 // pred_region
      %101 = dma.done [#allocation10], 128
    $region49: #{tpu_custom_call.1} parent=1 // pred_fallthru
      _
    // Predicated region
    $region50: #{tpu_custom_call.1} parent=1 // pred_check
      _
    $region51: #{tpu_custom_call.1} parent=1 // pred_check_branch
      %103 = sbr.rel (0) target = $region53
    $region52: #{tpu_custom_call.1} parent=1 // pred_region
      %104 = dma.done [#allocation13], 256
    $region53: #{tpu_custom_call.1} parent=1 // pred_fallthru
      _
    %v106 = vld [vmem:[#allocation3] sm:$0x1]
    %v107 = vld [vmem:[#allocation9] sm:$0xf]
    %v108 = vld [vmem:[#allocation9 + $0x4] sm:$0xf]
    %v109 = vld [vmem:[#allocation9 + $0x8] sm:$0xf]
    %v110 = vld [vmem:[#allocation9 + $0xc] sm:$0xf]
    %v111 = vld [vmem:[#allocation9 + $0x10] sm:$0xf]
    %v112 = vld [vmem:[#allocation9 + $0x14] sm:$0xf]
    %v113 = vld [vmem:[#allocation9 + $0x18] sm:$0xf]
    %v114 = vld [vmem:[#allocation9 + $0x1c] sm:$0xf]
    %v115 = vld [vmem:[#allocation9 + $0x20] sm:$0xf]
    %v116 = vld [vmem:[#allocation9 + $0x24] sm:$0xf]
    %v117 = vld [vmem:[#allocation9 + $0x28] sm:$0xf]
    %v118 = vld [vmem:[#allocation9 + $0x2c] sm:$0xf]
    %v119 = vld [vmem:[#allocation9 + $0x30] sm:$0xf]
    %v120 = vld [vmem:[#allocation9 + $0x34] sm:$0xf]
    %v121 = vld [vmem:[#allocation9 + $0x38] sm:$0xf]
    %v122 = vld [vmem:[#allocation9 + $0x3c] sm:$0xf]
    %v123 = vld [vmem:[#allocation11] sm:$0x1]
    %v124 = vlaneseq
    %v125 = vshrl.u32 %v124, 7
    %v126 = vsub.s32 0, %v125
    %v127 = vrot.slane %v123, %v126
    %v144 = vunpack.c.l.b16 %v107
    %v145 = vunpack.c.l.b16 %v108
    %v146 = vunpack.c.l.b16 %v109
    %v147 = vunpack.c.l.b16 %v110
    %v148 = vunpack.c.l.b16 %v111
    %v149 = vunpack.c.l.b16 %v112
    %v150 = vunpack.c.l.b16 %v113
    %v151 = vunpack.c.l.b16 %v114
    %v152 = vunpack.c.l.b16 %v115
    %v153 = vunpack.c.l.b16 %v116
    %v154 = vunpack.c.l.b16 %v117
    %v155 = vunpack.c.l.b16 %v118
    %v156 = vunpack.c.l.b16 %v119
    %v157 = vunpack.c.l.b16 %v120
    %v158 = vunpack.c.l.b16 %v121
    %v159 = vunpack.c.l.b16 %v122
    %v160 = vpack.c.b16 %v145, %v144
    %v161 = vpack.c.b16 %v147, %v146
    %v162 = vpack.c.b16 %v149, %v148
    %v163 = vpack.c.b16 %v151, %v150
    %v164 = vpack.c.b16 %v153, %v152
    %v165 = vpack.c.b16 %v155, %v154
    %v166 = vpack.c.b16 %v157, %v156
    %v167 = vpack.c.b16 %v159, %v158
    %176 = vmatprep.subr.bf16.mxu0 0
    %177 = vmatpush1.bf16.msra.mxu0 %v167
    %178 = vmatprep.subr.bf16.mxu0 0
    %179 = vmatpush1.bf16.msra.mxu0 %v166
    %180 = vmatprep.subr.bf16.mxu0 0
    %181 = vmatpush1.bf16.msra.mxu0 %v165
    %182 = vmatprep.subr.bf16.mxu0 0
    %183 = vmatpush1.bf16.msra.mxu0 %v164
    %184 = vmatprep.subr.bf16.mxu0 0
    %185 = vmatpush1.bf16.msra.mxu0 %v163
    %186 = vmatprep.subr.bf16.mxu0 0
    %187 = vmatpush1.bf16.msra.mxu0 %v162
    %188 = vmatprep.subr.bf16.mxu0 0
    %189 = vmatpush1.bf16.msra.mxu0 %v161
    %190 = vmatprep.subr.bf16.mxu0 0
    %191 = vmatpush1.bf16.msra.mxu0 %v160
    %192 = vmatprep.subr.bf16.mxu0 0
    %193 = vmatpush2.bf16.msra.mxu0 0
    %194 = vmatprep.subr.bf16.mxu0 0
    %195 = vmatpush2.bf16.msra.mxu0 0
    %196 = vmatprep.subr.bf16.mxu0 0
    %197 = vmatpush2.bf16.msra.mxu0 0
    %198 = vmatprep.subr.bf16.mxu0 0
    %199 = vmatpush2.bf16.msra.mxu0 0
    %200 = vmatprep.subr.bf16.mxu0 0
    %201 = vmatpush2.bf16.msra.mxu0 0
    %202 = vmatprep.subr.bf16.mxu0 0
    %203 = vmatpush2.bf16.msra.mxu0 0
    %204 = vmatprep.subr.bf16.mxu0 0
    %205 = vmatpush2.bf16.msra.mxu0 0
    %206 = vmatprep.subr.bf16.mxu0 0
    %207 = vmatpush2.bf16.msra.mxu0 0
    %208 = vmatprep.mubr.bf16.mxu0 0
    %209 = vmatmul.mubr.bf16.gmra.mxu0 %v106
    %v210 = vpop.f32.mrf.mxu0
    %v211 = vadd.f32 %v127, %v210
    %v212 = vpop.f32.mrf.mxu0
    %v213 = vpop.f32.mrf.mxu0
    %v214 = vpop.f32.mrf.mxu0
    %215 = vdwg.mxu0
    %v216 = vld [vmem:[#allocation6] sm:$0xf]
    %v217 = vld [vmem:[#allocation6 + $0x4] sm:$0xf]
    %v218 = vld [vmem:[#allocation6 + $0x8] sm:$0xf]
    %v219 = vld [vmem:[#allocation6 + $0xc] sm:$0xf]
    %v220 = vld [vmem:[#allocation9 + $0x40] sm:$0xf]
    %v221 = vld [vmem:[#allocation9 + $0x44] sm:$0xf]
    %v222 = vld [vmem:[#allocation9 + $0x48] sm:$0xf]
    %v223 = vld [vmem:[#allocation9 + $0x4c] sm:$0xf]
    %v224 = vld [vmem:[#allocation11 + $0x1] sm:$0x1]
    %v225 = vlaneseq
    %v226 = vshrl.u32 %v225, 7
    %v227 = vsub.s32 0, %v226
    %v228 = vrot.slane %v224, %v227
    %v231 = vunpack.c.l.b16 %v216
    %v232 = vunpack.c.l.b16 %v217
    %v233 = vpack.c.b16 %v232, %v231
    %v238 = vunpack.c.l.b16 %v220
    %v239 = vunpack.c.l.b16 %v221
    %v240 = vunpack.c.l.b16 %v222
    %v241 = vunpack.c.l.b16 %v223
    %v242 = vpack.c.b16 %v239, %v238
    %v243 = vpack.c.b16 %v241, %v240
    %vm246 = vcmask 261120
    %v248 = vsel %vm246, %v233, 0
    %250 = vmatprep.subr.bf16.mxu0 0
    %251 = vmatpush1.bf16.msra.mxu0 0
    %252 = vmatprep.subr.bf16.mxu0 0
    %253 = vmatpush1.bf16.msra.mxu0 0
    %254 = vmatprep.subr.bf16.mxu0 0
    %255 = vmatpush1.bf16.msra.mxu0 0
    %256 = vmatprep.subr.bf16.mxu0 0
    %257 = vmatpush1.bf16.msra.mxu0 0
    %258 = vmatprep.subr.bf16.mxu0 0
    %259 = vmatpush1.bf16.msra.mxu0 0
    %260 = vmatprep.subr.bf16.mxu0 0
    %261 = vmatpush1.bf16.msra.mxu0 0
    %262 = vmatprep.subr.bf16.mxu0 0
    %263 = vmatpush1.bf16.msra.mxu0 %v243
    %264 = vmatprep.subr.bf16.mxu0 0
    %265 = vmatpush1.bf16.msra.mxu0 %v242
    %266 = vmatprep.subr.bf16.mxu0 0
    %267 = vmatpush2.bf16.msra.mxu0 0
    %268 = vmatprep.subr.bf16.mxu0 0
    %269 = vmatpush2.bf16.msra.mxu0 0
    %270 = vmatprep.subr.bf16.mxu0 0
    %271 = vmatpush2.bf16.msra.mxu0 0
    %272 = vmatprep.subr.bf16.mxu0 0
    %273 = vmatpush2.bf16.msra.mxu0 0
    %274 = vmatprep.subr.bf16.mxu0 0
    %275 = vmatpush2.bf16.msra.mxu0 0
    %276 = vmatprep.subr.bf16.mxu0 0
    %277 = vmatpush2.bf16.msra.mxu0 0
    %278 = vmatprep.subr.bf16.mxu0 0
    %279 = vmatpush2.bf16.msra.mxu0 0
    %280 = vmatprep.subr.bf16.mxu0 0
    %281 = vmatpush2.bf16.msra.mxu0 0
    %282 = vmatprep.mubr.bf16.mxu0 0
    %283 = vmatmul.mubr.bf16.gmra.mxu0 %v248
    %v284 = vpop.f32.mrf.mxu0
    %v285 = vadd.f32 %v228, %v284
    %v286 = vpop.f32.mrf.mxu0
    %v287 = vpop.f32.mrf.mxu0
    %v288 = vadd.f32 %v228, %v287
    %v289 = vpop.f32.mrf.mxu0
    %290 = vdwg.mxu0
    %v291 = vtanh.pop %v285
    %v292 = vtanh.pop %v288
    %v293 = vld [vmem:[#allocation9 + $0x50] sm:$0xf]
    %v294 = vld [vmem:[#allocation9 + $0x54] sm:$0xf]
    %v295 = vld [vmem:[#allocation9 + $0x58] sm:$0xf]
    %v296 = vld [vmem:[#allocation9 + $0x5c] sm:$0xf]
    %v297 = vld [vmem:[#allocation11 + $0x2] sm:$0x1]
    %v298 = vlaneseq
    %v299 = vshrl.u32 %v298, 7
    %v300 = vsub.s32 0, %v299
    %v301 = vrot.slane %v297, %v300
    %v304 = vunpack.c.l.b16 %v218
    %v305 = vunpack.c.l.b16 %v219
    %v306 = vpack.c.b16 %v305, %v304
    %v311 = vunpack.c.l.b16 %v293
    %v312 = vunpack.c.l.b16 %v294
    %v313 = vunpack.c.l.b16 %v295
    %v314 = vunpack.c.l.b16 %v296
    %v315 = vpack.c.b16 %v312, %v311
    %v316 = vpack.c.b16 %v314, %v313
    %v320 = vsel %vm246, %v306, 0
    %322 = vmatprep.subr.bf16.mxu0 0
    %323 = vmatpush1.bf16.msra.mxu0 0
    %324 = vmatprep.subr.bf16.mxu0 0
    %325 = vmatpush1.bf16.msra.mxu0 0
    %326 = vmatprep.subr.bf16.mxu0 0
    %327 = vmatpush1.bf16.msra.mxu0 0
    %328 = vmatprep.subr.bf16.mxu0 0
    %329 = vmatpush1.bf16.msra.mxu0 0
    %330 = vmatprep.subr.bf16.mxu0 0
    %331 = vmatpush1.bf16.msra.mxu0 0
    %332 = vmatprep.subr.bf16.mxu0 0
    %333 = vmatpush1.bf16.msra.mxu0 0
    %334 = vmatprep.subr.bf16.mxu0 0
    %335 = vmatpush1.bf16.msra.mxu0 %v316
    %336 = vmatprep.subr.bf16.mxu0 0
    %337 = vmatpush1.bf16.msra.mxu0 %v315
    %338 = vmatprep.subr.bf16.mxu0 0
    %339 = vmatpush2.bf16.msra.mxu0 0
    %340 = vmatprep.subr.bf16.mxu0 0
    %341 = vmatpush2.bf16.msra.mxu0 0
    %342 = vmatprep.subr.bf16.mxu0 0
    %343 = vmatpush2.bf16.msra.mxu0 0
    %344 = vmatprep.subr.bf16.mxu0 0
    %345 = vmatpush2.bf16.msra.mxu0 0
    %346 = vmatprep.subr.bf16.mxu0 0
    %347 = vmatpush2.bf16.msra.mxu0 0
    %348 = vmatprep.subr.bf16.mxu0 0
    %349 = vmatpush2.bf16.msra.mxu0 0
    %350 = vmatprep.subr.bf16.mxu0 0
    %351 = vmatpush2.bf16.msra.mxu0 0
    %352 = vmatprep.subr.bf16.mxu0 0
    %353 = vmatpush2.bf16.msra.mxu0 0
    %354 = vmatprep.mubr.bf16.mxu0 0
    %355 = vmatmul.mubr.bf16.gmra.mxu0 %v320
    %v356 = vpop.f32.mrf.mxu0
    %v357 = vadd.f32 %v301, %v356
    %v358 = vpop.f32.mrf.mxu0
    %v359 = vpop.f32.mrf.mxu0
    %v360 = vadd.f32 %v301, %v359
    %v361 = vpop.f32.mrf.mxu0
    %362 = vdwg.mxu0
    %v363 = vtanh.pop %v357
    %v364 = vtanh.pop %v360
    %v365 = vpack.c.bf16 %v292, %v291
    %v366 = vpack.c.bf16 %v364, %v363
    %v367 = vld [vmem:[#allocation9 + $0x78] sm:$0xf]
    %v368 = vld [vmem:[#allocation9 + $0x7c] sm:$0xf]
    %v369 = vld [vmem:[#allocation9 + $0x80] sm:$0xf]
    %v370 = vld [vmem:[#allocation9 + $0x84] sm:$0xf]
    %372 = vrot.lane.b32.xlu0 %v365, 96
    %v373 = vpop.permute.xlu0 %372
    %v378 = vunpack.c.l.b16 %v367
    %v379 = vunpack.c.l.b16 %v368
    %v380 = vunpack.c.l.b16 %v369
    %v381 = vunpack.c.l.b16 %v370
    %v382 = vpack.c.b16 %v379, %v378
    %v383 = vpack.c.b16 %v381, %v380
    %v387 = vsel %vm246, %v373, 0
    %389 = vmatprep.subr.bf16.mxu0 0
    %390 = vmatpush1.bf16.msra.mxu0 0
    %391 = vmatprep.subr.bf16.mxu0 0
    %392 = vmatpush1.bf16.msra.mxu0 0
    %393 = vmatprep.subr.bf16.mxu0 0
    %394 = vmatpush1.bf16.msra.mxu0 0
    %395 = vmatprep.subr.bf16.mxu0 0
    %396 = vmatpush1.bf16.msra.mxu0 0
    %397 = vmatprep.subr.bf16.mxu0 0
    %398 = vmatpush1.bf16.msra.mxu0 0
    %399 = vmatprep.subr.bf16.mxu0 0
    %400 = vmatpush1.bf16.msra.mxu0 0
    %401 = vmatprep.subr.bf16.mxu0 0
    %402 = vmatpush1.bf16.msra.mxu0 %v383
    %403 = vmatprep.subr.bf16.mxu0 0
    %404 = vmatpush1.bf16.msra.mxu0 %v382
    %405 = vmatprep.subr.bf16.mxu0 0
    %406 = vmatpush2.bf16.msra.mxu0 0
    %407 = vmatprep.subr.bf16.mxu0 0
    %408 = vmatpush2.bf16.msra.mxu0 0
    %409 = vmatprep.subr.bf16.mxu0 0
    %410 = vmatpush2.bf16.msra.mxu0 0
    %411 = vmatprep.subr.bf16.mxu0 0
    %412 = vmatpush2.bf16.msra.mxu0 0
    %413 = vmatprep.subr.bf16.mxu0 0
    %414 = vmatpush2.bf16.msra.mxu0 0
    %415 = vmatprep.subr.bf16.mxu0 0
    %416 = vmatpush2.bf16.msra.mxu0 0
    %417 = vmatprep.subr.bf16.mxu0 0
    %418 = vmatpush2.bf16.msra.mxu0 0
    %419 = vmatprep.subr.bf16.mxu0 0
    %420 = vmatpush2.bf16.msra.mxu0 0
    %421 = vmatprep.mubr.bf16.mxu0 0
    %422 = vmatmul.mubr.bf16.gmra.mxu0 %v387
    %v423 = vpop.f32.mrf.mxu0
    %v424 = vadd.f32 0.0, %v423
    %v425 = vpop.f32.mrf.mxu0
    %v426 = vpop.f32.mrf.mxu0
    %v427 = vadd.f32 0.0, %v426
    %v428 = vpop.f32.mrf.mxu0
    %429 = vdwg.mxu0
    %v430 = vpack.c.bf16 %v427, %v424
    %v431 = vld [vmem:[#allocation9 + $0x88] sm:$0xf]
    %v432 = vld [vmem:[#allocation9 + $0x8c] sm:$0xf]
    %v433 = vld [vmem:[#allocation9 + $0x90] sm:$0xf]
    %v434 = vld [vmem:[#allocation9 + $0x94] sm:$0xf]
    %436 = vrot.lane.b32.xlu0 %v366, 96
    %v437 = vpop.permute.xlu0 %436
    %v442 = vunpack.c.l.b16 %v431
    %v443 = vunpack.c.l.b16 %v432
    %v444 = vunpack.c.l.b16 %v433
    %v445 = vunpack.c.l.b16 %v434
    %v446 = vpack.c.b16 %v443, %v442
    %v447 = vpack.c.b16 %v445, %v444
    %v451 = vsel %vm246, %v437, 0
    %453 = vmatprep.subr.bf16.mxu0 0
    %454 = vmatpush1.bf16.msra.mxu0 0
    %455 = vmatprep.subr.bf16.mxu0 0
    %456 = vmatpush1.bf16.msra.mxu0 0
    %457 = vmatprep.subr.bf16.mxu0 0
    %458 = vmatpush1.bf16.msra.mxu0 0
    %459 = vmatprep.subr.bf16.mxu0 0
    %460 = vmatpush1.bf16.msra.mxu0 0
    %461 = vmatprep.subr.bf16.mxu0 0
    %462 = vmatpush1.bf16.msra.mxu0 0
    %463 = vmatprep.subr.bf16.mxu0 0
    %464 = vmatpush1.bf16.msra.mxu0 0
    %465 = vmatprep.subr.bf16.mxu0 0
    %466 = vmatpush1.bf16.msra.mxu0 %v447
    %467 = vmatprep.subr.bf16.mxu0 0
    %468 = vmatpush1.bf16.msra.mxu0 %v446
    %469 = vmatprep.subr.bf16.mxu0 0
    %470 = vmatpush2.bf16.msra.mxu0 0
    %471 = vmatprep.subr.bf16.mxu0 0
    %472 = vmatpush2.bf16.msra.mxu0 0
    %473 = vmatprep.subr.bf16.mxu0 0
    %474 = vmatpush2.bf16.msra.mxu0 0
    %475 = vmatprep.subr.bf16.mxu0 0
    %476 = vmatpush2.bf16.msra.mxu0 0
    %477 = vmatprep.subr.bf16.mxu0 0
    %478 = vmatpush2.bf16.msra.mxu0 0
    %479 = vmatprep.subr.bf16.mxu0 0
    %480 = vmatpush2.bf16.msra.mxu0 0
    %481 = vmatprep.subr.bf16.mxu0 0
    %482 = vmatpush2.bf16.msra.mxu0 0
    %483 = vmatprep.subr.bf16.mxu0 0
    %484 = vmatpush2.bf16.msra.mxu0 0
    %485 = vmatprep.mubr.bf16.mxu0 0
    %486 = vmatmul.mubr.bf16.gmra.mxu0 %v451
    %v487 = vpop.f32.mrf.mxu0
    %v488 = vadd.f32 0.0, %v487
    %v489 = vpop.f32.mrf.mxu0
    %v490 = vpop.f32.mrf.mxu0
    %v491 = vadd.f32 0.0, %v490
    %v492 = vpop.f32.mrf.mxu0
    %493 = vdwg.mxu0
    %v494 = vpack.c.bf16 %v491, %v488
    %v495 = vld [vmem:[#allocation8] sm:$0xf]
    %v496 = vld [vmem:[#allocation8 + $0x4] sm:$0x3]
    %v497 = vld [vmem:[#allocation9 + $0x70] sm:$0xf]
    %v498 = vld [vmem:[#allocation9 + $0x74] sm:$0xf]
    %v499 = vld [vmem:[#allocation11 + $0x4] sm:$0x1]
    %v500 = vlaneseq
    %v501 = vshrl.u32 %v500, 7
    %v502 = vsub.s32 0, %v501
    %v503 = vrot.slane %v499, %v502
    %v506 = vunpack.c.l.b16 %v495
    %v507 = vunpack.c.l.b16 %v496
    %v508 = vpack.c.b16 %v507, %v506
    %v511 = vunpack.c.l.b16 %v497
    %v512 = vunpack.c.l.b16 %v498
    %v513 = vpack.c.b16 %v512, %v511
    %vm515 = vcmask 130048
    %v517 = vsel %vm515, %v508, 0
    %519 = vmatprep.subr.bf16.mxu0 0
    %520 = vmatpush1.bf16.msra.mxu0 0
    %521 = vmatprep.subr.bf16.mxu0 0
    %522 = vmatpush1.bf16.msra.mxu0 0
    %523 = vmatprep.subr.bf16.mxu0 0
    %524 = vmatpush1.bf16.msra.mxu0 0
    %525 = vmatprep.subr.bf16.mxu0 0
    %526 = vmatpush1.bf16.msra.mxu0 0
    %527 = vmatprep.subr.bf16.mxu0 0
    %528 = vmatpush1.bf16.msra.mxu0 0
    %529 = vmatprep.subr.bf16.mxu0 0
    %530 = vmatpush1.bf16.msra.mxu0 0
    %531 = vmatprep.subr.bf16.mxu0 0
    %532 = vmatpush1.bf16.msra.mxu0 0
    %533 = vmatprep.subr.bf16.mxu0 0
    %534 = vmatpush1.bf16.msra.mxu0 %v513
    %535 = vmatprep.subr.bf16.mxu0 0
    %536 = vmatpush2.bf16.msra.mxu0 0
    %537 = vmatprep.subr.bf16.mxu0 0
    %538 = vmatpush2.bf16.msra.mxu0 0
    %539 = vmatprep.subr.bf16.mxu0 0
    %540 = vmatpush2.bf16.msra.mxu0 0
    %541 = vmatprep.subr.bf16.mxu0 0
    %542 = vmatpush2.bf16.msra.mxu0 0
    %543 = vmatprep.subr.bf16.mxu0 0
    %544 = vmatpush2.bf16.msra.mxu0 0
    %545 = vmatprep.subr.bf16.mxu0 0
    %546 = vmatpush2.bf16.msra.mxu0 0
    %547 = vmatprep.subr.bf16.mxu0 0
    %548 = vmatpush2.bf16.msra.mxu0 0
    %549 = vmatprep.subr.bf16.mxu0 0
    %550 = vmatpush2.bf16.msra.mxu0 0
    %551 = vmatprep.mubr.bf16.mxu0 0
    %552 = vmatmul.mubr.bf16.gmra.mxu0 %v517
    %v553 = vpop.f32.mrf.mxu0
    %v554 = vadd.f32 %v503, %v553
    %v555 = vpop.f32.mrf.mxu0
    %v556 = vpop.f32.mrf.mxu0
    %v557 = vadd.f32 %v503, %v556
    %v558 = vpop.f32.mrf.mxu0
    %559 = vdwg.mxu0
    %v560 = vld [vmem:[#allocation9 + $0x60] sm:$0xf]
    %v561 = vld [vmem:[#allocation9 + $0x64] sm:$0xf]
    %v562 = vld [vmem:[#allocation9 + $0x68] sm:$0xf]
    %v563 = vld [vmem:[#allocation9 + $0x6c] sm:$0xf]
    %v564 = vld [vmem:[#allocation9 + $0x98] sm:$0xf]
    %v565 = vld [vmem:[#allocation9 + $0x9c] sm:$0xf]
    %v566 = vld [vmem:[#allocation9 + $0xa0] sm:$0xf]
    %v567 = vld [vmem:[#allocation9 + $0xa4] sm:$0xf]
    %v568 = vld [vmem:[#allocation11 + $0x3] sm:$0x1]
    %v569 = vlaneseq
    %v570 = vshrl.u32 %v569, 7
    %v571 = vsub.s32 0, %v570
    %v572 = vrot.slane %v568, %v571
    %v573 = vld [vmem:[#allocation11 + $0x5] sm:$0x1]
    %v574 = vlaneseq
    %v575 = vshrl.u32 %v574, 7
    %v576 = vsub.s32 0, %v575
    %v577 = vrot.slane %v573, %v576
    %v578 = vlaneseq
    %v579 = vshrl.u32 %v578, 7
    %v580 = vlaneseq
    %v581 = vand.u32 %v580, 127
    %v582 = vmul.u32 %v579, 8
    %vm583 = vcmp.ge.s32.totalorder %v581, %v582
    %v584 = vadd.s32 %v579, 1
    %v585 = vmul.u32 %v584, 8
    %vm586 = vcmp.lt.s32.totalorder %v581, %v585
    %vm587 = vmand %vm583, %vm586
    %v588 = vsel %vm587, 1, 0
    %v589 = vcvt.s32.f32 %v588
    %v590 = vpack.c.bf16 %v211, %v211
    %v595 = vunpack.c.l.b16 %v560
    %v596 = vunpack.c.l.b16 %v561
    %v597 = vunpack.c.l.b16 %v562
    %v598 = vunpack.c.l.b16 %v563
    %v599 = vpack.c.b16 %v596, %v595
    %v600 = vpack.c.b16 %v598, %v597
    %v604 = vsel %vm246, %v590, 0
    %606 = vmatprep.subr.bf16.mxu0 0
    %607 = vmatpush1.bf16.msra.mxu0 0
    %608 = vmatprep.subr.bf16.mxu0 0
    %609 = vmatpush1.bf16.msra.mxu0 0
    %610 = vmatprep.subr.bf16.mxu0 0
    %611 = vmatpush1.bf16.msra.mxu0 0
    %612 = vmatprep.subr.bf16.mxu0 0
    %613 = vmatpush1.bf16.msra.mxu0 0
    %614 = vmatprep.subr.bf16.mxu0 0
    %615 = vmatpush1.bf16.msra.mxu0 0
    %616 = vmatprep.subr.bf16.mxu0 0
    %617 = vmatpush1.bf16.msra.mxu0 0
    %618 = vmatprep.subr.bf16.mxu0 0
    %619 = vmatpush1.bf16.msra.mxu0 %v600
    %620 = vmatprep.subr.bf16.mxu0 0
    %621 = vmatpush1.bf16.msra.mxu0 %v599
    %622 = vmatprep.subr.bf16.mxu0 0
    %623 = vmatpush2.bf16.msra.mxu0 0
    %624 = vmatprep.subr.bf16.mxu0 0
    %625 = vmatpush2.bf16.msra.mxu0 0
    %626 = vmatprep.subr.bf16.mxu0 0
    %627 = vmatpush2.bf16.msra.mxu0 0
    %628 = vmatprep.subr.bf16.mxu0 0
    %629 = vmatpush2.bf16.msra.mxu0 0
    %630 = vmatprep.subr.bf16.mxu0 0
    %631 = vmatpush2.bf16.msra.mxu0 0
    %632 = vmatprep.subr.bf16.mxu0 0
    %633 = vmatpush2.bf16.msra.mxu0 0
    %634 = vmatprep.subr.bf16.mxu0 0
    %635 = vmatpush2.bf16.msra.mxu0 0
    %636 = vmatprep.subr.bf16.mxu0 0
    %637 = vmatpush2.bf16.msra.mxu0 0
    %638 = vmatprep.mubr.bf16.mxu0 0
    %639 = vmatmul.mubr.bf16.gmra.mxu0 %v604
    %v640 = vpop.f32.mrf.mxu0
    %v641 = vadd.f32 %v572, %v640
    %v642 = vpop.f32.mrf.mxu0
    %v643 = vpop.f32.mrf.mxu0
    %v644 = vpop.f32.mrf.mxu0
    %645 = vdwg.mxu0
    %v646 = vtanh.pop %v641
    %v647 = vpack.c.bf16 %v646, %v646
    %v649 = vsel %vm246, %v647, 0
    %v652 = vsel %vm246, %v365, 0
    %654 = vmatprep.subr.bf16.mxu0 0
    %655 = vmatpush1.bf16.xpose.msra.mxu0 0
    %656 = vmatprep.subr.bf16.mxu0 0
    %657 = vmatpush1.bf16.xpose.msra.mxu0 0
    %658 = vmatprep.subr.bf16.mxu0 0
    %659 = vmatpush1.bf16.xpose.msra.mxu0 0
    %660 = vmatprep.subr.bf16.mxu0 0
    %661 = vmatpush1.bf16.xpose.msra.mxu0 0
    %662 = vmatprep.subr.bf16.mxu0 0
    %663 = vmatpush1.bf16.xpose.msra.mxu0 0
    %664 = vmatprep.subr.bf16.mxu0 0
    %665 = vmatpush1.bf16.xpose.msra.mxu0 0
    %666 = vmatprep.subr.bf16.mxu0 0
    %667 = vmatpush1.bf16.xpose.msra.mxu0 0
    %668 = vmatprep.subr.bf16.mxu0 0
    %669 = vmatpush1.bf16.xpose.msra.mxu0 %v652
    %670 = vmatprep.subr.bf16.mxu0 0
    %671 = vmatpush2.bf16.xpose.msra.mxu0 0
    %672 = vmatprep.subr.bf16.mxu0 0
    %673 = vmatpush2.bf16.xpose.msra.mxu0 0
    %674 = vmatprep.subr.bf16.mxu0 0
    %675 = vmatpush2.bf16.xpose.msra.mxu0 0
    %676 = vmatprep.subr.bf16.mxu0 0
    %677 = vmatpush2.bf16.xpose.msra.mxu0 0
    %678 = vmatprep.subr.bf16.mxu0 0
    %679 = vmatpush2.bf16.xpose.msra.mxu0 0
    %680 = vmatprep.subr.bf16.mxu0 0
    %681 = vmatpush2.bf16.xpose.msra.mxu0 0
    %682 = vmatprep.subr.bf16.mxu0 0
    %683 = vmatpush2.bf16.xpose.msra.mxu0 0
    %684 = vmatprep.subr.bf16.mxu0 0
    %685 = vmatpush2.bf16.xpose.msra.mxu0 0
    %686 = vmatprep.mubr.bf16.mxu0 0
    %687 = vmatmul.mubr.bf16.gmra.mxu0 %v649
    %v688 = vpop.f32.mrf.mxu0
    %v689 = vadd.f32 0.0, %v688
    %v690 = vpop.f32.mrf.mxu0
    %v691 = vpop.f32.mrf.mxu0
    %v692 = vpop.f32.mrf.mxu0
    %693 = vdwg.mxu0
    %v694 = vsub.f32 %v689, 32.0
    %v695 = vmul.f32 %v694, 1.442695
    %v696 = vpow.pop %v695
    %v697 = vmul.f32 %v696, %v589
    %vm698 = vcmask 123904
    %v699 = vsel %vm698, %v697, 0.0
    %700 = vadd.xlane.f32.xlu0 %v699
    %v701 = vpop.xlane.xlu0 %700
    %v702 = vrcp.pop %v701
    %v703 = vmul.f32 %v697, %v702
    %v704 = vpack.c.bf16 %v703, %v703
    %706 = vrot.lane.b32.xlu0 %v647, 96
    %v707 = vpop.permute.xlu0 %706
    %v709 = vsel %vm246, %v707, 0
    %v712 = vsel %vm246, %v366, 0
    %714 = vmatprep.subr.bf16.mxu0 0
    %715 = vmatpush1.bf16.xpose.msra.mxu0 0
    %716 = vmatprep.subr.bf16.mxu0 0
    %717 = vmatpush1.bf16.xpose.msra.mxu0 0
    %718 = vmatprep.subr.bf16.mxu0 0
    %719 = vmatpush1.bf16.xpose.msra.mxu0 0
    %720 = vmatprep.subr.bf16.mxu0 0
    %721 = vmatpush1.bf16.xpose.msra.mxu0 0
    %722 = vmatprep.subr.bf16.mxu0 0
    %723 = vmatpush1.bf16.xpose.msra.mxu0 0
    %724 = vmatprep.subr.bf16.mxu0 0
    %725 = vmatpush1.bf16.xpose.msra.mxu0 0
    %726 = vmatprep.subr.bf16.mxu0 0
    %727 = vmatpush1.bf16.xpose.msra.mxu0 0
    %728 = vmatprep.subr.bf16.mxu0 0
    %729 = vmatpush1.bf16.xpose.msra.mxu0 %v712
    %730 = vmatprep.subr.bf16.mxu0 0
    %731 = vmatpush2.bf16.xpose.msra.mxu0 0
    %732 = vmatprep.subr.bf16.mxu0 0
    %733 = vmatpush2.bf16.xpose.msra.mxu0 0
    %734 = vmatprep.subr.bf16.mxu0 0
    %735 = vmatpush2.bf16.xpose.msra.mxu0 0
    %736 = vmatprep.subr.bf16.mxu0 0
    %737 = vmatpush2.bf16.xpose.msra.mxu0 0
    %738 = vmatprep.subr.bf16.mxu0 0
    %739 = vmatpush2.bf16.xpose.msra.mxu0 0
    %740 = vmatprep.subr.bf16.mxu0 0
    %741 = vmatpush2.bf16.xpose.msra.mxu0 0
    %742 = vmatprep.subr.bf16.mxu0 0
    %743 = vmatpush2.bf16.xpose.msra.mxu0 0
    %744 = vmatprep.subr.bf16.mxu0 0
    %745 = vmatpush2.bf16.xpose.msra.mxu0 0
    %746 = vmatprep.mubr.bf16.mxu0 0
    %747 = vmatmul.mubr.bf16.gmra.mxu0 %v709
    %v748 = vpop.f32.mrf.mxu0
    %v749 = vadd.f32 0.0, %v748
    %v750 = vpop.f32.mrf.mxu0
    %v751 = vpop.f32.mrf.mxu0
    %v752 = vpop.f32.mrf.mxu0
    %753 = vdwg.mxu0
    %v754 = vsub.f32 %v749, 32.0
    %v755 = vmul.f32 %v754, 1.442695
    %v756 = vpow.pop %v755
    %v757 = vmul.f32 %v756, %v589
    %v758 = vsel %vm698, %v757, 0.0
    %759 = vadd.xlane.f32.xlu0 %v758
    %v760 = vpop.xlane.xlu0 %759
    %v761 = vrcp.pop %v760
    %v762 = vmul.f32 %v757, %v761
    %v763 = vpack.c.bf16 %v762, %v762
    %v765 = vsel %vm515, %v763, 0
    %767 = vmatprep.subr.bf16.mxu0 0
    %768 = vmatpush1.bf16.msra.mxu0 0
    %769 = vmatprep.subr.bf16.mxu0 0
    %770 = vmatpush1.bf16.msra.mxu0 0
    %771 = vmatprep.subr.bf16.mxu0 0
    %772 = vmatpush1.bf16.msra.mxu0 0
    %773 = vmatprep.subr.bf16.mxu0 0
    %774 = vmatpush1.bf16.msra.mxu0 0
    %775 = vmatprep.subr.bf16.mxu0 0
    %776 = vmatpush1.bf16.msra.mxu0 0
    %777 = vmatprep.subr.bf16.mxu0 0
    %778 = vmatpush1.bf16.msra.mxu0 0
    %779 = vmatprep.subr.bf16.mxu0 0
    %780 = vmatpush1.bf16.msra.mxu0 0
    %781 = vmatprep.subr.bf16.mxu0 0
    %782 = vmatpush1.bf16.msra.mxu0 %v494
    %783 = vmatprep.subr.bf16.mxu0 0
    %784 = vmatpush2.bf16.msra.mxu0 0
    %785 = vmatprep.subr.bf16.mxu0 0
    %786 = vmatpush2.bf16.msra.mxu0 0
    %787 = vmatprep.subr.bf16.mxu0 0
    %788 = vmatpush2.bf16.msra.mxu0 0
    %789 = vmatprep.subr.bf16.mxu0 0
    %790 = vmatpush2.bf16.msra.mxu0 0
    %791 = vmatprep.subr.bf16.mxu0 0
    %792 = vmatpush2.bf16.msra.mxu0 0
    %793 = vmatprep.subr.bf16.mxu0 0
    %794 = vmatpush2.bf16.msra.mxu0 0
    %795 = vmatprep.subr.bf16.mxu0 0
    %796 = vmatpush2.bf16.msra.mxu0 0
    %797 = vmatprep.subr.bf16.mxu0 0
    %798 = vmatpush2.bf16.msra.mxu0 0
    %799 = vmatprep.mubr.bf16.mxu0 0
    %800 = vmatmul.mubr.bf16.gmra.mxu0 %v765
    %v801 = vpop.f32.mrf.mxu0
    %v802 = vadd.f32 0.0, %v801
    %v803 = vpop.f32.mrf.mxu0
    %v804 = vpop.f32.mrf.mxu0
    %v805 = vpop.f32.mrf.mxu0
    %806 = vdwg.mxu0
    %v808 = vsel %vm515, %v704, 0
    %810 = vmatprep.subr.bf16.mxu0 0
    %811 = vmatpush1.bf16.msra.mxu0 0
    %812 = vmatprep.subr.bf16.mxu0 0
    %813 = vmatpush1.bf16.msra.mxu0 0
    %814 = vmatprep.subr.bf16.mxu0 0
    %815 = vmatpush1.bf16.msra.mxu0 0
    %816 = vmatprep.subr.bf16.mxu0 0
    %817 = vmatpush1.bf16.msra.mxu0 0
    %818 = vmatprep.subr.bf16.mxu0 0
    %819 = vmatpush1.bf16.msra.mxu0 0
    %820 = vmatprep.subr.bf16.mxu0 0
    %821 = vmatpush1.bf16.msra.mxu0 0
    %822 = vmatprep.subr.bf16.mxu0 0
    %823 = vmatpush1.bf16.msra.mxu0 0
    %824 = vmatprep.subr.bf16.mxu0 0
    %825 = vmatpush1.bf16.msra.mxu0 %v430
    %826 = vmatprep.subr.bf16.mxu0 0
    %827 = vmatpush2.bf16.msra.mxu0 0
    %828 = vmatprep.subr.bf16.mxu0 0
    %829 = vmatpush2.bf16.msra.mxu0 0
    %830 = vmatprep.subr.bf16.mxu0 0
    %831 = vmatpush2.bf16.msra.mxu0 0
    %832 = vmatprep.subr.bf16.mxu0 0
    %833 = vmatpush2.bf16.msra.mxu0 0
    %834 = vmatprep.subr.bf16.mxu0 0
    %835 = vmatpush2.bf16.msra.mxu0 0
    %836 = vmatprep.subr.bf16.mxu0 0
    %837 = vmatpush2.bf16.msra.mxu0 0
    %838 = vmatprep.subr.bf16.mxu0 0
    %839 = vmatpush2.bf16.msra.mxu0 0
    %840 = vmatprep.subr.bf16.mxu0 0
    %841 = vmatpush2.bf16.msra.mxu0 0
    %842 = vmatprep.mubr.bf16.mxu0 0
    %843 = vmatmul.mubr.bf16.gmra.mxu0 %v808
    %v844 = vpop.f32.mrf.mxu0
    %v845 = vadd.f32 %v802, %v844
    %v846 = vpop.f32.mrf.mxu0
    %v847 = vpop.f32.mrf.mxu0
    %v848 = vpop.f32.mrf.mxu0
    %849 = vdwg.mxu0
    %v850 = vadd.f32 %v554, %v845
    %v855 = vunpack.c.l.b16 %v564
    %v856 = vunpack.c.l.b16 %v565
    %v857 = vunpack.c.l.b16 %v566
    %v858 = vunpack.c.l.b16 %v567
    %v859 = vpack.c.b16 %v856, %v855
    %v860 = vpack.c.b16 %v858, %v857
    %863 = vmatprep.subr.bf16.mxu0 0
    %864 = vmatpush1.bf16.msra.mxu0 0
    %865 = vmatprep.subr.bf16.mxu0 0
    %866 = vmatpush1.bf16.msra.mxu0 0
    %867 = vmatprep.subr.bf16.mxu0 0
    %868 = vmatpush1.bf16.msra.mxu0 0
    %869 = vmatprep.subr.bf16.mxu0 0
    %870 = vmatpush1.bf16.msra.mxu0 0
    %871 = vmatprep.subr.bf16.mxu0 0
    %872 = vmatpush1.bf16.msra.mxu0 0
    %873 = vmatprep.subr.bf16.mxu0 0
    %874 = vmatpush1.bf16.msra.mxu0 0
    %875 = vmatprep.subr.bf16.mxu0 0
    %876 = vmatpush1.bf16.msra.mxu0 %v860
    %877 = vmatprep.subr.bf16.mxu0 0
    %878 = vmatpush1.bf16.msra.mxu0 %v859
    %879 = vmatprep.subr.bf16.mxu0 0
    %880 = vmatpush2.bf16.msra.mxu0 0
    %881 = vmatprep.subr.bf16.mxu0 0
    %882 = vmatpush2.bf16.msra.mxu0 0
    %883 = vmatprep.subr.bf16.mxu0 0
    %884 = vmatpush2.bf16.msra.mxu0 0
    %885 = vmatprep.subr.bf16.mxu0 0
    %886 = vmatpush2.bf16.msra.mxu0 0
    %887 = vmatprep.subr.bf16.mxu0 0
    %888 = vmatpush2.bf16.msra.mxu0 0
    %889 = vmatprep.subr.bf16.mxu0 0
    %890 = vmatpush2.bf16.msra.mxu0 0
    %891 = vmatprep.subr.bf16.mxu0 0
    %892 = vmatpush2.bf16.msra.mxu0 0
    %893 = vmatprep.subr.bf16.mxu0 0
    %894 = vmatpush2.bf16.msra.mxu0 0
    %895 = vmatprep.mubr.bf16.mxu0 0
    %896 = vmatmul.mubr.bf16.gmra.mxu0 %v604
    %v897 = vpop.f32.mrf.mxu0
    %v898 = vadd.f32 %v577, %v897
    %v899 = vpop.f32.mrf.mxu0
    %v900 = vpop.f32.mrf.mxu0
    %v901 = vpop.f32.mrf.mxu0
    %902 = vdwg.mxu0
    %v903 = vadd.f32 %v850, %v898
    %v904 = vxor.u32 %v903, 2147483648
    %v905 = vmul.f32 %v904, 1.442695
    %v906 = vpow.pop %v905
    %v907 = vadd.f32 %v906, 1.0
    %v908 = vrcp.pop %v907
    %v909 = vmul.f32 1.0, %v908
    %911 = vrot.lane.b32.xlu0 %v898, 64
    %v912 = vpop.permute.xlu0 %911
    %v914 = vmul.f32 %v909, %v912
    %916 = vrot.lane.b32.xlu0 %v914, 64
    %v917 = vpop.permute.xlu0 %916
    %v919 = vadd.f32 %v850, %v917
    %v920 = vtanh.pop %v919
    %v921 = vsub.f32 1.0, %v909
    %923 = vrot.lane.b32.xlu0 %v920, 96
    %v924 = vpop.permute.xlu0 %923
    %v926 = vmul.f32 %v921, %v924
    %928 = vrot.lane.b32.xlu0 %v211, 32
    %v929 = vpop.permute.xlu0 %928
    %v931 = vmul.f32 %v909, %v929
    %v932 = vadd.f32 %v926, %v931
    %934 = vrot.lane.b32.xlu0 %v932, 96
    %v935 = vpop.permute.xlu0 %934
    %vm937 = vcmask 254976
    %938 = vst.msk [vmem:[#allocation2] sm:$0x3] %vm937, %v935
    %v939 = vpack.c.bf16 %v932, %v932
    %941 = vrot.lane.b32.xlu0 %v939, 96
    %v942 = vpop.permute.xlu0 %941
    %v944 = vsel %vm246, %v942, 0
    %946 = vmatprep.subr.bf16.mxu0 0
    %947 = vmatpush1.bf16.msra.mxu0 0
    %948 = vmatprep.subr.bf16.mxu0 0
    %949 = vmatpush1.bf16.msra.mxu0 0
    %950 = vmatprep.subr.bf16.mxu0 0
    %951 = vmatpush1.bf16.msra.mxu0 0
    %952 = vmatprep.subr.bf16.mxu0 0
    %953 = vmatpush1.bf16.msra.mxu0 0
    %954 = vmatprep.subr.bf16.mxu0 0
    %955 = vmatpush1.bf16.msra.mxu0 0
    %956 = vmatprep.subr.bf16.mxu0 0
    %957 = vmatpush1.bf16.msra.mxu0 0
    %958 = vmatprep.subr.bf16.mxu0 0
    %959 = vmatpush1.bf16.msra.mxu0 %v600
    %960 = vmatprep.subr.bf16.mxu0 0
    %961 = vmatpush1.bf16.msra.mxu0 %v599
    %962 = vmatprep.subr.bf16.mxu0 0
    %963 = vmatpush2.bf16.msra.mxu0 0
    %964 = vmatprep.subr.bf16.mxu0 0
    %965 = vmatpush2.bf16.msra.mxu0 0
    %966 = vmatprep.subr.bf16.mxu0 0
    %967 = vmatpush2.bf16.msra.mxu0 0
    %968 = vmatprep.subr.bf16.mxu0 0
    %969 = vmatpush2.bf16.msra.mxu0 0
    %970 = vmatprep.subr.bf16.mxu0 0
    %971 = vmatpush2.bf16.msra.mxu0 0
    %972 = vmatprep.subr.bf16.mxu0 0
    %973 = vmatpush2.bf16.msra.mxu0 0
    %974 = vmatprep.subr.bf16.mxu0 0
    %975 = vmatpush2.bf16.msra.mxu0 0
    %976 = vmatprep.subr.bf16.mxu0 0
    %977 = vmatpush2.bf16.msra.mxu0 0
    %978 = vmatprep.mubr.bf16.mxu0 0
    %979 = vmatmul.mubr.bf16.gmra.mxu0 %v944
    %v980 = vpop.f32.mrf.mxu0
    %v981 = vadd.f32 %v572, %v980
    %v982 = vpop.f32.mrf.mxu0
    %v983 = vpop.f32.mrf.mxu0
    %v984 = vpop.f32.mrf.mxu0
    %985 = vdwg.mxu0
    %v986 = vtanh.pop %v981
    %v987 = vpack.c.bf16 %v986, %v986
    %v989 = vsel %vm246, %v987, 0
    %991 = vmatprep.subr.bf16.mxu0 0
    %992 = vmatpush1.bf16.xpose.msra.mxu0 0
    %993 = vmatprep.subr.bf16.mxu0 0
    %994 = vmatpush1.bf16.xpose.msra.mxu0 0
    %995 = vmatprep.subr.bf16.mxu0 0
    %996 = vmatpush1.bf16.xpose.msra.mxu0 0
    %997 = vmatprep.subr.bf16.mxu0 0
    %998 = vmatpush1.bf16.xpose.msra.mxu0 0
    %999 = vmatprep.subr.bf16.mxu0 0
    %1000 = vmatpush1.bf16.xpose.msra.mxu0 0
    %1001 = vmatprep.subr.bf16.mxu0 0
    %1002 = vmatpush1.bf16.xpose.msra.mxu0 0
    %1003 = vmatprep.subr.bf16.mxu0 0
    %1004 = vmatpush1.bf16.xpose.msra.mxu0 0
    %1005 = vmatprep.subr.bf16.mxu0 0
    %1006 = vmatpush1.bf16.xpose.msra.mxu0 %v652
    %1007 = vmatprep.subr.bf16.mxu0 0
    %1008 = vmatpush2.bf16.xpose.msra.mxu0 0
    %1009 = vmatprep.subr.bf16.mxu0 0
    %1010 = vmatpush2.bf16.xpose.msra.mxu0 0
    %1011 = vmatprep.subr.bf16.mxu0 0
    %1012 = vmatpush2.bf16.xpose.msra.mxu0 0
    %1013 = vmatprep.subr.bf16.mxu0 0
    %1014 = vmatpush2.bf16.xpose.msra.mxu0 0
    %1015 = vmatprep.subr.bf16.mxu0 0
    %1016 = vmatpush2.bf16.xpose.msra.mxu0 0
    %1017 = vmatprep.subr.bf16.mxu0 0
    %1018 = vmatpush2.bf16.xpose.msra.mxu0 0
    %1019 = vmatprep.subr.bf16.mxu0 0
    %1020 = vmatpush2.bf16.xpose.msra.mxu0 0
    %1021 = vmatprep.subr.bf16.mxu0 0
    %1022 = vmatpush2.bf16.xpose.msra.mxu0 0
    %1023 = vmatprep.mubr.bf16.mxu0 0
    %1024 = vmatmul.mubr.bf16.gmra.mxu0 %v989
    %v1025 = vpop.f32.mrf.mxu0
    %v1026 = vadd.f32 0.0, %v1025
    %v1027 = vpop.f32.mrf.mxu0
    %v1028 = vpop.f32.mrf.mxu0
    %v1029 = vpop.f32.mrf.mxu0
    %1030 = vdwg.mxu0
    %v1031 = vsub.f32 %v1026, 32.0
    %v1032 = vmul.f32 %v1031, 1.442695
    %v1033 = vpow.pop %v1032
    %v1034 = vmul.f32 %v1033, %v589
    %v1035 = vsel %vm698, %v1034, 0.0
    %1036 = vadd.xlane.f32.xlu0 %v1035
    %v1037 = vpop.xlane.xlu0 %1036
    %v1038 = vrcp.pop %v1037
    %v1039 = vmul.f32 %v1034, %v1038
    %v1040 = vpack.c.bf16 %v1039, %v1039
    %1042 = vrot.lane.b32.xlu0 %v987, 96
    %v1043 = vpop.permute.xlu0 %1042
    %v1045 = vsel %vm246, %v1043, 0
    %1047 = vmatprep.subr.bf16.mxu0 0
    %1048 = vmatpush1.bf16.xpose.msra.mxu0 0
    %1049 = vmatprep.subr.bf16.mxu0 0
    %1050 = vmatpush1.bf16.xpose.msra.mxu0 0
    %1051 = vmatprep.subr.bf16.mxu0 0
    %1052 = vmatpush1.bf16.xpose.msra.mxu0 0
    %1053 = vmatprep.subr.bf16.mxu0 0
    %1054 = vmatpush1.bf16.xpose.msra.mxu0 0
    %1055 = vmatprep.subr.bf16.mxu0 0
    %1056 = vmatpush1.bf16.xpose.msra.mxu0 0
    %1057 = vmatprep.subr.bf16.mxu0 0
    %1058 = vmatpush1.bf16.xpose.msra.mxu0 0
    %1059 = vmatprep.subr.bf16.mxu0 0
    %1060 = vmatpush1.bf16.xpose.msra.mxu0 0
    %1061 = vmatprep.subr.bf16.mxu0 0
    %1062 = vmatpush1.bf16.xpose.msra.mxu0 %v712
    %1063 = vmatprep.subr.bf16.mxu0 0
    %1064 = vmatpush2.bf16.xpose.msra.mxu0 0
    %1065 = vmatprep.subr.bf16.mxu0 0
    %1066 = vmatpush2.bf16.xpose.msra.mxu0 0
    %1067 = vmatprep.subr.bf16.mxu0 0
    %1068 = vmatpush2.bf16.xpose.msra.mxu0 0
    %1069 = vmatprep.subr.bf16.mxu0 0
    %1070 = vmatpush2.bf16.xpose.msra.mxu0 0
    %1071 = vmatprep.subr.bf16.mxu0 0
    %1072 = vmatpush2.bf16.xpose.msra.mxu0 0
    %1073 = vmatprep.subr.bf16.mxu0 0
    %1074 = vmatpush2.bf16.xpose.msra.mxu0 0
    %1075 = vmatprep.subr.bf16.mxu0 0
    %1076 = vmatpush2.bf16.xpose.msra.mxu0 0
    %1077 = vmatprep.subr.bf16.mxu0 0
    %1078 = vmatpush2.bf16.xpose.msra.mxu0 0
    %1079 = vmatprep.mubr.bf16.mxu0 0
    %1080 = vmatmul.mubr.bf16.gmra.mxu0 %v1045
    %v1081 = vpop.f32.mrf.mxu0
    %v1082 = vadd.f32 0.0, %v1081
    %v1083 = vpop.f32.mrf.mxu0
    %v1084 = vpop.f32.mrf.mxu0
    %v1085 = vpop.f32.mrf.mxu0
    %1086 = vdwg.mxu0
    %v1087 = vsub.f32 %v1082, 32.0
    %v1088 = vmul.f32 %v1087, 1.442695
    %v1089 = vpow.pop %v1088
    %v1090 = vmul.f32 %v1089, %v589
    %v1091 = vsel %vm698, %v1090, 0.0
    %1092 = vadd.xlane.f32.xlu0 %v1091
    %v1093 = vpop.xlane.xlu0 %1092
    %v1094 = vrcp.pop %v1093
    %v1095 = vmul.f32 %v1090, %v1094
    %v1096 = vpack.c.bf16 %v1095, %v1095
    %v1098 = vsel %vm515, %v1096, 0
    %1100 = vmatprep.subr.bf16.mxu0 0
    %1101 = vmatpush1.bf16.msra.mxu0 0
    %1102 = vmatprep.subr.bf16.mxu0 0
    %1103 = vmatpush1.bf16.msra.mxu0 0
    %1104 = vmatprep.subr.bf16.mxu0 0
    %1105 = vmatpush1.bf16.msra.mxu0 0
    %1106 = vmatprep.subr.bf16.mxu0 0
    %1107 = vmatpush1.bf16.msra.mxu0 0
    %1108 = vmatprep.subr.bf16.mxu0 0
    %1109 = vmatpush1.bf16.msra.mxu0 0
    %1110 = vmatprep.subr.bf16.mxu0 0
    %1111 = vmatpush1.bf16.msra.mxu0 0
    %1112 = vmatprep.subr.bf16.mxu0 0
    %1113 = vmatpush1.bf16.msra.mxu0 0
    %1114 = vmatprep.subr.bf16.mxu0 0
    %1115 = vmatpush1.bf16.msra.mxu0 %v494
    %1116 = vmatprep.subr.bf16.mxu0 0
    %1117 = vmatpush2.bf16.msra.mxu0 0
    %1118 = vmatprep.subr.bf16.mxu0 0
    %1119 = vmatpush2.bf16.msra.mxu0 0
    %1120 = vmatprep.subr.bf16.mxu0 0
    %1121 = vmatpush2.bf16.msra.mxu0 0
    %1122 = vmatprep.subr.bf16.mxu0 0
    %1123 = vmatpush2.bf16.msra.mxu0 0
    %1124 = vmatprep.subr.bf16.mxu0 0
    %1125 = vmatpush2.bf16.msra.mxu0 0
    %1126 = vmatprep.subr.bf16.mxu0 0
    %1127 = vmatpush2.bf16.msra.mxu0 0
    %1128 = vmatprep.subr.bf16.mxu0 0
    %1129 = vmatpush2.bf16.msra.mxu0 0
    %1130 = vmatprep.subr.bf16.mxu0 0
    %1131 = vmatpush2.bf16.msra.mxu0 0
    %1132 = vmatprep.mubr.bf16.mxu0 0
    %1133 = vmatmul.mubr.bf16.gmra.mxu0 %v1098
    %v1134 = vpop.f32.mrf.mxu0
    %v1135 = vadd.f32 0.0, %v1134
    %v1136 = vpop.f32.mrf.mxu0
    %v1137 = vpop.f32.mrf.mxu0
    %v1138 = vpop.f32.mrf.mxu0
    %1139 = vdwg.mxu0
    %v1141 = vsel %vm515, %v1040, 0
    %1143 = vmatprep.subr.bf16.mxu0 0
    %1144 = vmatpush1.bf16.msra.mxu0 0
    %1145 = vmatprep.subr.bf16.mxu0 0
    %1146 = vmatpush1.bf16.msra.mxu0 0
    %1147 = vmatprep.subr.bf16.mxu0 0
    %1148 = vmatpush1.bf16.msra.mxu0 0
    %1149 = vmatprep.subr.bf16.mxu0 0
    %1150 = vmatpush1.bf16.msra.mxu0 0
    %1151 = vmatprep.subr.bf16.mxu0 0
    %1152 = vmatpush1.bf16.msra.mxu0 0
    %1153 = vmatprep.subr.bf16.mxu0 0
    %1154 = vmatpush1.bf16.msra.mxu0 0
    %1155 = vmatprep.subr.bf16.mxu0 0
    %1156 = vmatpush1.bf16.msra.mxu0 0
    %1157 = vmatprep.subr.bf16.mxu0 0
    %1158 = vmatpush1.bf16.msra.mxu0 %v430
    %1159 = vmatprep.subr.bf16.mxu0 0
    %1160 = vmatpush2.bf16.msra.mxu0 0
    %1161 = vmatprep.subr.bf16.mxu0 0
    %1162 = vmatpush2.bf16.msra.mxu0 0
    %1163 = vmatprep.subr.bf16.mxu0 0
    %1164 = vmatpush2.bf16.msra.mxu0 0
    %1165 = vmatprep.subr.bf16.mxu0 0
    %1166 = vmatpush2.bf16.msra.mxu0 0
    %1167 = vmatprep.subr.bf16.mxu0 0
    %1168 = vmatpush2.bf16.msra.mxu0 0
    %1169 = vmatprep.subr.bf16.mxu0 0
    %1170 = vmatpush2.bf16.msra.mxu0 0
    %1171 = vmatprep.subr.bf16.mxu0 0
    %1172 = vmatpush2.bf16.msra.mxu0 0
    %1173 = vmatprep.subr.bf16.mxu0 0
    %1174 = vmatpush2.bf16.msra.mxu0 0
    %1175 = vmatprep.mubr.bf16.mxu0 0
    %1176 = vmatmul.mubr.bf16.gmra.mxu0 %v1141
    %v1177 = vpop.f32.mrf.mxu0
    %v1178 = vadd.f32 %v1135, %v1177
    %v1179 = vpop.f32.mrf.mxu0
    %v1180 = vpop.f32.mrf.mxu0
    %v1181 = vpop.f32.mrf.mxu0
    %1182 = vdwg.mxu0
    %v1184 = vrot.slane %v1178, 6
    %v1186 = vadd.f32 %v554, %v1184
    %1187 = vmatprep.subr.bf16.mxu0 0
    %1188 = vmatpush1.bf16.msra.mxu0 0
    %1189 = vmatprep.subr.bf16.mxu0 0
    %1190 = vmatpush1.bf16.msra.mxu0 0
    %1191 = vmatprep.subr.bf16.mxu0 0
    %1192 = vmatpush1.bf16.msra.mxu0 0
    %1193 = vmatprep.subr.bf16.mxu0 0
    %1194 = vmatpush1.bf16.msra.mxu0 0
    %1195 = vmatprep.subr.bf16.mxu0 0
    %1196 = vmatpush1.bf16.msra.mxu0 0
    %1197 = vmatprep.subr.bf16.mxu0 0
    %1198 = vmatpush1.bf16.msra.mxu0 0
    %1199 = vmatprep.subr.bf16.mxu0 0
    %1200 = vmatpush1.bf16.msra.mxu0 %v860
    %1201 = vmatprep.subr.bf16.mxu0 0
    %1202 = vmatpush1.bf16.msra.mxu0 %v859
    %1203 = vmatprep.subr.bf16.mxu0 0
    %1204 = vmatpush2.bf16.msra.mxu0 0
    %1205 = vmatprep.subr.bf16.mxu0 0
    %1206 = vmatpush2.bf16.msra.mxu0 0
    %1207 = vmatprep.subr.bf16.mxu0 0
    %1208 = vmatpush2.bf16.msra.mxu0 0
    %1209 = vmatprep.subr.bf16.mxu0 0
    %1210 = vmatpush2.bf16.msra.mxu0 0
    %1211 = vmatprep.subr.bf16.mxu0 0
    %1212 = vmatpush2.bf16.msra.mxu0 0
    %1213 = vmatprep.subr.bf16.mxu0 0
    %1214 = vmatpush2.bf16.msra.mxu0 0
    %1215 = vmatprep.subr.bf16.mxu0 0
    %1216 = vmatpush2.bf16.msra.mxu0 0
    %1217 = vmatprep.subr.bf16.mxu0 0
    %1218 = vmatpush2.bf16.msra.mxu0 0
    %1219 = vmatprep.mubr.bf16.mxu0 0
    %1220 = vmatmul.mubr.bf16.gmra.mxu0 %v944
    %v1221 = vpop.f32.mrf.mxu0
    %v1222 = vadd.f32 %v577, %v1221
    %v1223 = vpop.f32.mrf.mxu0
    %v1224 = vpop.f32.mrf.mxu0
    %v1225 = vpop.f32.mrf.mxu0
    %1226 = vdwg.mxu0
    %v1228 = vrot.slane %v1222, 6
    %v1230 = vadd.f32 %v1186, %v1228
    %v1231 = vxor.u32 %v1230, 2147483648
    %v1232 = vmul.f32 %v1231, 1.442695
    %v1233 = vpow.pop %v1232
    %v1234 = vadd.f32 %v1233, 1.0
    %v1235 = vrcp.pop %v1234
    %v1236 = vmul.f32 1.0, %v1235
    %1237 = vrot.lane.b32.xlu0 %v1228, 64
    %v1238 = vpop.permute.xlu0 %1237
    %v1240 = vmul.f32 %v1236, %v1238
    %1242 = vrot.lane.b32.xlu0 %v1240, 64
    %v1243 = vpop.permute.xlu0 %1242
    %v1245 = vadd.f32 %v1186, %v1243
    %v1246 = vtanh.pop %v1245
    %v1247 = vsub.f32 1.0, %v1236
    %1249 = vrot.lane.b32.xlu0 %v1246, 96
    %v1250 = vpop.permute.xlu0 %1249
    %v1252 = vmul.f32 %v1247, %v1250
    %v1253 = vrot.slane %v932, 6
    %v1255 = vmul.f32 %v1236, %v1253
    %v1256 = vadd.f32 %v1252, %v1255
    %1258 = vrot.lane.b32.xlu0 %v1256, 96
    %v1259 = vpop.permute.xlu0 %1258
    %vm1261 = vcmask 257026
    %1262 = vst.msk [vmem:[#allocation2] sm:$0xc] %vm1261, %v1259
    %v1263 = vpack.c.bf16 %v1256, %v1256
    %v1265 = vrot.slane %v1263, 1
    %1266 = vrot.lane.b32.xlu0 %v1265, 96
    %v1267 = vpop.permute.xlu0 %1266
    %v1269 = vsel %vm246, %v1267, 0
    %1271 = vmatprep.subr.bf16.mxu0 0
    %1272 = vmatpush1.bf16.msra.mxu0 0
    %1273 = vmatprep.subr.bf16.mxu0 0
    %1274 = vmatpush1.bf16.msra.mxu0 0
    %1275 = vmatprep.subr.bf16.mxu0 0
    %1276 = vmatpush1.bf16.msra.mxu0 0
    %1277 = vmatprep.subr.bf16.mxu0 0
    %1278 = vmatpush1.bf16.msra.mxu0 0
    %1279 = vmatprep.subr.bf16.mxu0 0
    %1280 = vmatpush1.bf16.msra.mxu0 0
    %1281 = vmatprep.subr.bf16.mxu0 0
    %1282 = vmatpush1.bf16.msra.mxu0 0
    %1283 = vmatprep.subr.bf16.mxu0 0
    %1284 = vmatpush1.bf16.msra.mxu0 %v600
    %1285 = vmatprep.subr.bf16.mxu0 0
    %1286 = vmatpush1.bf16.msra.mxu0 %v599
    %1287 = vmatprep.subr.bf16.mxu0 0
    %1288 = vmatpush2.bf16.msra.mxu0 0
    %1289 = vmatprep.subr.bf16.mxu0 0
    %1290 = vmatpush2.bf16.msra.mxu0 0
    %1291 = vmatprep.subr.bf16.mxu0 0
    %1292 = vmatpush2.bf16.msra.mxu0 0
    %1293 = vmatprep.subr.bf16.mxu0 0
    %1294 = vmatpush2.bf16.msra.mxu0 0
    %1295 = vmatprep.subr.bf16.mxu0 0
    %1296 = vmatpush2.bf16.msra.mxu0 0
    %1297 = vmatprep.subr.bf16.mxu0 0
    %1298 = vmatpush2.bf16.msra.mxu0 0
    %1299 = vmatprep.subr.bf16.mxu0 0
    %1300 = vmatpush2.bf16.msra.mxu0 0
    %1301 = vmatprep.subr.bf16.mxu0 0
    %1302 = vmatpush2.bf16.msra.mxu0 0
    %1303 = vmatprep.mubr.bf16.mxu0 0
    %1304 = vmatmul.mubr.bf16.gmra.mxu0 %v1269
    %v1305 = vpop.f32.mrf.mxu0
    %v1306 = vadd.f32 %v572, %v1305
    %v1307 = vpop.f32.mrf.mxu0
    %v1308 = vpop.f32.mrf.mxu0
    %v1309 = vpop.f32.mrf.mxu0
    %1310 = vdwg.mxu0
    %v1311 = vtanh.pop %v1306
    %v1312 = vpack.c.bf16 %v1311, %v1311
    %v1314 = vsel %vm246, %v1312, 0
    %1316 = vmatprep.subr.bf16.mxu0 0
    %1317 = vmatpush1.bf16.xpose.msra.mxu0 0
    %1318 = vmatprep.subr.bf16.mxu0 0
    %1319 = vmatpush1.bf16.xpose.msra.mxu0 0
    %1320 = vmatprep.subr.bf16.mxu0 0
    %1321 = vmatpush1.bf16.xpose.msra.mxu0 0
    %1322 = vmatprep.subr.bf16.mxu0 0
    %1323 = vmatpush1.bf16.xpose.msra.mxu0 0
    %1324 = vmatprep.subr.bf16.mxu0 0
    %1325 = vmatpush1.bf16.xpose.msra.mxu0 0
    %1326 = vmatprep.subr.bf16.mxu0 0
    %1327 = vmatpush1.bf16.xpose.msra.mxu0 0
    %1328 = vmatprep.subr.bf16.mxu0 0
    %1329 = vmatpush1.bf16.xpose.msra.mxu0 0
    %1330 = vmatprep.subr.bf16.mxu0 0
    %1331 = vmatpush1.bf16.xpose.msra.mxu0 %v652
    %1332 = vmatprep.subr.bf16.mxu0 0
    %1333 = vmatpush2.bf16.xpose.msra.mxu0 0
    %1334 = vmatprep.subr.bf16.mxu0 0
    %1335 = vmatpush2.bf16.xpose.msra.mxu0 0
    %1336 = vmatprep.subr.bf16.mxu0 0
    %1337 = vmatpush2.bf16.xpose.msra.mxu0 0
    %1338 = vmatprep.subr.bf16.mxu0 0
    %1339 = vmatpush2.bf16.xpose.msra.mxu0 0
    %1340 = vmatprep.subr.bf16.mxu0 0
    %1341 = vmatpush2.bf16.xpose.msra.mxu0 0
    %1342 = vmatprep.subr.bf16.mxu0 0
    %1343 = vmatpush2.bf16.xpose.msra.mxu0 0
    %1344 = vmatprep.subr.bf16.mxu0 0
    %1345 = vmatpush2.bf16.xpose.msra.mxu0 0
    %1346 = vmatprep.subr.bf16.mxu0 0
    %1347 = vmatpush2.bf16.xpose.msra.mxu0 0
    %1348 = vmatprep.mubr.bf16.mxu0 0
    %1349 = vmatmul.mubr.bf16.gmra.mxu0 %v1314
    %v1350 = vpop.f32.mrf.mxu0
    %v1351 = vadd.f32 0.0, %v1350
    %v1352 = vpop.f32.mrf.mxu0
    %v1353 = vpop.f32.mrf.mxu0
    %v1354 = vpop.f32.mrf.mxu0
    %1355 = vdwg.mxu0
    %v1356 = vsub.f32 %v1351, 32.0
    %v1357 = vmul.f32 %v1356, 1.442695
    %v1358 = vpow.pop %v1357
    %v1359 = vmul.f32 %v1358, %v589
    %v1360 = vsel %vm698, %v1359, 0.0
    %1361 = vadd.xlane.f32.xlu0 %v1360
    %v1362 = vpop.xlane.xlu0 %1361
    %v1363 = vrcp.pop %v1362
    %v1364 = vmul.f32 %v1359, %v1363
    %v1365 = vpack.c.bf16 %v1364, %v1364
    %1367 = vrot.lane.b32.xlu0 %v1312, 96
    %v1368 = vpop.permute.xlu0 %1367
    %v1370 = vsel %vm246, %v1368, 0
    %1372 = vmatprep.subr.bf16.mxu0 0
    %1373 = vmatpush1.bf16.xpose.msra.mxu0 0
    %1374 = vmatprep.subr.bf16.mxu0 0
    %1375 = vmatpush1.bf16.xpose.msra.mxu0 0
    %1376 = vmatprep.subr.bf16.mxu0 0
    %1377 = vmatpush1.bf16.xpose.msra.mxu0 0
    %1378 = vmatprep.subr.bf16.mxu0 0
    %1379 = vmatpush1.bf16.xpose.msra.mxu0 0
    %1380 = vmatprep.subr.bf16.mxu0 0
    %1381 = vmatpush1.bf16.xpose.msra.mxu0 0
    %1382 = vmatprep.subr.bf16.mxu0 0
    %1383 = vmatpush1.bf16.xpose.msra.mxu0 0
    %1384 = vmatprep.subr.bf16.mxu0 0
    %1385 = vmatpush1.bf16.xpose.msra.mxu0 0
    %1386 = vmatprep.subr.bf16.mxu0 0
    %1387 = vmatpush1.bf16.xpose.msra.mxu0 %v712
    %1388 = vmatprep.subr.bf16.mxu0 0
    %1389 = vmatpush2.bf16.xpose.msra.mxu0 0
    %1390 = vmatprep.subr.bf16.mxu0 0
    %1391 = vmatpush2.bf16.xpose.msra.mxu0 0
    %1392 = vmatprep.subr.bf16.mxu0 0
    %1393 = vmatpush2.bf16.xpose.msra.mxu0 0
    %1394 = vmatprep.subr.bf16.mxu0 0
    %1395 = vmatpush2.bf16.xpose.msra.mxu0 0
    %1396 = vmatprep.subr.bf16.mxu0 0
    %1397 = vmatpush2.bf16.xpose.msra.mxu0 0
    %1398 = vmatprep.subr.bf16.mxu0 0
    %1399 = vmatpush2.bf16.xpose.msra.mxu0 0
    %1400 = vmatprep.subr.bf16.mxu0 0
    %1401 = vmatpush2.bf16.xpose.msra.mxu0 0
    %1402 = vmatprep.subr.bf16.mxu0 0
    %1403 = vmatpush2.bf16.xpose.msra.mxu0 0
    %1404 = vmatprep.mubr.bf16.mxu0 0
    %1405 = vmatmul.mubr.bf16.gmra.mxu0 %v1370
    %v1406 = vpop.f32.mrf.mxu0
    %v1407 = vadd.f32 0.0, %v1406
    %v1408 = vpop.f32.mrf.mxu0
    %v1409 = vpop.f32.mrf.mxu0
    %v1410 = vpop.f32.mrf.mxu0
    %1411 = vdwg.mxu0
    %v1412 = vsub.f32 %v1407, 32.0
    %v1413 = vmul.f32 %v1412, 1.442695
    %v1414 = vpow.pop %v1413
    %v1415 = vmul.f32 %v1414, %v589
    %v1416 = vsel %vm698, %v1415, 0.0
    %1417 = vadd.xlane.f32.xlu0 %v1416
    %v1418 = vpop.xlane.xlu0 %1417
    %v1419 = vrcp.pop %v1418
    %v1420 = vmul.f32 %v1415, %v1419
    %v1421 = vpack.c.bf16 %v1420, %v1420
    %v1423 = vsel %vm515, %v1421, 0
    %1425 = vmatprep.subr.bf16.mxu0 0
    %1426 = vmatpush1.bf16.msra.mxu0 0
    %1427 = vmatprep.subr.bf16.mxu0 0
    %1428 = vmatpush1.bf16.msra.mxu0 0
    %1429 = vmatprep.subr.bf16.mxu0 0
    %1430 = vmatpush1.bf16.msra.mxu0 0
    %1431 = vmatprep.subr.bf16.mxu0 0
    %1432 = vmatpush1.bf16.msra.mxu0 0
    %1433 = vmatprep.subr.bf16.mxu0 0
    %1434 = vmatpush1.bf16.msra.mxu0 0
    %1435 = vmatprep.subr.bf16.mxu0 0
    %1436 = vmatpush1.bf16.msra.mxu0 0
    %1437 = vmatprep.subr.bf16.mxu0 0
    %1438 = vmatpush1.bf16.msra.mxu0 0
    %1439 = vmatprep.subr.bf16.mxu0 0
    %1440 = vmatpush1.bf16.msra.mxu0 %v494
    %1441 = vmatprep.subr.bf16.mxu0 0
    %1442 = vmatpush2.bf16.msra.mxu0 0
    %1443 = vmatprep.subr.bf16.mxu0 0
    %1444 = vmatpush2.bf16.msra.mxu0 0
    %1445 = vmatprep.subr.bf16.mxu0 0
    %1446 = vmatpush2.bf16.msra.mxu0 0
    %1447 = vmatprep.subr.bf16.mxu0 0
    %1448 = vmatpush2.bf16.msra.mxu0 0
    %1449 = vmatprep.subr.bf16.mxu0 0
    %1450 = vmatpush2.bf16.msra.mxu0 0
    %1451 = vmatprep.subr.bf16.mxu0 0
    %1452 = vmatpush2.bf16.msra.mxu0 0
    %1453 = vmatprep.subr.bf16.mxu0 0
    %1454 = vmatpush2.bf16.msra.mxu0 0
    %1455 = vmatprep.subr.bf16.mxu0 0
    %1456 = vmatpush2.bf16.msra.mxu0 0
    %1457 = vmatprep.mubr.bf16.mxu0 0
    %1458 = vmatmul.mubr.bf16.gmra.mxu0 %v1423
    %v1459 = vpop.f32.mrf.mxu0
    %v1460 = vadd.f32 0.0, %v1459
    %v1461 = vpop.f32.mrf.mxu0
    %v1462 = vpop.f32.mrf.mxu0
    %v1463 = vpop.f32.mrf.mxu0
    %1464 = vdwg.mxu0
    %v1466 = vsel %vm515, %v1365, 0
    %1468 = vmatprep.subr.bf16.mxu0 0
    %1469 = vmatpush1.bf16.msra.mxu0 0
    %1470 = vmatprep.subr.bf16.mxu0 0
    %1471 = vmatpush1.bf16.msra.mxu0 0
    %1472 = vmatprep.subr.bf16.mxu0 0
    %1473 = vmatpush1.bf16.msra.mxu0 0
    %1474 = vmatprep.subr.bf16.mxu0 0
    %1475 = vmatpush1.bf16.msra.mxu0 0
    %1476 = vmatprep.subr.bf16.mxu0 0
    %1477 = vmatpush1.bf16.msra.mxu0 0
    %1478 = vmatprep.subr.bf16.mxu0 0
    %1479 = vmatpush1.bf16.msra.mxu0 0
    %1480 = vmatprep.subr.bf16.mxu0 0
    %1481 = vmatpush1.bf16.msra.mxu0 0
    %1482 = vmatprep.subr.bf16.mxu0 0
    %1483 = vmatpush1.bf16.msra.mxu0 %v430
    %1484 = vmatprep.subr.bf16.mxu0 0
    %1485 = vmatpush2.bf16.msra.mxu0 0
    %1486 = vmatprep.subr.bf16.mxu0 0
    %1487 = vmatpush2.bf16.msra.mxu0 0
    %1488 = vmatprep.subr.bf16.mxu0 0
    %1489 = vmatpush2.bf16.msra.mxu0 0
    %1490 = vmatprep.subr.bf16.mxu0 0
    %1491 = vmatpush2.bf16.msra.mxu0 0
    %1492 = vmatprep.subr.bf16.mxu0 0
    %1493 = vmatpush2.bf16.msra.mxu0 0
    %1494 = vmatprep.subr.bf16.mxu0 0
    %1495 = vmatpush2.bf16.msra.mxu0 0
    %1496 = vmatprep.subr.bf16.mxu0 0
    %1497 = vmatpush2.bf16.msra.mxu0 0
    %1498 = vmatprep.subr.bf16.mxu0 0
    %1499 = vmatpush2.bf16.msra.mxu0 0
    %1500 = vmatprep.mubr.bf16.mxu0 0
    %1501 = vmatmul.mubr.bf16.gmra.mxu0 %v1466
    %v1502 = vpop.f32.mrf.mxu0
    %v1503 = vadd.f32 %v1460, %v1502
    %v1504 = vpop.f32.mrf.mxu0
    %v1505 = vpop.f32.mrf.mxu0
    %v1506 = vpop.f32.mrf.mxu0
    %1507 = vdwg.mxu0
    %v1509 = vrot.slane %v1503, 4
    %v1511 = vadd.f32 %v554, %v1509
    %1512 = vmatprep.subr.bf16.mxu0 0
    %1513 = vmatpush1.bf16.msra.mxu0 0
    %1514 = vmatprep.subr.bf16.mxu0 0
    %1515 = vmatpush1.bf16.msra.mxu0 0
    %1516 = vmatprep.subr.bf16.mxu0 0
    %1517 = vmatpush1.bf16.msra.mxu0 0
    %1518 = vmatprep.subr.bf16.mxu0 0
    %1519 = vmatpush1.bf16.msra.mxu0 0
    %1520 = vmatprep.subr.bf16.mxu0 0
    %1521 = vmatpush1.bf16.msra.mxu0 0
    %1522 = vmatprep.subr.bf16.mxu0 0
    %1523 = vmatpush1.bf16.msra.mxu0 0
    %1524 = vmatprep.subr.bf16.mxu0 0
    %1525 = vmatpush1.bf16.msra.mxu0 %v860
    %1526 = vmatprep.subr.bf16.mxu0 0
    %1527 = vmatpush1.bf16.msra.mxu0 %v859
    %1528 = vmatprep.subr.bf16.mxu0 0
    %1529 = vmatpush2.bf16.msra.mxu0 0
    %1530 = vmatprep.subr.bf16.mxu0 0
    %1531 = vmatpush2.bf16.msra.mxu0 0
    %1532 = vmatprep.subr.bf16.mxu0 0
    %1533 = vmatpush2.bf16.msra.mxu0 0
    %1534 = vmatprep.subr.bf16.mxu0 0
    %1535 = vmatpush2.bf16.msra.mxu0 0
    %1536 = vmatprep.subr.bf16.mxu0 0
    %1537 = vmatpush2.bf16.msra.mxu0 0
    %1538 = vmatprep.subr.bf16.mxu0 0
    %1539 = vmatpush2.bf16.msra.mxu0 0
    %1540 = vmatprep.subr.bf16.mxu0 0
    %1541 = vmatpush2.bf16.msra.mxu0 0
    %1542 = vmatprep.subr.bf16.mxu0 0
    %1543 = vmatpush2.bf16.msra.mxu0 0
    %1544 = vmatprep.mubr.bf16.mxu0 0
    %1545 = vmatmul.mubr.bf16.gmra.mxu0 %v1269
    %v1546 = vpop.f32.mrf.mxu0
    %v1547 = vadd.f32 %v577, %v1546
    %v1548 = vpop.f32.mrf.mxu0
    %v1549 = vpop.f32.mrf.mxu0
    %v1550 = vpop.f32.mrf.mxu0
    %1551 = vdwg.mxu0
    %v1553 = vrot.slane %v1547, 4
    %v1555 = vadd.f32 %v1511, %v1553
    %v1556 = vxor.u32 %v1555, 2147483648
    %v1557 = vmul.f32 %v1556, 1.442695
    %v1558 = vpow.pop %v1557
    %v1559 = vadd.f32 %v1558, 1.0
    %v1560 = vrcp.pop %v1559
    %v1561 = vmul.f32 1.0, %v1560
    %1562 = vrot.lane.b32.xlu0 %v1553, 64
    %v1563 = vpop.permute.xlu0 %1562
    %v1565 = vmul.f32 %v1561, %v1563
    %1567 = vrot.lane.b32.xlu0 %v1565, 64
    %v1568 = vpop.permute.xlu0 %1567
    %v1570 = vadd.f32 %v1511, %v1568
    %v1571 = vtanh.pop %v1570
    %v1572 = vsub.f32 1.0, %v1561
    %1574 = vrot.lane.b32.xlu0 %v1571, 96
    %v1575 = vpop.permute.xlu0 %1574
    %v1577 = vmul.f32 %v1572, %v1575
    %v1578 = vrot.slane %v1256, 6
    %v1580 = vmul.f32 %v1561, %v1578
    %v1581 = vadd.f32 %v1577, %v1580
    %1583 = vrot.lane.b32.xlu0 %v1581, 96
    %v1584 = vpop.permute.xlu0 %1583
    %vm1586 = vcmask 259076
    %1587 = vst.msk [vmem:[#allocation2] sm:$0x30] %vm1586, %v1584
    %v1588 = vpack.c.bf16 %v1581, %v1581
    %v1590 = vrot.slane %v1588, 2
    %1591 = vrot.lane.b32.xlu0 %v1590, 96
    %v1592 = vpop.permute.xlu0 %1591
    %v1594 = vsel %vm246, %v1592, 0
    %1596 = vmatprep.subr.bf16.mxu0 0
    %1597 = vmatpush1.bf16.msra.mxu0 0
    %1598 = vmatprep.subr.bf16.mxu0 0
    %1599 = vmatpush1.bf16.msra.mxu0 0
    %1600 = vmatprep.subr.bf16.mxu0 0
    %1601 = vmatpush1.bf16.msra.mxu0 0
    %1602 = vmatprep.subr.bf16.mxu0 0
    %1603 = vmatpush1.bf16.msra.mxu0 0
    %1604 = vmatprep.subr.bf16.mxu0 0
    %1605 = vmatpush1.bf16.msra.mxu0 0
    %1606 = vmatprep.subr.bf16.mxu0 0
    %1607 = vmatpush1.bf16.msra.mxu0 0
    %1608 = vmatprep.subr.bf16.mxu0 0
    %1609 = vmatpush1.bf16.msra.mxu0 %v600
    %1610 = vmatprep.subr.bf16.mxu0 0
    %1611 = vmatpush1.bf16.msra.mxu0 %v599
    %1612 = vmatprep.subr.bf16.mxu0 0
    %1613 = vmatpush2.bf16.msra.mxu0 0
    %1614 = vmatprep.subr.bf16.mxu0 0
    %1615 = vmatpush2.bf16.msra.mxu0 0
    %1616 = vmatprep.subr.bf16.mxu0 0
    %1617 = vmatpush2.bf16.msra.mxu0 0
    %1618 = vmatprep.subr.bf16.mxu0 0
    %1619 = vmatpush2.bf16.msra.mxu0 0
    %1620 = vmatprep.subr.bf16.mxu0 0
    %1621 = vmatpush2.bf16.msra.mxu0 0
    %1622 = vmatprep.subr.bf16.mxu0 0
    %1623 = vmatpush2.bf16.msra.mxu0 0
    %1624 = vmatprep.subr.bf16.mxu0 0
    %1625 = vmatpush2.bf16.msra.mxu0 0
    %1626 = vmatprep.subr.bf16.mxu0 0
    %1627 = vmatpush2.bf16.msra.mxu0 0
    %1628 = vmatprep.mubr.bf16.mxu0 0
    %1629 = vmatmul.mubr.bf16.gmra.mxu0 %v1594
    %v1630 = vpop.f32.mrf.mxu0
    %v1631 = vadd.f32 %v572, %v1630
    %v1632 = vpop.f32.mrf.mxu0
    %v1633 = vpop.f32.mrf.mxu0
    %v1634 = vpop.f32.mrf.mxu0
    %1635 = vdwg.mxu0
    %v1636 = vtanh.pop %v1631
    %v1637 = vpack.c.bf16 %v1636, %v1636
    %v1639 = vsel %vm246, %v1637, 0
    %1641 = vmatprep.subr.bf16.mxu0 0
    %1642 = vmatpush1.bf16.xpose.msra.mxu0 0
    %1643 = vmatprep.subr.bf16.mxu0 0
    %1644 = vmatpush1.bf16.xpose.msra.mxu0 0
    %1645 = vmatprep.subr.bf16.mxu0 0
    %1646 = vmatpush1.bf16.xpose.msra.mxu0 0
    %1647 = vmatprep.subr.bf16.mxu0 0
    %1648 = vmatpush1.bf16.xpose.msra.mxu0 0
    %1649 = vmatprep.subr.bf16.mxu0 0
    %1650 = vmatpush1.bf16.xpose.msra.mxu0 0
    %1651 = vmatprep.subr.bf16.mxu0 0
    %1652 = vmatpush1.bf16.xpose.msra.mxu0 0
    %1653 = vmatprep.subr.bf16.mxu0 0
    %1654 = vmatpush1.bf16.xpose.msra.mxu0 0
    %1655 = vmatprep.subr.bf16.mxu0 0
    %1656 = vmatpush1.bf16.xpose.msra.mxu0 %v652
    %1657 = vmatprep.subr.bf16.mxu0 0
    %1658 = vmatpush2.bf16.xpose.msra.mxu0 0
    %1659 = vmatprep.subr.bf16.mxu0 0
    %1660 = vmatpush2.bf16.xpose.msra.mxu0 0
    %1661 = vmatprep.subr.bf16.mxu0 0
    %1662 = vmatpush2.bf16.xpose.msra.mxu0 0
    %1663 = vmatprep.subr.bf16.mxu0 0
    %1664 = vmatpush2.bf16.xpose.msra.mxu0 0
    %1665 = vmatprep.subr.bf16.mxu0 0
    %1666 = vmatpush2.bf16.xpose.msra.mxu0 0
    %1667 = vmatprep.subr.bf16.mxu0 0
    %1668 = vmatpush2.bf16.xpose.msra.mxu0 0
    %1669 = vmatprep.subr.bf16.mxu0 0
    %1670 = vmatpush2.bf16.xpose.msra.mxu0 0
    %1671 = vmatprep.subr.bf16.mxu0 0
    %1672 = vmatpush2.bf16.xpose.msra.mxu0 0
    %1673 = vmatprep.mubr.bf16.mxu0 0
    %1674 = vmatmul.mubr.bf16.gmra.mxu0 %v1639
    %v1675 = vpop.f32.mrf.mxu0
    %v1676 = vadd.f32 0.0, %v1675
    %v1677 = vpop.f32.mrf.mxu0
    %v1678 = vpop.f32.mrf.mxu0
    %v1679 = vpop.f32.mrf.mxu0
    %1680 = vdwg.mxu0
    %v1681 = vsub.f32 %v1676, 32.0
    %v1682 = vmul.f32 %v1681, 1.442695
    %v1683 = vpow.pop %v1682
    %v1684 = vmul.f32 %v1683, %v589
    %v1685 = vsel %vm698, %v1684, 0.0
    %1686 = vadd.xlane.f32.xlu0 %v1685
    %v1687 = vpop.xlane.xlu0 %1686
    %v1688 = vrcp.pop %v1687
    %v1689 = vmul.f32 %v1684, %v1688
    %v1690 = vpack.c.bf16 %v1689, %v1689
    %1692 = vrot.lane.b32.xlu0 %v1637, 96
    %v1693 = vpop.permute.xlu0 %1692
    %v1695 = vsel %vm246, %v1693, 0
    %1697 = vmatprep.subr.bf16.mxu0 0
    %1698 = vmatpush1.bf16.xpose.msra.mxu0 0
    %1699 = vmatprep.subr.bf16.mxu0 0
    %1700 = vmatpush1.bf16.xpose.msra.mxu0 0
    %1701 = vmatprep.subr.bf16.mxu0 0
    %1702 = vmatpush1.bf16.xpose.msra.mxu0 0
    %1703 = vmatprep.subr.bf16.mxu0 0
    %1704 = vmatpush1.bf16.xpose.msra.mxu0 0
    %1705 = vmatprep.subr.bf16.mxu0 0
    %1706 = vmatpush1.bf16.xpose.msra.mxu0 0
    %1707 = vmatprep.subr.bf16.mxu0 0
    %1708 = vmatpush1.bf16.xpose.msra.mxu0 0
    %1709 = vmatprep.subr.bf16.mxu0 0
    %1710 = vmatpush1.bf16.xpose.msra.mxu0 0
    %1711 = vmatprep.subr.bf16.mxu0 0
    %1712 = vmatpush1.bf16.xpose.msra.mxu0 %v712
    %1713 = vmatprep.subr.bf16.mxu0 0
    %1714 = vmatpush2.bf16.xpose.msra.mxu0 0
    %1715 = vmatprep.subr.bf16.mxu0 0
    %1716 = vmatpush2.bf16.xpose.msra.mxu0 0
    %1717 = vmatprep.subr.bf16.mxu0 0
    %1718 = vmatpush2.bf16.xpose.msra.mxu0 0
    %1719 = vmatprep.subr.bf16.mxu0 0
    %1720 = vmatpush2.bf16.xpose.msra.mxu0 0
    %1721 = vmatprep.subr.bf16.mxu0 0
    %1722 = vmatpush2.bf16.xpose.msra.mxu0 0
    %1723 = vmatprep.subr.bf16.mxu0 0
    %1724 = vmatpush2.bf16.xpose.msra.mxu0 0
    %1725 = vmatprep.subr.bf16.mxu0 0
    %1726 = vmatpush2.bf16.xpose.msra.mxu0 0
    %1727 = vmatprep.subr.bf16.mxu0 0
    %1728 = vmatpush2.bf16.xpose.msra.mxu0 0
    %1729 = vmatprep.mubr.bf16.mxu0 0
    %1730 = vmatmul.mubr.bf16.gmra.mxu0 %v1695
    %v1731 = vpop.f32.mrf.mxu0
    %v1732 = vadd.f32 0.0, %v1731
    %v1733 = vpop.f32.mrf.mxu0
    %v1734 = vpop.f32.mrf.mxu0
    %v1735 = vpop.f32.mrf.mxu0
    %1736 = vdwg.mxu0
    %v1737 = vsub.f32 %v1732, 32.0
    %v1738 = vmul.f32 %v1737, 1.442695
    %v1739 = vpow.pop %v1738
    %v1740 = vmul.f32 %v1739, %v589
    %v1741 = vsel %vm698, %v1740, 0.0
    %1742 = vadd.xlane.f32.xlu0 %v1741
    %v1743 = vpop.xlane.xlu0 %1742
    %v1744 = vrcp.pop %v1743
    %v1745 = vmul.f32 %v1740, %v1744
    %v1746 = vpack.c.bf16 %v1745, %v1745
    %v1748 = vsel %vm515, %v1746, 0
    %1750 = vmatprep.subr.bf16.mxu0 0
    %1751 = vmatpush1.bf16.msra.mxu0 0
    %1752 = vmatprep.subr.bf16.mxu0 0
    %1753 = vmatpush1.bf16.msra.mxu0 0
    %1754 = vmatprep.subr.bf16.mxu0 0
    %1755 = vmatpush1.bf16.msra.mxu0 0
    %1756 = vmatprep.subr.bf16.mxu0 0
    %1757 = vmatpush1.bf16.msra.mxu0 0
    %1758 = vmatprep.subr.bf16.mxu0 0
    %1759 = vmatpush1.bf16.msra.mxu0 0
    %1760 = vmatprep.subr.bf16.mxu0 0
    %1761 = vmatpush1.bf16.msra.mxu0 0
    %1762 = vmatprep.subr.bf16.mxu0 0
    %1763 = vmatpush1.bf16.msra.mxu0 0
    %1764 = vmatprep.subr.bf16.mxu0 0
    %1765 = vmatpush1.bf16.msra.mxu0 %v494
    %1766 = vmatprep.subr.bf16.mxu0 0
    %1767 = vmatpush2.bf16.msra.mxu0 0
    %1768 = vmatprep.subr.bf16.mxu0 0
    %1769 = vmatpush2.bf16.msra.mxu0 0
    %1770 = vmatprep.subr.bf16.mxu0 0
    %1771 = vmatpush2.bf16.msra.mxu0 0
    %1772 = vmatprep.subr.bf16.mxu0 0
    %1773 = vmatpush2.bf16.msra.mxu0 0
    %1774 = vmatprep.subr.bf16.mxu0 0
    %1775 = vmatpush2.bf16.msra.mxu0 0
    %1776 = vmatprep.subr.bf16.mxu0 0
    %1777 = vmatpush2.bf16.msra.mxu0 0
    %1778 = vmatprep.subr.bf16.mxu0 0
    %1779 = vmatpush2.bf16.msra.mxu0 0
    %1780 = vmatprep.subr.bf16.mxu0 0
    %1781 = vmatpush2.bf16.msra.mxu0 0
    %1782 = vmatprep.mubr.bf16.mxu0 0
    %1783 = vmatmul.mubr.bf16.gmra.mxu0 %v1748
    %v1784 = vpop.f32.mrf.mxu0
    %v1785 = vadd.f32 0.0, %v1784
    %v1786 = vpop.f32.mrf.mxu0
    %v1787 = vpop.f32.mrf.mxu0
    %v1788 = vpop.f32.mrf.mxu0
    %1789 = vdwg.mxu0
    %v1791 = vsel %vm515, %v1690, 0
    %1793 = vmatprep.subr.bf16.mxu0 0
    %1794 = vmatpush1.bf16.msra.mxu0 0
    %1795 = vmatprep.subr.bf16.mxu0 0
    %1796 = vmatpush1.bf16.msra.mxu0 0
    %1797 = vmatprep.subr.bf16.mxu0 0
    %1798 = vmatpush1.bf16.msra.mxu0 0
    %1799 = vmatprep.subr.bf16.mxu0 0
    %1800 = vmatpush1.bf16.msra.mxu0 0
    %1801 = vmatprep.subr.bf16.mxu0 0
    %1802 = vmatpush1.bf16.msra.mxu0 0
    %1803 = vmatprep.subr.bf16.mxu0 0
    %1804 = vmatpush1.bf16.msra.mxu0 0
    %1805 = vmatprep.subr.bf16.mxu0 0
    %1806 = vmatpush1.bf16.msra.mxu0 0
    %1807 = vmatprep.subr.bf16.mxu0 0
    %1808 = vmatpush1.bf16.msra.mxu0 %v430
    %1809 = vmatprep.subr.bf16.mxu0 0
    %1810 = vmatpush2.bf16.msra.mxu0 0
    %1811 = vmatprep.subr.bf16.mxu0 0
    %1812 = vmatpush2.bf16.msra.mxu0 0
    %1813 = vmatprep.subr.bf16.mxu0 0
    %1814 = vmatpush2.bf16.msra.mxu0 0
    %1815 = vmatprep.subr.bf16.mxu0 0
    %1816 = vmatpush2.bf16.msra.mxu0 0
    %1817 = vmatprep.subr.bf16.mxu0 0
    %1818 = vmatpush2.bf16.msra.mxu0 0
    %1819 = vmatprep.subr.bf16.mxu0 0
    %1820 = vmatpush2.bf16.msra.mxu0 0
    %1821 = vmatprep.subr.bf16.mxu0 0
    %1822 = vmatpush2.bf16.msra.mxu0 0
    %1823 = vmatprep.subr.bf16.mxu0 0
    %1824 = vmatpush2.bf16.msra.mxu0 0
    %1825 = vmatprep.mubr.bf16.mxu0 0
    %1826 = vmatmul.mubr.bf16.gmra.mxu0 %v1791
    %v1827 = vpop.f32.mrf.mxu0
    %v1828 = vadd.f32 %v1785, %v1827
    %v1829 = vpop.f32.mrf.mxu0
    %v1830 = vpop.f32.mrf.mxu0
    %v1831 = vpop.f32.mrf.mxu0
    %1832 = vdwg.mxu0
    %v1834 = vrot.slane %v1828, 2
    %v1836 = vadd.f32 %v554, %v1834
    %1837 = vmatprep.subr.bf16.mxu0 0
    %1838 = vmatpush1.bf16.msra.mxu0 0
    %1839 = vmatprep.subr.bf16.mxu0 0
    %1840 = vmatpush1.bf16.msra.mxu0 0
    %1841 = vmatprep.subr.bf16.mxu0 0
    %1842 = vmatpush1.bf16.msra.mxu0 0
    %1843 = vmatprep.subr.bf16.mxu0 0
    %1844 = vmatpush1.bf16.msra.mxu0 0
    %1845 = vmatprep.subr.bf16.mxu0 0
    %1846 = vmatpush1.bf16.msra.mxu0 0
    %1847 = vmatprep.subr.bf16.mxu0 0
    %1848 = vmatpush1.bf16.msra.mxu0 0
    %1849 = vmatprep.subr.bf16.mxu0 0
    %1850 = vmatpush1.bf16.msra.mxu0 %v860
    %1851 = vmatprep.subr.bf16.mxu0 0
    %1852 = vmatpush1.bf16.msra.mxu0 %v859
    %1853 = vmatprep.subr.bf16.mxu0 0
    %1854 = vmatpush2.bf16.msra.mxu0 0
    %1855 = vmatprep.subr.bf16.mxu0 0
    %1856 = vmatpush2.bf16.msra.mxu0 0
    %1857 = vmatprep.subr.bf16.mxu0 0
    %1858 = vmatpush2.bf16.msra.mxu0 0
    %1859 = vmatprep.subr.bf16.mxu0 0
    %1860 = vmatpush2.bf16.msra.mxu0 0
    %1861 = vmatprep.subr.bf16.mxu0 0
    %1862 = vmatpush2.bf16.msra.mxu0 0
    %1863 = vmatprep.subr.bf16.mxu0 0
    %1864 = vmatpush2.bf16.msra.mxu0 0
    %1865 = vmatprep.subr.bf16.mxu0 0
    %1866 = vmatpush2.bf16.msra.mxu0 0
    %1867 = vmatprep.subr.bf16.mxu0 0
    %1868 = vmatpush2.bf16.msra.mxu0 0
    %1869 = vmatprep.mubr.bf16.mxu0 0
    %1870 = vmatmul.mubr.bf16.gmra.mxu0 %v1594
    %v1871 = vpop.f32.mrf.mxu0
    %v1872 = vadd.f32 %v577, %v1871
    %v1873 = vpop.f32.mrf.mxu0
    %v1874 = vpop.f32.mrf.mxu0
    %v1875 = vpop.f32.mrf.mxu0
    %1876 = vdwg.mxu0
    %v1878 = vrot.slane %v1872, 2
    %v1880 = vadd.f32 %v1836, %v1878
    %v1881 = vxor.u32 %v1880, 2147483648
    %v1882 = vmul.f32 %v1881, 1.442695
    %v1883 = vpow.pop %v1882
    %v1884 = vadd.f32 %v1883, 1.0
    %v1885 = vrcp.pop %v1884
    %v1886 = vmul.f32 1.0, %v1885
    %1887 = vrot.lane.b32.xlu0 %v1878, 64
    %v1888 = vpop.permute.xlu0 %1887
    %v1890 = vmul.f32 %v1886, %v1888
    %1892 = vrot.lane.b32.xlu0 %v1890, 64
    %v1893 = vpop.permute.xlu0 %1892
    %v1895 = vadd.f32 %v1836, %v1893
    %v1896 = vtanh.pop %v1895
    %v1897 = vsub.f32 1.0, %v1886
    %1899 = vrot.lane.b32.xlu0 %v1896, 96
    %v1900 = vpop.permute.xlu0 %1899
    %v1902 = vmul.f32 %v1897, %v1900
    %v1903 = vrot.slane %v1581, 6
    %v1905 = vmul.f32 %v1886, %v1903
    %v1906 = vadd.f32 %v1902, %v1905
    %1908 = vrot.lane.b32.xlu0 %v1906, 96
    %v1909 = vpop.permute.xlu0 %1908
    %vm1911 = vcmask 261126
    %1912 = vst.msk [vmem:[#allocation2] sm:$0xc0] %vm1911, %v1909
    %v1913 = vpack.c.bf16 %v1906, %v1906
    %v1915 = vrot.slane %v1913, 3
    %1916 = vrot.lane.b32.xlu0 %v1915, 96
    %v1917 = vpop.permute.xlu0 %1916
    %v1919 = vsel %vm246, %v1917, 0
    %1921 = vmatprep.subr.bf16.mxu0 0
    %1922 = vmatpush1.bf16.msra.mxu0 0
    %1923 = vmatprep.subr.bf16.mxu0 0
    %1924 = vmatpush1.bf16.msra.mxu0 0
    %1925 = vmatprep.subr.bf16.mxu0 0
    %1926 = vmatpush1.bf16.msra.mxu0 0
    %1927 = vmatprep.subr.bf16.mxu0 0
    %1928 = vmatpush1.bf16.msra.mxu0 0
    %1929 = vmatprep.subr.bf16.mxu0 0
    %1930 = vmatpush1.bf16.msra.mxu0 0
    %1931 = vmatprep.subr.bf16.mxu0 0
    %1932 = vmatpush1.bf16.msra.mxu0 0
    %1933 = vmatprep.subr.bf16.mxu0 0
    %1934 = vmatpush1.bf16.msra.mxu0 %v600
    %1935 = vmatprep.subr.bf16.mxu0 0
    %1936 = vmatpush1.bf16.msra.mxu0 %v599
    %1937 = vmatprep.subr.bf16.mxu0 0
    %1938 = vmatpush2.bf16.msra.mxu0 0
    %1939 = vmatprep.subr.bf16.mxu0 0
    %1940 = vmatpush2.bf16.msra.mxu0 0
    %1941 = vmatprep.subr.bf16.mxu0 0
    %1942 = vmatpush2.bf16.msra.mxu0 0
    %1943 = vmatprep.subr.bf16.mxu0 0
    %1944 = vmatpush2.bf16.msra.mxu0 0
    %1945 = vmatprep.subr.bf16.mxu0 0
    %1946 = vmatpush2.bf16.msra.mxu0 0
    %1947 = vmatprep.subr.bf16.mxu0 0
    %1948 = vmatpush2.bf16.msra.mxu0 0
    %1949 = vmatprep.subr.bf16.mxu0 0
    %1950 = vmatpush2.bf16.msra.mxu0 0
    %1951 = vmatprep.subr.bf16.mxu0 0
    %1952 = vmatpush2.bf16.msra.mxu0 0
    %1953 = vmatprep.mubr.bf16.mxu0 0
    %1954 = vmatmul.mubr.bf16.gmra.mxu0 %v1919
    %v1955 = vpop.f32.mrf.mxu0
    %v1956 = vadd.f32 %v572, %v1955
    %v1957 = vpop.f32.mrf.mxu0
    %v1958 = vpop.f32.mrf.mxu0
    %v1959 = vpop.f32.mrf.mxu0
    %1960 = vdwg.mxu0
    %v1961 = vtanh.pop %v1956
    %v1962 = vpack.c.bf16 %v1961, %v1961
    %v1964 = vsel %vm246, %v1962, 0
    %1966 = vmatprep.subr.bf16.mxu0 0
    %1967 = vmatpush1.bf16.xpose.msra.mxu0 0
    %1968 = vmatprep.subr.bf16.mxu0 0
    %1969 = vmatpush1.bf16.xpose.msra.mxu0 0
    %1970 = vmatprep.subr.bf16.mxu0 0
    %1971 = vmatpush1.bf16.xpose.msra.mxu0 0
    %1972 = vmatprep.subr.bf16.mxu0 0
    %1973 = vmatpush1.bf16.xpose.msra.mxu0 0
    %1974 = vmatprep.subr.bf16.mxu0 0
    %1975 = vmatpush1.bf16.xpose.msra.mxu0 0
    %1976 = vmatprep.subr.bf16.mxu0 0
    %1977 = vmatpush1.bf16.xpose.msra.mxu0 0
    %1978 = vmatprep.subr.bf16.mxu0 0
    %1979 = vmatpush1.bf16.xpose.msra.mxu0 0
    %1980 = vmatprep.subr.bf16.mxu0 0
    %1981 = vmatpush1.bf16.xpose.msra.mxu0 %v652
    %1982 = vmatprep.subr.bf16.mxu0 0
    %1983 = vmatpush2.bf16.xpose.msra.mxu0 0
    %1984 = vmatprep.subr.bf16.mxu0 0
    %1985 = vmatpush2.bf16.xpose.msra.mxu0 0
    %1986 = vmatprep.subr.bf16.mxu0 0
    %1987 = vmatpush2.bf16.xpose.msra.mxu0 0
    %1988 = vmatprep.subr.bf16.mxu0 0
    %1989 = vmatpush2.bf16.xpose.msra.mxu0 0
    %1990 = vmatprep.subr.bf16.mxu0 0
    %1991 = vmatpush2.bf16.xpose.msra.mxu0 0
    %1992 = vmatprep.subr.bf16.mxu0 0
    %1993 = vmatpush2.bf16.xpose.msra.mxu0 0
    %1994 = vmatprep.subr.bf16.mxu0 0
    %1995 = vmatpush2.bf16.xpose.msra.mxu0 0
    %1996 = vmatprep.subr.bf16.mxu0 0
    %1997 = vmatpush2.bf16.xpose.msra.mxu0 0
    %1998 = vmatprep.mubr.bf16.mxu0 0
    %1999 = vmatmul.mubr.bf16.gmra.mxu0 %v1964
    %v2000 = vpop.f32.mrf.mxu0
    %v2001 = vadd.f32 0.0, %v2000
    %v2002 = vpop.f32.mrf.mxu0
    %v2003 = vpop.f32.mrf.mxu0
    %v2004 = vpop.f32.mrf.mxu0
    %2005 = vdwg.mxu0
    %v2006 = vsub.f32 %v2001, 32.0
    %v2007 = vmul.f32 %v2006, 1.442695
    %v2008 = vpow.pop %v2007
    %v2009 = vmul.f32 %v2008, %v589
    %v2010 = vsel %vm698, %v2009, 0.0
    %2011 = vadd.xlane.f32.xlu0 %v2010
    %v2012 = vpop.xlane.xlu0 %2011
    %v2013 = vrcp.pop %v2012
    %v2014 = vmul.f32 %v2009, %v2013
    %v2015 = vpack.c.bf16 %v2014, %v2014
    %2017 = vrot.lane.b32.xlu0 %v1962, 96
    %v2018 = vpop.permute.xlu0 %2017
    %v2020 = vsel %vm246, %v2018, 0
    %2022 = vmatprep.subr.bf16.mxu0 0
    %2023 = vmatpush1.bf16.xpose.msra.mxu0 0
    %2024 = vmatprep.subr.bf16.mxu0 0
    %2025 = vmatpush1.bf16.xpose.msra.mxu0 0
    %2026 = vmatprep.subr.bf16.mxu0 0
    %2027 = vmatpush1.bf16.xpose.msra.mxu0 0
    %2028 = vmatprep.subr.bf16.mxu0 0
    %2029 = vmatpush1.bf16.xpose.msra.mxu0 0
    %2030 = vmatprep.subr.bf16.mxu0 0
    %2031 = vmatpush1.bf16.xpose.msra.mxu0 0
    %2032 = vmatprep.subr.bf16.mxu0 0
    %2033 = vmatpush1.bf16.xpose.msra.mxu0 0
    %2034 = vmatprep.subr.bf16.mxu0 0
    %2035 = vmatpush1.bf16.xpose.msra.mxu0 0
    %2036 = vmatprep.subr.bf16.mxu0 0
    %2037 = vmatpush1.bf16.xpose.msra.mxu0 %v712
    %2038 = vmatprep.subr.bf16.mxu0 0
    %2039 = vmatpush2.bf16.xpose.msra.mxu0 0
    %2040 = vmatprep.subr.bf16.mxu0 0
    %2041 = vmatpush2.bf16.xpose.msra.mxu0 0
    %2042 = vmatprep.subr.bf16.mxu0 0
    %2043 = vmatpush2.bf16.xpose.msra.mxu0 0
    %2044 = vmatprep.subr.bf16.mxu0 0
    %2045 = vmatpush2.bf16.xpose.msra.mxu0 0
    %2046 = vmatprep.subr.bf16.mxu0 0
    %2047 = vmatpush2.bf16.xpose.msra.mxu0 0
    %2048 = vmatprep.subr.bf16.mxu0 0
    %2049 = vmatpush2.bf16.xpose.msra.mxu0 0
    %2050 = vmatprep.subr.bf16.mxu0 0
    %2051 = vmatpush2.bf16.xpose.msra.mxu0 0
    %2052 = vmatprep.subr.bf16.mxu0 0
    %2053 = vmatpush2.bf16.xpose.msra.mxu0 0
    %2054 = vmatprep.mubr.bf16.mxu0 0
    %2055 = vmatmul.mubr.bf16.gmra.mxu0 %v2020
    %v2056 = vpop.f32.mrf.mxu0
    %v2057 = vadd.f32 0.0, %v2056
    %v2058 = vpop.f32.mrf.mxu0
    %v2059 = vpop.f32.mrf.mxu0
    %v2060 = vpop.f32.mrf.mxu0
    %2061 = vdwg.mxu0
    %v2062 = vsub.f32 %v2057, 32.0
    %v2063 = vmul.f32 %v2062, 1.442695
    %v2064 = vpow.pop %v2063
    %v2065 = vmul.f32 %v2064, %v589
    %v2066 = vsel %vm698, %v2065, 0.0
    %2067 = vadd.xlane.f32.xlu0 %v2066
    %v2068 = vpop.xlane.xlu0 %2067
    %v2069 = vrcp.pop %v2068
    %v2070 = vmul.f32 %v2065, %v2069
    %v2071 = vpack.c.bf16 %v2070, %v2070
    %v2073 = vsel %vm515, %v2071, 0
    %2075 = vmatprep.subr.bf16.mxu0 0
    %2076 = vmatpush1.bf16.msra.mxu0 0
    %2077 = vmatprep.subr.bf16.mxu0 0
    %2078 = vmatpush1.bf16.msra.mxu0 0
    %2079 = vmatprep.subr.bf16.mxu0 0
    %2080 = vmatpush1.bf16.msra.mxu0 0
    %2081 = vmatprep.subr.bf16.mxu0 0
    %2082 = vmatpush1.bf16.msra.mxu0 0
    %2083 = vmatprep.subr.bf16.mxu0 0
    %2084 = vmatpush1.bf16.msra.mxu0 0
    %2085 = vmatprep.subr.bf16.mxu0 0
    %2086 = vmatpush1.bf16.msra.mxu0 0
    %2087 = vmatprep.subr.bf16.mxu0 0
    %2088 = vmatpush1.bf16.msra.mxu0 0
    %2089 = vmatprep.subr.bf16.mxu0 0
    %2090 = vmatpush1.bf16.msra.mxu0 %v494
    %2091 = vmatprep.subr.bf16.mxu0 0
    %2092 = vmatpush2.bf16.msra.mxu0 0
    %2093 = vmatprep.subr.bf16.mxu0 0
    %2094 = vmatpush2.bf16.msra.mxu0 0
    %2095 = vmatprep.subr.bf16.mxu0 0
    %2096 = vmatpush2.bf16.msra.mxu0 0
    %2097 = vmatprep.subr.bf16.mxu0 0
    %2098 = vmatpush2.bf16.msra.mxu0 0
    %2099 = vmatprep.subr.bf16.mxu0 0
    %2100 = vmatpush2.bf16.msra.mxu0 0
    %2101 = vmatprep.subr.bf16.mxu0 0
    %2102 = vmatpush2.bf16.msra.mxu0 0
    %2103 = vmatprep.subr.bf16.mxu0 0
    %2104 = vmatpush2.bf16.msra.mxu0 0
    %2105 = vmatprep.subr.bf16.mxu0 0
    %2106 = vmatpush2.bf16.msra.mxu0 0
    %2107 = vmatprep.mubr.bf16.mxu0 0
    %2108 = vmatmul.mubr.bf16.gmra.mxu0 %v2073
    %v2109 = vpop.f32.mrf.mxu0
    %v2110 = vadd.f32 0.0, %v2109
    %v2111 = vpop.f32.mrf.mxu0
    %v2112 = vpop.f32.mrf.mxu0
    %v2113 = vpop.f32.mrf.mxu0
    %2114 = vdwg.mxu0
    %v2116 = vsel %vm515, %v2015, 0
    %2118 = vmatprep.subr.bf16.mxu0 0
    %2119 = vmatpush1.bf16.msra.mxu0 0
    %2120 = vmatprep.subr.bf16.mxu0 0
    %2121 = vmatpush1.bf16.msra.mxu0 0
    %2122 = vmatprep.subr.bf16.mxu0 0
    %2123 = vmatpush1.bf16.msra.mxu0 0
    %2124 = vmatprep.subr.bf16.mxu0 0
    %2125 = vmatpush1.bf16.msra.mxu0 0
    %2126 = vmatprep.subr.bf16.mxu0 0
    %2127 = vmatpush1.bf16.msra.mxu0 0
    %2128 = vmatprep.subr.bf16.mxu0 0
    %2129 = vmatpush1.bf16.msra.mxu0 0
    %2130 = vmatprep.subr.bf16.mxu0 0
    %2131 = vmatpush1.bf16.msra.mxu0 0
    %2132 = vmatprep.subr.bf16.mxu0 0
    %2133 = vmatpush1.bf16.msra.mxu0 %v430
    %2134 = vmatprep.subr.bf16.mxu0 0
    %2135 = vmatpush2.bf16.msra.mxu0 0
    %2136 = vmatprep.subr.bf16.mxu0 0
    %2137 = vmatpush2.bf16.msra.mxu0 0
    %2138 = vmatprep.subr.bf16.mxu0 0
    %2139 = vmatpush2.bf16.msra.mxu0 0
    %2140 = vmatprep.subr.bf16.mxu0 0
    %2141 = vmatpush2.bf16.msra.mxu0 0
    %2142 = vmatprep.subr.bf16.mxu0 0
    %2143 = vmatpush2.bf16.msra.mxu0 0
    %2144 = vmatprep.subr.bf16.mxu0 0
    %2145 = vmatpush2.bf16.msra.mxu0 0
    %2146 = vmatprep.subr.bf16.mxu0 0
    %2147 = vmatpush2.bf16.msra.mxu0 0
    %2148 = vmatprep.subr.bf16.mxu0 0
    %2149 = vmatpush2.bf16.msra.mxu0 0
    %2150 = vmatprep.mubr.bf16.mxu0 0
    %2151 = vmatmul.mubr.bf16.gmra.mxu0 %v2116
    %v2152 = vpop.f32.mrf.mxu0
    %v2153 = vadd.f32 %v2110, %v2152
    %v2154 = vpop.f32.mrf.mxu0
    %v2155 = vpop.f32.mrf.mxu0
    %v2156 = vpop.f32.mrf.mxu0
    %2157 = vdwg.mxu0
    %v2158 = vadd.f32 %v557, %v2153
    %2159 = vmatprep.subr.bf16.mxu0 0
    %2160 = vmatpush1.bf16.msra.mxu0 0
    %2161 = vmatprep.subr.bf16.mxu0 0
    %2162 = vmatpush1.bf16.msra.mxu0 0
    %2163 = vmatprep.subr.bf16.mxu0 0
    %2164 = vmatpush1.bf16.msra.mxu0 0
    %2165 = vmatprep.subr.bf16.mxu0 0
    %2166 = vmatpush1.bf16.msra.mxu0 0
    %2167 = vmatprep.subr.bf16.mxu0 0
    %2168 = vmatpush1.bf16.msra.mxu0 0
    %2169 = vmatprep.subr.bf16.mxu0 0
    %2170 = vmatpush1.bf16.msra.mxu0 0
    %2171 = vmatprep.subr.bf16.mxu0 0
    %2172 = vmatpush1.bf16.msra.mxu0 %v860
    %2173 = vmatprep.subr.bf16.mxu0 0
    %2174 = vmatpush1.bf16.msra.mxu0 %v859
    %2175 = vmatprep.subr.bf16.mxu0 0
    %2176 = vmatpush2.bf16.msra.mxu0 0
    %2177 = vmatprep.subr.bf16.mxu0 0
    %2178 = vmatpush2.bf16.msra.mxu0 0
    %2179 = vmatprep.subr.bf16.mxu0 0
    %2180 = vmatpush2.bf16.msra.mxu0 0
    %2181 = vmatprep.subr.bf16.mxu0 0
    %2182 = vmatpush2.bf16.msra.mxu0 0
    %2183 = vmatprep.subr.bf16.mxu0 0
    %2184 = vmatpush2.bf16.msra.mxu0 0
    %2185 = vmatprep.subr.bf16.mxu0 0
    %2186 = vmatpush2.bf16.msra.mxu0 0
    %2187 = vmatprep.subr.bf16.mxu0 0
    %2188 = vmatpush2.bf16.msra.mxu0 0
    %2189 = vmatprep.subr.bf16.mxu0 0
    %2190 = vmatpush2.bf16.msra.mxu0 0
    %2191 = vmatprep.mubr.bf16.mxu0 0
    %2192 = vmatmul.mubr.bf16.gmra.mxu0 %v1919
    %v2193 = vpop.f32.mrf.mxu0
    %v2194 = vadd.f32 %v577, %v2193
    %v2195 = vpop.f32.mrf.mxu0
    %v2196 = vpop.f32.mrf.mxu0
    %v2197 = vpop.f32.mrf.mxu0
    %2198 = vdwg.mxu0
    %v2199 = vadd.f32 %v2158, %v2194
    %v2200 = vxor.u32 %v2199, 2147483648
    %v2201 = vmul.f32 %v2200, 1.442695
    %v2202 = vpow.pop %v2201
    %v2203 = vadd.f32 %v2202, 1.0
    %v2204 = vrcp.pop %v2203
    %v2205 = vmul.f32 1.0, %v2204
    %2207 = vrot.lane.b32.xlu0 %v2194, 64
    %v2208 = vpop.permute.xlu0 %2207
    %v2210 = vmul.f32 %v2205, %v2208
    %2212 = vrot.lane.b32.xlu0 %v2210, 64
    %v2213 = vpop.permute.xlu0 %2212
    %v2215 = vadd.f32 %v2158, %v2213
    %v2216 = vtanh.pop %v2215
    %v2217 = vsub.f32 1.0, %v2205
    %2219 = vrot.lane.b32.xlu0 %v2216, 96
    %v2220 = vpop.permute.xlu0 %2219
    %v2222 = vmul.f32 %v2217, %v2220
    %v2223 = vrot.slane %v1906, 6
    %v2225 = vmul.f32 %v2205, %v2223
    %v2226 = vadd.f32 %v2222, %v2225
    %2228 = vrot.lane.b32.xlu0 %v2226, 96
    %v2229 = vpop.permute.xlu0 %2228
    %2231 = vst.msk [vmem:[#allocation2 + $0x8] sm:$0x3] %vm937, %v2229
    %v2232 = vpack.c.bf16 %v2226, %v2226
    %2234 = vrot.lane.b32.xlu0 %v2232, 96
    %v2235 = vpop.permute.xlu0 %2234
    %v2237 = vsel %vm246, %v2235, 0
    %2239 = vmatprep.subr.bf16.mxu0 0
    %2240 = vmatpush1.bf16.msra.mxu0 0
    %2241 = vmatprep.subr.bf16.mxu0 0
    %2242 = vmatpush1.bf16.msra.mxu0 0
    %2243 = vmatprep.subr.bf16.mxu0 0
    %2244 = vmatpush1.bf16.msra.mxu0 0
    %2245 = vmatprep.subr.bf16.mxu0 0
    %2246 = vmatpush1.bf16.msra.mxu0 0
    %2247 = vmatprep.subr.bf16.mxu0 0
    %2248 = vmatpush1.bf16.msra.mxu0 0
    %2249 = vmatprep.subr.bf16.mxu0 0
    %2250 = vmatpush1.bf16.msra.mxu0 0
    %2251 = vmatprep.subr.bf16.mxu0 0
    %2252 = vmatpush1.bf16.msra.mxu0 %v600
    %2253 = vmatprep.subr.bf16.mxu0 0
    %2254 = vmatpush1.bf16.msra.mxu0 %v599
    %2255 = vmatprep.subr.bf16.mxu0 0
    %2256 = vmatpush2.bf16.msra.mxu0 0
    %2257 = vmatprep.subr.bf16.mxu0 0
    %2258 = vmatpush2.bf16.msra.mxu0 0
    %2259 = vmatprep.subr.bf16.mxu0 0
    %2260 = vmatpush2.bf16.msra.mxu0 0
    %2261 = vmatprep.subr.bf16.mxu0 0
    %2262 = vmatpush2.bf16.msra.mxu0 0
    %2263 = vmatprep.subr.bf16.mxu0 0
    %2264 = vmatpush2.bf16.msra.mxu0 0
    %2265 = vmatprep.subr.bf16.mxu0 0
    %2266 = vmatpush2.bf16.msra.mxu0 0
    %2267 = vmatprep.subr.bf16.mxu0 0
    %2268 = vmatpush2.bf16.msra.mxu0 0
    %2269 = vmatprep.subr.bf16.mxu0 0
    %2270 = vmatpush2.bf16.msra.mxu0 0
    %2271 = vmatprep.mubr.bf16.mxu0 0
    %2272 = vmatmul.mubr.bf16.gmra.mxu0 %v2237
    %v2273 = vpop.f32.mrf.mxu0
    %v2274 = vadd.f32 %v572, %v2273
    %v2275 = vpop.f32.mrf.mxu0
    %v2276 = vpop.f32.mrf.mxu0
    %v2277 = vpop.f32.mrf.mxu0
    %2278 = vdwg.mxu0
    %v2279 = vtanh.pop %v2274
    %v2280 = vpack.c.bf16 %v2279, %v2279
    %v2282 = vsel %vm246, %v2280, 0
    %2284 = vmatprep.subr.bf16.mxu0 0
    %2285 = vmatpush1.bf16.xpose.msra.mxu0 0
    %2286 = vmatprep.subr.bf16.mxu0 0
    %2287 = vmatpush1.bf16.xpose.msra.mxu0 0
    %2288 = vmatprep.subr.bf16.mxu0 0
    %2289 = vmatpush1.bf16.xpose.msra.mxu0 0
    %2290 = vmatprep.subr.bf16.mxu0 0
    %2291 = vmatpush1.bf16.xpose.msra.mxu0 0
    %2292 = vmatprep.subr.bf16.mxu0 0
    %2293 = vmatpush1.bf16.xpose.msra.mxu0 0
    %2294 = vmatprep.subr.bf16.mxu0 0
    %2295 = vmatpush1.bf16.xpose.msra.mxu0 0
    %2296 = vmatprep.subr.bf16.mxu0 0
    %2297 = vmatpush1.bf16.xpose.msra.mxu0 0
    %2298 = vmatprep.subr.bf16.mxu0 0
    %2299 = vmatpush1.bf16.xpose.msra.mxu0 %v652
    %2300 = vmatprep.subr.bf16.mxu0 0
    %2301 = vmatpush2.bf16.xpose.msra.mxu0 0
    %2302 = vmatprep.subr.bf16.mxu0 0
    %2303 = vmatpush2.bf16.xpose.msra.mxu0 0
    %2304 = vmatprep.subr.bf16.mxu0 0
    %2305 = vmatpush2.bf16.xpose.msra.mxu0 0
    %2306 = vmatprep.subr.bf16.mxu0 0
    %2307 = vmatpush2.bf16.xpose.msra.mxu0 0
    %2308 = vmatprep.subr.bf16.mxu0 0
    %2309 = vmatpush2.bf16.xpose.msra.mxu0 0
    %2310 = vmatprep.subr.bf16.mxu0 0
    %2311 = vmatpush2.bf16.xpose.msra.mxu0 0
    %2312 = vmatprep.subr.bf16.mxu0 0
    %2313 = vmatpush2.bf16.xpose.msra.mxu0 0
    %2314 = vmatprep.subr.bf16.mxu0 0
    %2315 = vmatpush2.bf16.xpose.msra.mxu0 0
    %2316 = vmatprep.mubr.bf16.mxu0 0
    %2317 = vmatmul.mubr.bf16.gmra.mxu0 %v2282
    %v2318 = vpop.f32.mrf.mxu0
    %v2319 = vadd.f32 0.0, %v2318
    %v2320 = vpop.f32.mrf.mxu0
    %v2321 = vpop.f32.mrf.mxu0
    %v2322 = vpop.f32.mrf.mxu0
    %2323 = vdwg.mxu0
    %v2324 = vsub.f32 %v2319, 32.0
    %v2325 = vmul.f32 %v2324, 1.442695
    %v2326 = vpow.pop %v2325
    %v2327 = vmul.f32 %v2326, %v589
    %v2328 = vsel %vm698, %v2327, 0.0
    %2329 = vadd.xlane.f32.xlu0 %v2328
    %v2330 = vpop.xlane.xlu0 %2329
    %v2331 = vrcp.pop %v2330
    %v2332 = vmul.f32 %v2327, %v2331
    %v2333 = vpack.c.bf16 %v2332, %v2332
    %2335 = vrot.lane.b32.xlu0 %v2280, 96
    %v2336 = vpop.permute.xlu0 %2335
    %v2338 = vsel %vm246, %v2336, 0
    %2340 = vmatprep.subr.bf16.mxu0 0
    %2341 = vmatpush1.bf16.xpose.msra.mxu0 0
    %2342 = vmatprep.subr.bf16.mxu0 0
    %2343 = vmatpush1.bf16.xpose.msra.mxu0 0
    %2344 = vmatprep.subr.bf16.mxu0 0
    %2345 = vmatpush1.bf16.xpose.msra.mxu0 0
    %2346 = vmatprep.subr.bf16.mxu0 0
    %2347 = vmatpush1.bf16.xpose.msra.mxu0 0
    %2348 = vmatprep.subr.bf16.mxu0 0
    %2349 = vmatpush1.bf16.xpose.msra.mxu0 0
    %2350 = vmatprep.subr.bf16.mxu0 0
    %2351 = vmatpush1.bf16.xpose.msra.mxu0 0
    %2352 = vmatprep.subr.bf16.mxu0 0
    %2353 = vmatpush1.bf16.xpose.msra.mxu0 0
    %2354 = vmatprep.subr.bf16.mxu0 0
    %2355 = vmatpush1.bf16.xpose.msra.mxu0 %v712
    %2356 = vmatprep.subr.bf16.mxu0 0
    %2357 = vmatpush2.bf16.xpose.msra.mxu0 0
    %2358 = vmatprep.subr.bf16.mxu0 0
    %2359 = vmatpush2.bf16.xpose.msra.mxu0 0
    %2360 = vmatprep.subr.bf16.mxu0 0
    %2361 = vmatpush2.bf16.xpose.msra.mxu0 0
    %2362 = vmatprep.subr.bf16.mxu0 0
    %2363 = vmatpush2.bf16.xpose.msra.mxu0 0
    %2364 = vmatprep.subr.bf16.mxu0 0
    %2365 = vmatpush2.bf16.xpose.msra.mxu0 0
    %2366 = vmatprep.subr.bf16.mxu0 0
    %2367 = vmatpush2.bf16.xpose.msra.mxu0 0
    %2368 = vmatprep.subr.bf16.mxu0 0
    %2369 = vmatpush2.bf16.xpose.msra.mxu0 0
    %2370 = vmatprep.subr.bf16.mxu0 0
    %2371 = vmatpush2.bf16.xpose.msra.mxu0 0
    %2372 = vmatprep.mubr.bf16.mxu0 0
    %2373 = vmatmul.mubr.bf16.gmra.mxu0 %v2338
    %v2374 = vpop.f32.mrf.mxu0
    %v2375 = vadd.f32 0.0, %v2374
    %v2376 = vpop.f32.mrf.mxu0
    %v2377 = vpop.f32.mrf.mxu0
    %v2378 = vpop.f32.mrf.mxu0
    %2379 = vdwg.mxu0
    %v2380 = vsub.f32 %v2375, 32.0
    %v2381 = vmul.f32 %v2380, 1.442695
    %v2382 = vpow.pop %v2381
    %v2383 = vmul.f32 %v2382, %v589
    %v2384 = vsel %vm698, %v2383, 0.0
    %2385 = vadd.xlane.f32.xlu0 %v2384
    %v2386 = vpop.xlane.xlu0 %2385
    %v2387 = vrcp.pop %v2386
    %v2388 = vmul.f32 %v2383, %v2387
    %v2389 = vpack.c.bf16 %v2388, %v2388
    %v2391 = vsel %vm515, %v2389, 0
    %2393 = vmatprep.subr.bf16.mxu0 0
    %2394 = vmatpush1.bf16.msra.mxu0 0
    %2395 = vmatprep.subr.bf16.mxu0 0
    %2396 = vmatpush1.bf16.msra.mxu0 0
    %2397 = vmatprep.subr.bf16.mxu0 0
    %2398 = vmatpush1.bf16.msra.mxu0 0
    %2399 = vmatprep.subr.bf16.mxu0 0
    %2400 = vmatpush1.bf16.msra.mxu0 0
    %2401 = vmatprep.subr.bf16.mxu0 0
    %2402 = vmatpush1.bf16.msra.mxu0 0
    %2403 = vmatprep.subr.bf16.mxu0 0
    %2404 = vmatpush1.bf16.msra.mxu0 0
    %2405 = vmatprep.subr.bf16.mxu0 0
    %2406 = vmatpush1.bf16.msra.mxu0 0
    %2407 = vmatprep.subr.bf16.mxu0 0
    %2408 = vmatpush1.bf16.msra.mxu0 %v494
    %2409 = vmatprep.subr.bf16.mxu0 0
    %2410 = vmatpush2.bf16.msra.mxu0 0
    %2411 = vmatprep.subr.bf16.mxu0 0
    %2412 = vmatpush2.bf16.msra.mxu0 0
    %2413 = vmatprep.subr.bf16.mxu0 0
    %2414 = vmatpush2.bf16.msra.mxu0 0
    %2415 = vmatprep.subr.bf16.mxu0 0
    %2416 = vmatpush2.bf16.msra.mxu0 0
    %2417 = vmatprep.subr.bf16.mxu0 0
    %2418 = vmatpush2.bf16.msra.mxu0 0
    %2419 = vmatprep.subr.bf16.mxu0 0
    %2420 = vmatpush2.bf16.msra.mxu0 0
    %2421 = vmatprep.subr.bf16.mxu0 0
    %2422 = vmatpush2.bf16.msra.mxu0 0
    %2423 = vmatprep.subr.bf16.mxu0 0
    %2424 = vmatpush2.bf16.msra.mxu0 0
    %2425 = vmatprep.mubr.bf16.mxu0 0
    %2426 = vmatmul.mubr.bf16.gmra.mxu0 %v2391
    %v2427 = vpop.f32.mrf.mxu0
    %v2428 = vadd.f32 0.0, %v2427
    %v2429 = vpop.f32.mrf.mxu0
    %v2430 = vpop.f32.mrf.mxu0
    %v2431 = vpop.f32.mrf.mxu0
    %2432 = vdwg.mxu0
    %v2434 = vsel %vm515, %v2333, 0
    %2436 = vmatprep.subr.bf16.mxu0 0
    %2437 = vmatpush1.bf16.msra.mxu0 0
    %2438 = vmatprep.subr.bf16.mxu0 0
    %2439 = vmatpush1.bf16.msra.mxu0 0
    %2440 = vmatprep.subr.bf16.mxu0 0
    %2441 = vmatpush1.bf16.msra.mxu0 0
    %2442 = vmatprep.subr.bf16.mxu0 0
    %2443 = vmatpush1.bf16.msra.mxu0 0
    %2444 = vmatprep.subr.bf16.mxu0 0
    %2445 = vmatpush1.bf16.msra.mxu0 0
    %2446 = vmatprep.subr.bf16.mxu0 0
    %2447 = vmatpush1.bf16.msra.mxu0 0
    %2448 = vmatprep.subr.bf16.mxu0 0
    %2449 = vmatpush1.bf16.msra.mxu0 0
    %2450 = vmatprep.subr.bf16.mxu0 0
    %2451 = vmatpush1.bf16.msra.mxu0 %v430
    %2452 = vmatprep.subr.bf16.mxu0 0
    %2453 = vmatpush2.bf16.msra.mxu0 0
    %2454 = vmatprep.subr.bf16.mxu0 0
    %2455 = vmatpush2.bf16.msra.mxu0 0
    %2456 = vmatprep.subr.bf16.mxu0 0
    %2457 = vmatpush2.bf16.msra.mxu0 0
    %2458 = vmatprep.subr.bf16.mxu0 0
    %2459 = vmatpush2.bf16.msra.mxu0 0
    %2460 = vmatprep.subr.bf16.mxu0 0
    %2461 = vmatpush2.bf16.msra.mxu0 0
    %2462 = vmatprep.subr.bf16.mxu0 0
    %2463 = vmatpush2.bf16.msra.mxu0 0
    %2464 = vmatprep.subr.bf16.mxu0 0
    %2465 = vmatpush2.bf16.msra.mxu0 0
    %2466 = vmatprep.subr.bf16.mxu0 0
    %2467 = vmatpush2.bf16.msra.mxu0 0
    %2468 = vmatprep.mubr.bf16.mxu0 0
    %2469 = vmatmul.mubr.bf16.gmra.mxu0 %v2434
    %v2470 = vpop.f32.mrf.mxu0
    %v2471 = vadd.f32 %v2428, %v2470
    %v2472 = vpop.f32.mrf.mxu0
    %v2473 = vpop.f32.mrf.mxu0
    %v2474 = vpop.f32.mrf.mxu0
    %2475 = vdwg.mxu0
    %v2477 = vrot.slane %v2471, 6
    %v2479 = vadd.f32 %v557, %v2477
    %2480 = vmatprep.subr.bf16.mxu0 0
    %2481 = vmatpush1.bf16.msra.mxu0 0
    %2482 = vmatprep.subr.bf16.mxu0 0
    %2483 = vmatpush1.bf16.msra.mxu0 0
    %2484 = vmatprep.subr.bf16.mxu0 0
    %2485 = vmatpush1.bf16.msra.mxu0 0
    %2486 = vmatprep.subr.bf16.mxu0 0
    %2487 = vmatpush1.bf16.msra.mxu0 0
    %2488 = vmatprep.subr.bf16.mxu0 0
    %2489 = vmatpush1.bf16.msra.mxu0 0
    %2490 = vmatprep.subr.bf16.mxu0 0
    %2491 = vmatpush1.bf16.msra.mxu0 0
    %2492 = vmatprep.subr.bf16.mxu0 0
    %2493 = vmatpush1.bf16.msra.mxu0 %v860
    %2494 = vmatprep.subr.bf16.mxu0 0
    %2495 = vmatpush1.bf16.msra.mxu0 %v859
    %2496 = vmatprep.subr.bf16.mxu0 0
    %2497 = vmatpush2.bf16.msra.mxu0 0
    %2498 = vmatprep.subr.bf16.mxu0 0
    %2499 = vmatpush2.bf16.msra.mxu0 0
    %2500 = vmatprep.subr.bf16.mxu0 0
    %2501 = vmatpush2.bf16.msra.mxu0 0
    %2502 = vmatprep.subr.bf16.mxu0 0
    %2503 = vmatpush2.bf16.msra.mxu0 0
    %2504 = vmatprep.subr.bf16.mxu0 0
    %2505 = vmatpush2.bf16.msra.mxu0 0
    %2506 = vmatprep.subr.bf16.mxu0 0
    %2507 = vmatpush2.bf16.msra.mxu0 0
    %2508 = vmatprep.subr.bf16.mxu0 0
    %2509 = vmatpush2.bf16.msra.mxu0 0
    %2510 = vmatprep.subr.bf16.mxu0 0
    %2511 = vmatpush2.bf16.msra.mxu0 0
    %2512 = vmatprep.mubr.bf16.mxu0 0
    %2513 = vmatmul.mubr.bf16.gmra.mxu0 %v2237
    %v2514 = vpop.f32.mrf.mxu0
    %v2515 = vadd.f32 %v577, %v2514
    %v2516 = vpop.f32.mrf.mxu0
    %v2517 = vpop.f32.mrf.mxu0
    %v2518 = vpop.f32.mrf.mxu0
    %2519 = vdwg.mxu0
    %v2521 = vrot.slane %v2515, 6
    %v2523 = vadd.f32 %v2479, %v2521
    %v2524 = vxor.u32 %v2523, 2147483648
    %v2525 = vmul.f32 %v2524, 1.442695
    %v2526 = vpow.pop %v2525
    %v2527 = vadd.f32 %v2526, 1.0
    %v2528 = vrcp.pop %v2527
    %v2529 = vmul.f32 1.0, %v2528
    %2530 = vrot.lane.b32.xlu0 %v2521, 64
    %v2531 = vpop.permute.xlu0 %2530
    %v2533 = vmul.f32 %v2529, %v2531
    %2535 = vrot.lane.b32.xlu0 %v2533, 64
    %v2536 = vpop.permute.xlu0 %2535
    %v2538 = vadd.f32 %v2479, %v2536
    %v2539 = vtanh.pop %v2538
    %v2540 = vsub.f32 1.0, %v2529
    %2542 = vrot.lane.b32.xlu0 %v2539, 96
    %v2543 = vpop.permute.xlu0 %2542
    %v2545 = vmul.f32 %v2540, %v2543
    %v2546 = vrot.slane %v2226, 6
    %v2548 = vmul.f32 %v2529, %v2546
    %v2549 = vadd.f32 %v2545, %v2548
    %2551 = vrot.lane.b32.xlu0 %v2549, 96
    %v2552 = vpop.permute.xlu0 %2551
    %2554 = vst.msk [vmem:[#allocation2 + $0x8] sm:$0xc] %vm1261, %v2552
    %v2555 = vld [vmem:[#allocation2] sm:$0xff]
    %v2556 = vld [vmem:[#allocation2 + $0x8] sm:$0xf]
    %v2557 = vpack.c.bf16 %v2556, %v2555
    %v2558 = vld [vmem:[#allocation12] sm:$0xf]
    %v2559 = vld [vmem:[#allocation12 + $0x4] sm:$0xf]
    %v2560 = vld [vmem:[#allocation12 + $0x8] sm:$0xf]
    %v2561 = vld [vmem:[#allocation12 + $0xc] sm:$0xf]
    %v2562 = vld [vmem:[%s6] sm:$0x1]
    %v2564 = vlaneseq
    %v2565 = vshrl.u32 %v2564, 7
    %v2566 = vsub.s32 0, %v2565
    %v2567 = vrot.slane %v2562, %v2566
    %v2573 = vunpack.c.l.b16 %v2558
    %v2574 = vunpack.c.l.b16 %v2559
    %v2575 = vunpack.c.l.b16 %v2560
    %v2576 = vunpack.c.l.b16 %v2561
    %v2577 = vpack.c.b16 %v2574, %v2573
    %v2578 = vpack.c.b16 %v2576, %v2575
    %v2582 = vsel %vm246, %v2557, 0
    %2584 = vmatprep.subr.bf16.mxu0 0
    %2585 = vmatpush1.bf16.msra.mxu0 0
    %2586 = vmatprep.subr.bf16.mxu0 0
    %2587 = vmatpush1.bf16.msra.mxu0 0
    %2588 = vmatprep.subr.bf16.mxu0 0
    %2589 = vmatpush1.bf16.msra.mxu0 0
    %2590 = vmatprep.subr.bf16.mxu0 0
    %2591 = vmatpush1.bf16.msra.mxu0 0
    %2592 = vmatprep.subr.bf16.mxu0 0
    %2593 = vmatpush1.bf16.msra.mxu0 0
    %2594 = vmatprep.subr.bf16.mxu0 0
    %2595 = vmatpush1.bf16.msra.mxu0 0
    %2596 = vmatprep.subr.bf16.mxu0 0
    %2597 = vmatpush1.bf16.msra.mxu0 %v2578
    %2598 = vmatprep.subr.bf16.mxu0 0
    %2599 = vmatpush1.bf16.msra.mxu0 %v2577
    %2600 = vmatprep.subr.bf16.mxu0 0
    %2601 = vmatpush2.bf16.msra.mxu0 0
    %2602 = vmatprep.subr.bf16.mxu0 0
    %2603 = vmatpush2.bf16.msra.mxu0 0
    %2604 = vmatprep.subr.bf16.mxu0 0
    %2605 = vmatpush2.bf16.msra.mxu0 0
    %2606 = vmatprep.subr.bf16.mxu0 0
    %2607 = vmatpush2.bf16.msra.mxu0 0
    %2608 = vmatprep.subr.bf16.mxu0 0
    %2609 = vmatpush2.bf16.msra.mxu0 0
    %2610 = vmatprep.subr.bf16.mxu0 0
    %2611 = vmatpush2.bf16.msra.mxu0 0
    %2612 = vmatprep.subr.bf16.mxu0 0
    %2613 = vmatpush2.bf16.msra.mxu0 0
    %2614 = vmatprep.subr.bf16.mxu0 0
    %2615 = vmatpush2.bf16.msra.mxu0 0
    %2616 = vmatprep.mubr.bf16.mxu0 0
    %2617 = vmatmul.mubr.bf16.gmra.mxu0 %v2582
    %v2618 = vpop.f32.mrf.mxu0
    %v2619 = vadd.f32 %v2567, %v2618
    %v2620 = vpop.f32.mrf.mxu0
    %v2621 = vpop.f32.mrf.mxu0
    %v2622 = vadd.f32 %v2567, %v2621
    %v2623 = vpop.f32.mrf.mxu0
    %2624 = vdwg.mxu0
    %2625 = vst [vmem:[#allocation14] sm:$0xff] %v2619
    %2626 = vst [vmem:[#allocation14 + $0x8] sm:$0xf] %v2622
    // Predicated region
    $region54: #{tpu_custom_call.1} parent=1 // pred_check
      _
    $region55: #{tpu_custom_call.1} parent=1 // pred_check_branch
      %2628 = sbr.rel (0) target = $region57
    $region56: #{tpu_custom_call.1} parent=1 // pred_region
      %s2630 = ssub.s32 256, 256
      %2631 = vsyncadd [#allocation5], %s2630
      %s2632 = sshll.u32 [#allocation14], 4
      %s2633 = int_to_ptr.vmem [resolvable:$true] %s2632
      %2638 = dma.vmem_to_hbm [thread:$0]  %s2633, 256, %s7, [#allocation5], 128, 128, 8
    $region57: #{tpu_custom_call.1} parent=1 // pred_fallthru
      _
    // Predicated region
    $region58: #{tpu_custom_call.1} parent=1 // pred_check
      _
    $region59: #{tpu_custom_call.1} parent=1 // pred_check_branch
      %2640 = sbr.rel (0) target = $region61
    $region60: #{tpu_custom_call.1} parent=1 // pred_region
      %2641 = dma.done [#allocation5], 256
    $region61: #{tpu_custom_call.1} parent=1 // pred_fallthru
      _
    %2642 = vsyncpa [#allocation4], 1
    %2643 = vsyncpa [#allocation7], 1
    %2644 = vsyncpa [#allocation10], 1
    %2645 = vsyncpa [#allocation13], 1
    %2646 = vsyncpa [#allocation5], 1

</llo_original>
